<compile_context>
chip_gen: v6e
topology: v6e:2x2x1
jax: 0.10.0
libtpu: 0.0.40
codegen_flags: <defaults>
</compile_context>

<pallas_src>
import functools

import jax
import jax.numpy as jnp
import numpy as np
from jax.experimental import pallas as pl


def _round_up(n, m):
    return ((n + m - 1) // m) * m


# ----------------------------------------------------------------------------
# Fused Pallas kernel (entire model forward)
# ----------------------------------------------------------------------------
def _lstm_cell(gates, c_prev, H):
    """gates: [B, 4H] in PyTorch order (i, f, g, o); c_prev: [B, H]."""
    i = jax.nn.sigmoid(gates[:, 0:H])
    f = jax.nn.sigmoid(gates[:, H:2 * H])
    g = jnp.tanh(gates[:, 2 * H:3 * H])
    o = jax.nn.sigmoid(gates[:, 3 * H:4 * H])
    c_new = f * c_prev + i * g
    h_new = o * jnp.tanh(c_new)
    return h_new, c_new


def _make_fused_kernel(n_layers, T, B, H):
    H4 = 4 * H
    H8 = 8 * H

    def kernel(*refs):
        seq_ref, meta_ref, mw_ref, mb_ref = refs[:4]
        layer_refs = refs[4:4 + 3 * n_layers]
        fc1_w_ref, fc1_b_ref, fc2_w_ref, fc2_b_ref = \
            refs[4 + 3 * n_layers:8 + 3 * n_layers]
        out_ref = refs[8 + 3 * n_layers]

        # seq_meta_fc -> h0, shared by every (layer, direction) per the
        # PyTorch .repeat(n_layers * 2, 1, 1).
        h0 = (jnp.dot(meta_ref[...], mw_ref[...],
                      preferred_element_type=jnp.float32) + mb_ref[...])    # [B, H]
        h0_both = jnp.concatenate([h0, h0], axis=1)                         # [B, 2H]
        c0_both = jnp.zeros((B, 2 * H), jnp.float32)

        # Layer-0 input, time-major, flattened to [T*B, Din0p].
        x_cat = seq_ref[...].reshape(T * B, seq_ref.shape[-1])

        pooled = None
        for l in range(n_layers):
            w_ih = layer_refs[3 * l][...]       # [Dinp, 8H]  (fwd cols | bwd cols)
            w_hh = layer_refs[3 * l + 1][...]   # [2H, 8H]    block-diagonal
            b = layer_refs[3 * l + 2][...]      # [1, 8H]     (b_ih + b_hh, both dirs)

            # --- time-parallel input projection (hoisted out of recurrence) ---
            xp = (jnp.dot(x_cat, w_ih, preferred_element_type=jnp.float32)
                  + b)                                                       # [T*B, 8H]
            xp_t = [xp[t * B:(t + 1) * B, :] for t in range(T)]              # T x [B, 8H]

            # --- sequential recurrence, both directions fused ---------------
            # forward walks t = 0..T-1, backward walks t = T-1..0.
            h = h0_both
            c = c0_both
            outs_f = [None] * T
            outs_b = [None] * T
            for s in range(T):
                g_rec = jnp.dot(h, w_hh,
                                preferred_element_type=jnp.float32)          # [B, 8H]
                gf = g_rec[:, :H4] + xp_t[s][:, :H4]
                gb = g_rec[:, H4:] + xp_t[T - 1 - s][:, H4:]
                h_f, c_f = _lstm_cell(gf, c[:, :H], H)
                h_b, c_b = _lstm_cell(gb, c[:, H:], H)
                h = jnp.concatenate([h_f, h_b], axis=1)
                c = jnp.concatenate([c_f, c_b], axis=1)
                if l + 1 < n_layers:            # last layer's sequence is unused
                    outs_f[s] = h_f
                    outs_b[T - 1 - s] = h_b

            # Final hidden states of this layer: forward carry ended at t=T-1,
            # backward carry ended at t=0 -> running max for AdaptiveMaxPool1d(1).
            layer_max = jnp.maximum(h[:, :H], h[:, H:])
            pooled = layer_max if pooled is None else jnp.maximum(pooled, layer_max)

            # Next layer input: [h_fwd(t) | h_bwd(t)] per timestep, kept as
            # in-register values (never leaves the kernel).
            if l + 1 < n_layers:
                x_cat = jnp.concatenate(
                    [jnp.concatenate([outs_f[t], outs_b[t]], axis=1)
                     for t in range(T)],
                    axis=0)                                                  # [T*B, 2H]

        # Head: fc1 then fc2 (out_features=1 as broadcast-mul + lane reduce).
        z1 = (jnp.dot(pooled, fc1_w_ref[...],
                      preferred_element_type=jnp.float32) + fc1_b_ref[...])  # [B, FC]
        z2 = jnp.sum(z1 * fc2_w_ref[...], axis=1, keepdims=True) + fc2_b_ref[...]
        out_ref[...] = z2                                                    # [B, 1]

    return kernel


# ----------------------------------------------------------------------------
# Parameter packing (done once, outside the hot path)
# ----------------------------------------------------------------------------
def pack_params(params, n_layers, hidden_dim):
    H = hidden_dim
    H4, H8 = 4 * H, 8 * H

    META = params["meta_w"].shape[0]
    METAp = max(8, _round_up(META, 8))
    meta_w = jnp.pad(params["meta_w"], ((0, METAp - META), (0, 0)))
    meta_b = params["meta_b"].reshape(1, H)

    layers = []
    for l in range(n_layers):
        din = 1 if l == 0 else 2 * H
        dinp = 8 if l == 0 else 2 * H                  # pad layer-0 K=1 -> 8
        w_ih = jnp.concatenate([params[f"w_ih_l{l}_d0"],
                                params[f"w_ih_l{l}_d1"]], axis=1)   # [din, 8H]
        if dinp != din:
            w_ih = jnp.pad(w_ih, ((0, dinp - din), (0, 0)))
        w_hh = jnp.zeros((2 * H, H8), jnp.float32)
        w_hh = w_hh.at[:H, :H4].set(params[f"w_hh_l{l}_d0"])
        w_hh = w_hh.at[H:, H4:].set(params[f"w_hh_l{l}_d1"])
        b = jnp.concatenate(
            [params[f"b_ih_l{l}_d0"] + params[f"b_hh_l{l}_d0"],
             params[f"b_ih_l{l}_d1"] + params[f"b_hh_l{l}_d1"]],
            axis=0).reshape(1, H8)
        layers.append((w_ih, w_hh, b))

    FC = params["fc1_w"].shape[1]
    return {
        "meta_w": meta_w, "meta_b": meta_b,
        "layers": tuple(layers),
        "fc1_w": params["fc1_w"], "fc1_b": params["fc1_b"].reshape(1, FC),
        "fc2_w": params["fc2_w"], "fc2_b": params["fc2_b"].reshape(1, 1),
    }


# ----------------------------------------------------------------------------
# Model forward (single pallas_call)
# ----------------------------------------------------------------------------
def model_forward(seq, seq_meta, packed, *, n_layers, hidden_dim):
    B, T = seq.shape
    H = hidden_dim

    METAp = packed["meta_w"].shape[0]
    META = seq_meta.shape[1]
    meta_p = seq_meta if METAp == META else jnp.pad(
        seq_meta, ((0, 0), (0, METAp - META)))

    D0p = packed["layers"][0][0].shape[0]              # padded layer-0 input size
    seq_tm = jnp.transpose(seq)[:, :, None]            # [T, B, 1] time-major
    seq_tm = jnp.pad(seq_tm, ((0, 0), (0, 0), (0, D0p - 1)))

    flat_layer_args = [a for lw in packed["layers"] for a in lw]
    kernel = _make_fused_kernel(n_layers, T, B, H)

    return pl.pallas_call(
        kernel,
        out_shape=jax.ShapeDtypeStruct((B, 1), jnp.float32),
    )(seq_tm, meta_p, packed["meta_w"], packed["meta_b"],
      *flat_layer_args,
      packed["fc1_w"], packed["fc1_b"], packed["fc2_w"], packed["fc2_b"])


# ----------------------------------------------------------------------------
# Pure-JAX reference (correctness check)
# ----------------------------------------------------------------------------
def reference_forward(seq, seq_meta, params, n_layers, H):
    B, T = seq.shape
    h0 = seq_meta @ params["meta_w"] + params["meta_b"]
    c0 = jnp.zeros((B, H), jnp.float32)

    def run_dir(x_seq, w_ih, w_hh, b, h, c):
        outs = []
        for t in range(x_seq.shape[0]):
            gates = x_seq[t] @ w_ih + h @ w_hh + b
            i = jax.nn.sigmoid(gates[:, :H])
            f = jax.nn.sigmoid(gates[:, H:2 * H])
            g = jnp.tanh(gates[:, 2 * H:3 * H])
            o = jax.nn.sigmoid(gates[:, 3 * H:])
            c = f * c + i * g
            h = o * jnp.tanh(c)
            outs.append(h)
        return jnp.stack(outs, 0), h

    layer_in = jnp.transpose(seq[:, :, None], (1, 0, 2))
    finals = []
    for l in range(n_layers):
        dir_outs = []
        for d in range(2):
            w_ih = params[f"w_ih_l{l}_d{d}"]
            w_hh = params[f"w_hh_l{l}_d{d}"]
            b = params[f"b_ih_l{l}_d{d}"] + params[f"b_hh_l{l}_d{d}"]
            xin = layer_in if d == 0 else layer_in[::-1]
            o, hf = run_dir(xin, w_ih, w_hh, b, h0, c0)
            if d == 1:
                o = o[::-1]
            dir_outs.append(o)
            finals.append(hf)
        layer_in = jnp.concatenate(dir_outs, -1)

    pooled = jnp.max(jnp.stack(finals, 0), axis=0)
    z1 = pooled @ params["fc1_w"] + params["fc1_b"]
    z2 = jnp.sum(z1 * params["fc2_w"], axis=1, keepdims=True) + params["fc2_b"]
    return z2


# ----------------------------------------------------------------------------
# Deterministic parameter init (synthetic; shapes from the module __init__)
# ----------------------------------------------------------------------------
def init_params(key, hidden_dim, seq_meta_len, n_layers, fc_dim):
    keys = iter(jax.random.split(key, 64))

    def nrm(shape):
        return jax.random.normal(next(keys), shape, jnp.float32) * 0.1

    p = {
        "meta_w": nrm((seq_meta_len, hidden_dim)),
        "meta_b": nrm((hidden_dim,)),
        "fc1_w": nrm((hidden_dim, fc_dim)),
        "fc1_b": nrm((fc_dim,)),
        "fc2_w": nrm((1, fc_dim)),   # row-vector form of nn.Linear(fc_dim, 1).weight
        "fc2_b": nrm((1,)),
    }
    for l in range(n_layers):
        din = 1 if l == 0 else 2 * hidden_dim
        for d in range(2):
            p[f"w_ih_l{l}_d{d}"] = nrm((din, 4 * hidden_dim))
            p[f"w_hh_l{l}_d{d}"] = nrm((hidden_dim, 4 * hidden_dim))
            p[f"b_ih_l{l}_d{d}"] = nrm((4 * hidden_dim,))
            p[f"b_hh_l{l}_d{d}"] = nrm((4 * hidden_dim,))
    return p


if __name__ == "__main__":
    B, T = 2, 8
    HIDDEN, META, NLAYERS, FC_DIM = 32, 4, 2, 16

    key = jax.random.PRNGKey(0)
    k_seq, k_meta, k_par = jax.random.split(key, 3)
    seq = jax.random.normal(k_seq, (B, T), jnp.float32)
    seq_meta = jax.random.normal(k_meta, (B, META), jnp.float32)
    params = init_params(k_par, HIDDEN, META, NLAYERS, FC_DIM)

    packed = pack_params(params, NLAYERS, HIDDEN)
    fwd = jax.jit(functools.partial(model_forward,
                                    n_layers=NLAYERS, hidden_dim=HIDDEN))
    out = fwd(seq, seq_meta, packed)
    out = jax.block_until_ready(out)

    ref = reference_forward(seq, seq_meta, params, NLAYERS, HIDDEN)
    np.testing.assert_allclose(np.asarray(out), np.asarray(ref),
                               atol=5e-4, rtol=5e-4)
    assert out.shape == (B, 1)
    print("KERNEL_OK")
</pallas_src>

<mosaic_0001>
module attributes {stable_mosaic.version = 11 : i64} {
  func.func @kernel(%arg0: memref<8x2x8xf32, #tpu.memory_space<vmem>>, %arg1: memref<2x8xf32, #tpu.memory_space<vmem>>, %arg2: memref<8x32xf32, #tpu.memory_space<vmem>>, %arg3: memref<1x32xf32, #tpu.memory_space<vmem>>, %arg4: memref<8x256xf32, #tpu.memory_space<vmem>>, %arg5: memref<64x256xf32, #tpu.memory_space<vmem>>, %arg6: memref<1x256xf32, #tpu.memory_space<vmem>>, %arg7: memref<64x256xf32, #tpu.memory_space<vmem>>, %arg8: memref<64x256xf32, #tpu.memory_space<vmem>>, %arg9: memref<1x256xf32, #tpu.memory_space<vmem>>, %arg10: memref<32x16xf32, #tpu.memory_space<vmem>>, %arg11: memref<1x16xf32, #tpu.memory_space<vmem>>, %arg12: memref<1x16xf32, #tpu.memory_space<vmem>>, %arg13: memref<1x1xf32, #tpu.memory_space<vmem>>, %arg14: memref<2x1xf32, #tpu.memory_space<vmem>>) attributes {dimension_semantics = [], scalar_prefetch = 0 : i64, scratch_operands = 0 : i64, tpu.core_type = #tpu.core_type<tc>} {
    %c0 = arith.constant 0 : index
    %c0_0 = arith.constant 0 : index
    %0 = vector.load %arg1[%c0, %c0_0] : memref<2x8xf32, #tpu.memory_space<vmem>>, vector<2x8xf32>
    %c0_1 = arith.constant 0 : index
    %c0_2 = arith.constant 0 : index
    %1 = vector.load %arg2[%c0_1, %c0_2] : memref<8x32xf32, #tpu.memory_space<vmem>>, vector<8x32xf32>
    %cst = arith.constant dense<0.000000e+00> : vector<2x32xf32>
    %2 = tpu.matmul %0, %1, %cst {dimension_numbers = #tpu.dot_dimension_numbers<[1], [0], [0], [1], [0, 0, 1, 1], [], []>} : vector<2x8xf32>, vector<8x32xf32>, vector<2x32xf32> -> vector<2x32xf32>
    %c0_3 = arith.constant 0 : index
    %c0_4 = arith.constant 0 : index
    %3 = vector.load %arg3[%c0_3, %c0_4] : memref<1x32xf32, #tpu.memory_space<vmem>>, vector<1x32xf32>
    %4 = vector.broadcast %3 : vector<1x32xf32> to vector<2x32xf32>
    %5 = arith.addf %2, %4 : vector<2x32xf32>
    %6 = tpu.concatenate %5, %5 in 1 : vector<2x32xf32>, vector<2x32xf32> -> vector<2x64xf32>
    %cst_5 = arith.constant 0.000000e+00 : f32
    %7 = vector.broadcast %cst_5 : f32 to vector<2x64xf32>
    %c0_6 = arith.constant 0 : index
    %c0_7 = arith.constant 0 : index
    %c0_8 = arith.constant 0 : index
    %8 = vector.load %arg0[%c0_6, %c0_7, %c0_8] : memref<8x2x8xf32, #tpu.memory_space<vmem>>, vector<8x2x8xf32>
    %9 = vector.shape_cast %8 : vector<8x2x8xf32> to vector<16x8xf32>
    %c0_9 = arith.constant 0 : index
    %c0_10 = arith.constant 0 : index
    %10 = vector.load %arg4[%c0_9, %c0_10] : memref<8x256xf32, #tpu.memory_space<vmem>>, vector<8x256xf32>
    %c0_11 = arith.constant 0 : index
    %c0_12 = arith.constant 0 : index
    %11 = vector.load %arg5[%c0_11, %c0_12] : memref<64x256xf32, #tpu.memory_space<vmem>>, vector<64x256xf32>
    %c0_13 = arith.constant 0 : index
    %c0_14 = arith.constant 0 : index
    %12 = vector.load %arg6[%c0_13, %c0_14] : memref<1x256xf32, #tpu.memory_space<vmem>>, vector<1x256xf32>
    %cst_15 = arith.constant dense<0.000000e+00> : vector<16x256xf32>
    %13 = tpu.matmul %9, %10, %cst_15 {dimension_numbers = #tpu.dot_dimension_numbers<[1], [0], [0], [1], [0, 0, 1, 1], [], []>} : vector<16x8xf32>, vector<8x256xf32>, vector<16x256xf32> -> vector<16x256xf32>
    %14 = vector.broadcast %12 : vector<1x256xf32> to vector<16x256xf32>
    %15 = arith.addf %13, %14 : vector<16x256xf32>
    %16 = vector.extract_strided_slice %15 {offsets = [0, 0], sizes = [2, 256], strides = [1, 1]} : vector<16x256xf32> to vector<2x256xf32>
    %17 = vector.extract_strided_slice %15 {offsets = [2, 0], sizes = [2, 256], strides = [1, 1]} : vector<16x256xf32> to vector<2x256xf32>
    %18 = vector.extract_strided_slice %15 {offsets = [4, 0], sizes = [2, 256], strides = [1, 1]} : vector<16x256xf32> to vector<2x256xf32>
    %19 = vector.extract_strided_slice %15 {offsets = [6, 0], sizes = [2, 256], strides = [1, 1]} : vector<16x256xf32> to vector<2x256xf32>
    %20 = vector.extract_strided_slice %15 {offsets = [8, 0], sizes = [2, 256], strides = [1, 1]} : vector<16x256xf32> to vector<2x256xf32>
    %21 = vector.extract_strided_slice %15 {offsets = [10, 0], sizes = [2, 256], strides = [1, 1]} : vector<16x256xf32> to vector<2x256xf32>
    %22 = vector.extract_strided_slice %15 {offsets = [12, 0], sizes = [2, 256], strides = [1, 1]} : vector<16x256xf32> to vector<2x256xf32>
    %23 = vector.extract_strided_slice %15 {offsets = [14, 0], sizes = [2, 256], strides = [1, 1]} : vector<16x256xf32> to vector<2x256xf32>
    %cst_16 = arith.constant dense<0.000000e+00> : vector<2x256xf32>
    %24 = tpu.matmul %6, %11, %cst_16 {dimension_numbers = #tpu.dot_dimension_numbers<[1], [0], [0], [1], [0, 0, 1, 1], [], []>} : vector<2x64xf32>, vector<64x256xf32>, vector<2x256xf32> -> vector<2x256xf32>
    %25 = vector.extract_strided_slice %24 {offsets = [0, 0], sizes = [2, 128], strides = [1, 1]} : vector<2x256xf32> to vector<2x128xf32>
    %26 = vector.extract_strided_slice %16 {offsets = [0, 0], sizes = [2, 128], strides = [1, 1]} : vector<2x256xf32> to vector<2x128xf32>
    %27 = arith.addf %25, %26 : vector<2x128xf32>
    %28 = vector.extract_strided_slice %24 {offsets = [0, 128], sizes = [2, 128], strides = [1, 1]} : vector<2x256xf32> to vector<2x128xf32>
    %29 = vector.extract_strided_slice %23 {offsets = [0, 128], sizes = [2, 128], strides = [1, 1]} : vector<2x256xf32> to vector<2x128xf32>
    %30 = arith.addf %28, %29 : vector<2x128xf32>
    %31 = vector.extract_strided_slice %7 {offsets = [0, 0], sizes = [2, 32], strides = [1, 1]} : vector<2x64xf32> to vector<2x32xf32>
    %32 = vector.extract_strided_slice %27 {offsets = [0, 0], sizes = [2, 32], strides = [1, 1]} : vector<2x128xf32> to vector<2x32xf32>
    %33 = arith.negf %32 : vector<2x32xf32>
    %34 = math.exp %33 : vector<2x32xf32>
    %cst_17 = arith.constant 1.000000e+00 : f32
    %35 = vector.broadcast %cst_17 : f32 to vector<2x32xf32>
    %36 = arith.addf %35, %34 : vector<2x32xf32>
    %37 = arith.divf %35, %36 : vector<2x32xf32>
    %38 = vector.extract_strided_slice %27 {offsets = [0, 32], sizes = [2, 32], strides = [1, 1]} : vector<2x128xf32> to vector<2x32xf32>
    %39 = arith.negf %38 : vector<2x32xf32>
    %40 = math.exp %39 : vector<2x32xf32>
    %cst_18 = arith.constant 1.000000e+00 : f32
    %41 = vector.broadcast %cst_18 : f32 to vector<2x32xf32>
    %42 = arith.addf %41, %40 : vector<2x32xf32>
    %43 = arith.divf %41, %42 : vector<2x32xf32>
    %44 = vector.extract_strided_slice %27 {offsets = [0, 64], sizes = [2, 32], strides = [1, 1]} : vector<2x128xf32> to vector<2x32xf32>
    %45 = math.tanh %44 : vector<2x32xf32>
    %46 = vector.extract_strided_slice %27 {offsets = [0, 96], sizes = [2, 32], strides = [1, 1]} : vector<2x128xf32> to vector<2x32xf32>
    %47 = arith.negf %46 : vector<2x32xf32>
    %48 = math.exp %47 : vector<2x32xf32>
    %cst_19 = arith.constant 1.000000e+00 : f32
    %49 = vector.broadcast %cst_19 : f32 to vector<2x32xf32>
    %50 = arith.addf %49, %48 : vector<2x32xf32>
    %51 = arith.divf %49, %50 : vector<2x32xf32>
    %52 = arith.mulf %43, %31 : vector<2x32xf32>
    %53 = arith.mulf %37, %45 : vector<2x32xf32>
    %54 = arith.addf %52, %53 : vector<2x32xf32>
    %55 = math.tanh %54 : vector<2x32xf32>
    %56 = arith.mulf %51, %55 : vector<2x32xf32>
    %57 = vector.extract_strided_slice %7 {offsets = [0, 32], sizes = [2, 32], strides = [1, 1]} : vector<2x64xf32> to vector<2x32xf32>
    %58 = vector.extract_strided_slice %30 {offsets = [0, 0], sizes = [2, 32], strides = [1, 1]} : vector<2x128xf32> to vector<2x32xf32>
    %59 = arith.negf %58 : vector<2x32xf32>
    %60 = math.exp %59 : vector<2x32xf32>
    %cst_20 = arith.constant 1.000000e+00 : f32
    %61 = vector.broadcast %cst_20 : f32 to vector<2x32xf32>
    %62 = arith.addf %61, %60 : vector<2x32xf32>
    %63 = arith.divf %61, %62 : vector<2x32xf32>
    %64 = vector.extract_strided_slice %30 {offsets = [0, 32], sizes = [2, 32], strides = [1, 1]} : vector<2x128xf32> to vector<2x32xf32>
    %65 = arith.negf %64 : vector<2x32xf32>
    %66 = math.exp %65 : vector<2x32xf32>
    %cst_21 = arith.constant 1.000000e+00 : f32
    %67 = vector.broadcast %cst_21 : f32 to vector<2x32xf32>
    %68 = arith.addf %67, %66 : vector<2x32xf32>
    %69 = arith.divf %67, %68 : vector<2x32xf32>
    %70 = vector.extract_strided_slice %30 {offsets = [0, 64], sizes = [2, 32], strides = [1, 1]} : vector<2x128xf32> to vector<2x32xf32>
    %71 = math.tanh %70 : vector<2x32xf32>
    %72 = vector.extract_strided_slice %30 {offsets = [0, 96], sizes = [2, 32], strides = [1, 1]} : vector<2x128xf32> to vector<2x32xf32>
    %73 = arith.negf %72 : vector<2x32xf32>
    %74 = math.exp %73 : vector<2x32xf32>
    %cst_22 = arith.constant 1.000000e+00 : f32
    %75 = vector.broadcast %cst_22 : f32 to vector<2x32xf32>
    %76 = arith.addf %75, %74 : vector<2x32xf32>
    %77 = arith.divf %75, %76 : vector<2x32xf32>
    %78 = arith.mulf %69, %57 : vector<2x32xf32>
    %79 = arith.mulf %63, %71 : vector<2x32xf32>
    %80 = arith.addf %78, %79 : vector<2x32xf32>
    %81 = math.tanh %80 : vector<2x32xf32>
    %82 = arith.mulf %77, %81 : vector<2x32xf32>
    %83 = tpu.concatenate %56, %82 in 1 : vector<2x32xf32>, vector<2x32xf32> -> vector<2x64xf32>
    %84 = tpu.concatenate %54, %80 in 1 : vector<2x32xf32>, vector<2x32xf32> -> vector<2x64xf32>
    %cst_23 = arith.constant dense<0.000000e+00> : vector<2x256xf32>
    %85 = tpu.matmul %83, %11, %cst_23 {dimension_numbers = #tpu.dot_dimension_numbers<[1], [0], [0], [1], [0, 0, 1, 1], [], []>} : vector<2x64xf32>, vector<64x256xf32>, vector<2x256xf32> -> vector<2x256xf32>
    %86 = vector.extract_strided_slice %85 {offsets = [0, 0], sizes = [2, 128], strides = [1, 1]} : vector<2x256xf32> to vector<2x128xf32>
    %87 = vector.extract_strided_slice %17 {offsets = [0, 0], sizes = [2, 128], strides = [1, 1]} : vector<2x256xf32> to vector<2x128xf32>
    %88 = arith.addf %86, %87 : vector<2x128xf32>
    %89 = vector.extract_strided_slice %85 {offsets = [0, 128], sizes = [2, 128], strides = [1, 1]} : vector<2x256xf32> to vector<2x128xf32>
    %90 = vector.extract_strided_slice %22 {offsets = [0, 128], sizes = [2, 128], strides = [1, 1]} : vector<2x256xf32> to vector<2x128xf32>
    %91 = arith.addf %89, %90 : vector<2x128xf32>
    %92 = vector.extract_strided_slice %84 {offsets = [0, 0], sizes = [2, 32], strides = [1, 1]} : vector<2x64xf32> to vector<2x32xf32>
    %93 = vector.extract_strided_slice %88 {offsets = [0, 0], sizes = [2, 32], strides = [1, 1]} : vector<2x128xf32> to vector<2x32xf32>
    %94 = arith.negf %93 : vector<2x32xf32>
    %95 = math.exp %94 : vector<2x32xf32>
    %cst_24 = arith.constant 1.000000e+00 : f32
    %96 = vector.broadcast %cst_24 : f32 to vector<2x32xf32>
    %97 = arith.addf %96, %95 : vector<2x32xf32>
    %98 = arith.divf %96, %97 : vector<2x32xf32>
    %99 = vector.extract_strided_slice %88 {offsets = [0, 32], sizes = [2, 32], strides = [1, 1]} : vector<2x128xf32> to vector<2x32xf32>
    %100 = arith.negf %99 : vector<2x32xf32>
    %101 = math.exp %100 : vector<2x32xf32>
    %cst_25 = arith.constant 1.000000e+00 : f32
    %102 = vector.broadcast %cst_25 : f32 to vector<2x32xf32>
    %103 = arith.addf %102, %101 : vector<2x32xf32>
    %104 = arith.divf %102, %103 : vector<2x32xf32>
    %105 = vector.extract_strided_slice %88 {offsets = [0, 64], sizes = [2, 32], strides = [1, 1]} : vector<2x128xf32> to vector<2x32xf32>
    %106 = math.tanh %105 : vector<2x32xf32>
    %107 = vector.extract_strided_slice %88 {offsets = [0, 96], sizes = [2, 32], strides = [1, 1]} : vector<2x128xf32> to vector<2x32xf32>
    %108 = arith.negf %107 : vector<2x32xf32>
    %109 = math.exp %108 : vector<2x32xf32>
    %cst_26 = arith.constant 1.000000e+00 : f32
    %110 = vector.broadcast %cst_26 : f32 to vector<2x32xf32>
    %111 = arith.addf %110, %109 : vector<2x32xf32>
    %112 = arith.divf %110, %111 : vector<2x32xf32>
    %113 = arith.mulf %104, %92 : vector<2x32xf32>
    %114 = arith.mulf %98, %106 : vector<2x32xf32>
    %115 = arith.addf %113, %114 : vector<2x32xf32>
    %116 = math.tanh %115 : vector<2x32xf32>
    %117 = arith.mulf %112, %116 : vector<2x32xf32>
    %118 = vector.extract_strided_slice %84 {offsets = [0, 32], sizes = [2, 32], strides = [1, 1]} : vector<2x64xf32> to vector<2x32xf32>
    %119 = vector.extract_strided_slice %91 {offsets = [0, 0], sizes = [2, 32], strides = [1, 1]} : vector<2x128xf32> to vector<2x32xf32>
    %120 = arith.negf %119 : vector<2x32xf32>
    %121 = math.exp %120 : vector<2x32xf32>
    %cst_27 = arith.constant 1.000000e+00 : f32
    %122 = vector.broadcast %cst_27 : f32 to vector<2x32xf32>
    %123 = arith.addf %122, %121 : vector<2x32xf32>
    %124 = arith.divf %122, %123 : vector<2x32xf32>
    %125 = vector.extract_strided_slice %91 {offsets = [0, 32], sizes = [2, 32], strides = [1, 1]} : vector<2x128xf32> to vector<2x32xf32>
    %126 = arith.negf %125 : vector<2x32xf32>
    %127 = math.exp %126 : vector<2x32xf32>
    %cst_28 = arith.constant 1.000000e+00 : f32
    %128 = vector.broadcast %cst_28 : f32 to vector<2x32xf32>
    %129 = arith.addf %128, %127 : vector<2x32xf32>
    %130 = arith.divf %128, %129 : vector<2x32xf32>
    %131 = vector.extract_strided_slice %91 {offsets = [0, 64], sizes = [2, 32], strides = [1, 1]} : vector<2x128xf32> to vector<2x32xf32>
    %132 = math.tanh %131 : vector<2x32xf32>
    %133 = vector.extract_strided_slice %91 {offsets = [0, 96], sizes = [2, 32], strides = [1, 1]} : vector<2x128xf32> to vector<2x32xf32>
    %134 = arith.negf %133 : vector<2x32xf32>
    %135 = math.exp %134 : vector<2x32xf32>
    %cst_29 = arith.constant 1.000000e+00 : f32
    %136 = vector.broadcast %cst_29 : f32 to vector<2x32xf32>
    %137 = arith.addf %136, %135 : vector<2x32xf32>
    %138 = arith.divf %136, %137 : vector<2x32xf32>
    %139 = arith.mulf %130, %118 : vector<2x32xf32>
    %140 = arith.mulf %124, %132 : vector<2x32xf32>
    %141 = arith.addf %139, %140 : vector<2x32xf32>
    %142 = math.tanh %141 : vector<2x32xf32>
    %143 = arith.mulf %138, %142 : vector<2x32xf32>
    %144 = tpu.concatenate %117, %143 in 1 : vector<2x32xf32>, vector<2x32xf32> -> vector<2x64xf32>
    %145 = tpu.concatenate %115, %141 in 1 : vector<2x32xf32>, vector<2x32xf32> -> vector<2x64xf32>
    %cst_30 = arith.constant dense<0.000000e+00> : vector<2x256xf32>
    %146 = tpu.matmul %144, %11, %cst_30 {dimension_numbers = #tpu.dot_dimension_numbers<[1], [0], [0], [1], [0, 0, 1, 1], [], []>} : vector<2x64xf32>, vector<64x256xf32>, vector<2x256xf32> -> vector<2x256xf32>
    %147 = vector.extract_strided_slice %146 {offsets = [0, 0], sizes = [2, 128], strides = [1, 1]} : vector<2x256xf32> to vector<2x128xf32>
    %148 = vector.extract_strided_slice %18 {offsets = [0, 0], sizes = [2, 128], strides = [1, 1]} : vector<2x256xf32> to vector<2x128xf32>
    %149 = arith.addf %147, %148 : vector<2x128xf32>
    %150 = vector.extract_strided_slice %146 {offsets = [0, 128], sizes = [2, 128], strides = [1, 1]} : vector<2x256xf32> to vector<2x128xf32>
    %151 = vector.extract_strided_slice %21 {offsets = [0, 128], sizes = [2, 128], strides = [1, 1]} : vector<2x256xf32> to vector<2x128xf32>
    %152 = arith.addf %150, %151 : vector<2x128xf32>
    %153 = vector.extract_strided_slice %145 {offsets = [0, 0], sizes = [2, 32], strides = [1, 1]} : vector<2x64xf32> to vector<2x32xf32>
    %154 = vector.extract_strided_slice %149 {offsets = [0, 0], sizes = [2, 32], strides = [1, 1]} : vector<2x128xf32> to vector<2x32xf32>
    %155 = arith.negf %154 : vector<2x32xf32>
    %156 = math.exp %155 : vector<2x32xf32>
    %cst_31 = arith.constant 1.000000e+00 : f32
    %157 = vector.broadcast %cst_31 : f32 to vector<2x32xf32>
    %158 = arith.addf %157, %156 : vector<2x32xf32>
    %159 = arith.divf %157, %158 : vector<2x32xf32>
    %160 = vector.extract_strided_slice %149 {offsets = [0, 32], sizes = [2, 32], strides = [1, 1]} : vector<2x128xf32> to vector<2x32xf32>
    %161 = arith.negf %160 : vector<2x32xf32>
    %162 = math.exp %161 : vector<2x32xf32>
    %cst_32 = arith.constant 1.000000e+00 : f32
    %163 = vector.broadcast %cst_32 : f32 to vector<2x32xf32>
    %164 = arith.addf %163, %162 : vector<2x32xf32>
    %165 = arith.divf %163, %164 : vector<2x32xf32>
    %166 = vector.extract_strided_slice %149 {offsets = [0, 64], sizes = [2, 32], strides = [1, 1]} : vector<2x128xf32> to vector<2x32xf32>
    %167 = math.tanh %166 : vector<2x32xf32>
    %168 = vector.extract_strided_slice %149 {offsets = [0, 96], sizes = [2, 32], strides = [1, 1]} : vector<2x128xf32> to vector<2x32xf32>
    %169 = arith.negf %168 : vector<2x32xf32>
    %170 = math.exp %169 : vector<2x32xf32>
    %cst_33 = arith.constant 1.000000e+00 : f32
    %171 = vector.broadcast %cst_33 : f32 to vector<2x32xf32>
    %172 = arith.addf %171, %170 : vector<2x32xf32>
    %173 = arith.divf %171, %172 : vector<2x32xf32>
    %174 = arith.mulf %165, %153 : vector<2x32xf32>
    %175 = arith.mulf %159, %167 : vector<2x32xf32>
    %176 = arith.addf %174, %175 : vector<2x32xf32>
    %177 = math.tanh %176 : vector<2x32xf32>
    %178 = arith.mulf %173, %177 : vector<2x32xf32>
    %179 = vector.extract_strided_slice %145 {offsets = [0, 32], sizes = [2, 32], strides = [1, 1]} : vector<2x64xf32> to vector<2x32xf32>
    %180 = vector.extract_strided_slice %152 {offsets = [0, 0], sizes = [2, 32], strides = [1, 1]} : vector<2x128xf32> to vector<2x32xf32>
    %181 = arith.negf %180 : vector<2x32xf32>
    %182 = math.exp %181 : vector<2x32xf32>
    %cst_34 = arith.constant 1.000000e+00 : f32
    %183 = vector.broadcast %cst_34 : f32 to vector<2x32xf32>
    %184 = arith.addf %183, %182 : vector<2x32xf32>
    %185 = arith.divf %183, %184 : vector<2x32xf32>
    %186 = vector.extract_strided_slice %152 {offsets = [0, 32], sizes = [2, 32], strides = [1, 1]} : vector<2x128xf32> to vector<2x32xf32>
    %187 = arith.negf %186 : vector<2x32xf32>
    %188 = math.exp %187 : vector<2x32xf32>
    %cst_35 = arith.constant 1.000000e+00 : f32
    %189 = vector.broadcast %cst_35 : f32 to vector<2x32xf32>
    %190 = arith.addf %189, %188 : vector<2x32xf32>
    %191 = arith.divf %189, %190 : vector<2x32xf32>
    %192 = vector.extract_strided_slice %152 {offsets = [0, 64], sizes = [2, 32], strides = [1, 1]} : vector<2x128xf32> to vector<2x32xf32>
    %193 = math.tanh %192 : vector<2x32xf32>
    %194 = vector.extract_strided_slice %152 {offsets = [0, 96], sizes = [2, 32], strides = [1, 1]} : vector<2x128xf32> to vector<2x32xf32>
    %195 = arith.negf %194 : vector<2x32xf32>
    %196 = math.exp %195 : vector<2x32xf32>
    %cst_36 = arith.constant 1.000000e+00 : f32
    %197 = vector.broadcast %cst_36 : f32 to vector<2x32xf32>
    %198 = arith.addf %197, %196 : vector<2x32xf32>
    %199 = arith.divf %197, %198 : vector<2x32xf32>
    %200 = arith.mulf %191, %179 : vector<2x32xf32>
    %201 = arith.mulf %185, %193 : vector<2x32xf32>
    %202 = arith.addf %200, %201 : vector<2x32xf32>
    %203 = math.tanh %202 : vector<2x32xf32>
    %204 = arith.mulf %199, %203 : vector<2x32xf32>
    %205 = tpu.concatenate %178, %204 in 1 : vector<2x32xf32>, vector<2x32xf32> -> vector<2x64xf32>
    %206 = tpu.concatenate %176, %202 in 1 : vector<2x32xf32>, vector<2x32xf32> -> vector<2x64xf32>
    %cst_37 = arith.constant dense<0.000000e+00> : vector<2x256xf32>
    %207 = tpu.matmul %205, %11, %cst_37 {dimension_numbers = #tpu.dot_dimension_numbers<[1], [0], [0], [1], [0, 0, 1, 1], [], []>} : vector<2x64xf32>, vector<64x256xf32>, vector<2x256xf32> -> vector<2x256xf32>
    %208 = vector.extract_strided_slice %207 {offsets = [0, 0], sizes = [2, 128], strides = [1, 1]} : vector<2x256xf32> to vector<2x128xf32>
    %209 = vector.extract_strided_slice %19 {offsets = [0, 0], sizes = [2, 128], strides = [1, 1]} : vector<2x256xf32> to vector<2x128xf32>
    %210 = arith.addf %208, %209 : vector<2x128xf32>
    %211 = vector.extract_strided_slice %207 {offsets = [0, 128], sizes = [2, 128], strides = [1, 1]} : vector<2x256xf32> to vector<2x128xf32>
    %212 = vector.extract_strided_slice %20 {offsets = [0, 128], sizes = [2, 128], strides = [1, 1]} : vector<2x256xf32> to vector<2x128xf32>
    %213 = arith.addf %211, %212 : vector<2x128xf32>
    %214 = vector.extract_strided_slice %206 {offsets = [0, 0], sizes = [2, 32], strides = [1, 1]} : vector<2x64xf32> to vector<2x32xf32>
    %215 = vector.extract_strided_slice %210 {offsets = [0, 0], sizes = [2, 32], strides = [1, 1]} : vector<2x128xf32> to vector<2x32xf32>
    %216 = arith.negf %215 : vector<2x32xf32>
    %217 = math.exp %216 : vector<2x32xf32>
    %cst_38 = arith.constant 1.000000e+00 : f32
    %218 = vector.broadcast %cst_38 : f32 to vector<2x32xf32>
    %219 = arith.addf %218, %217 : vector<2x32xf32>
    %220 = arith.divf %218, %219 : vector<2x32xf32>
    %221 = vector.extract_strided_slice %210 {offsets = [0, 32], sizes = [2, 32], strides = [1, 1]} : vector<2x128xf32> to vector<2x32xf32>
    %222 = arith.negf %221 : vector<2x32xf32>
    %223 = math.exp %222 : vector<2x32xf32>
    %cst_39 = arith.constant 1.000000e+00 : f32
    %224 = vector.broadcast %cst_39 : f32 to vector<2x32xf32>
    %225 = arith.addf %224, %223 : vector<2x32xf32>
    %226 = arith.divf %224, %225 : vector<2x32xf32>
    %227 = vector.extract_strided_slice %210 {offsets = [0, 64], sizes = [2, 32], strides = [1, 1]} : vector<2x128xf32> to vector<2x32xf32>
    %228 = math.tanh %227 : vector<2x32xf32>
    %229 = vector.extract_strided_slice %210 {offsets = [0, 96], sizes = [2, 32], strides = [1, 1]} : vector<2x128xf32> to vector<2x32xf32>
    %230 = arith.negf %229 : vector<2x32xf32>
    %231 = math.exp %230 : vector<2x32xf32>
    %cst_40 = arith.constant 1.000000e+00 : f32
    %232 = vector.broadcast %cst_40 : f32 to vector<2x32xf32>
    %233 = arith.addf %232, %231 : vector<2x32xf32>
    %234 = arith.divf %232, %233 : vector<2x32xf32>
    %235 = arith.mulf %226, %214 : vector<2x32xf32>
    %236 = arith.mulf %220, %228 : vector<2x32xf32>
    %237 = arith.addf %235, %236 : vector<2x32xf32>
    %238 = math.tanh %237 : vector<2x32xf32>
    %239 = arith.mulf %234, %238 : vector<2x32xf32>
    %240 = vector.extract_strided_slice %206 {offsets = [0, 32], sizes = [2, 32], strides = [1, 1]} : vector<2x64xf32> to vector<2x32xf32>
    %241 = vector.extract_strided_slice %213 {offsets = [0, 0], sizes = [2, 32], strides = [1, 1]} : vector<2x128xf32> to vector<2x32xf32>
    %242 = arith.negf %241 : vector<2x32xf32>
    %243 = math.exp %242 : vector<2x32xf32>
    %cst_41 = arith.constant 1.000000e+00 : f32
    %244 = vector.broadcast %cst_41 : f32 to vector<2x32xf32>
    %245 = arith.addf %244, %243 : vector<2x32xf32>
    %246 = arith.divf %244, %245 : vector<2x32xf32>
    %247 = vector.extract_strided_slice %213 {offsets = [0, 32], sizes = [2, 32], strides = [1, 1]} : vector<2x128xf32> to vector<2x32xf32>
    %248 = arith.negf %247 : vector<2x32xf32>
    %249 = math.exp %248 : vector<2x32xf32>
    %cst_42 = arith.constant 1.000000e+00 : f32
    %250 = vector.broadcast %cst_42 : f32 to vector<2x32xf32>
    %251 = arith.addf %250, %249 : vector<2x32xf32>
    %252 = arith.divf %250, %251 : vector<2x32xf32>
    %253 = vector.extract_strided_slice %213 {offsets = [0, 64], sizes = [2, 32], strides = [1, 1]} : vector<2x128xf32> to vector<2x32xf32>
    %254 = math.tanh %253 : vector<2x32xf32>
    %255 = vector.extract_strided_slice %213 {offsets = [0, 96], sizes = [2, 32], strides = [1, 1]} : vector<2x128xf32> to vector<2x32xf32>
    %256 = arith.negf %255 : vector<2x32xf32>
    %257 = math.exp %256 : vector<2x32xf32>
    %cst_43 = arith.constant 1.000000e+00 : f32
    %258 = vector.broadcast %cst_43 : f32 to vector<2x32xf32>
    %259 = arith.addf %258, %257 : vector<2x32xf32>
    %260 = arith.divf %258, %259 : vector<2x32xf32>
    %261 = arith.mulf %252, %240 : vector<2x32xf32>
    %262 = arith.mulf %246, %254 : vector<2x32xf32>
    %263 = arith.addf %261, %262 : vector<2x32xf32>
    %264 = math.tanh %263 : vector<2x32xf32>
    %265 = arith.mulf %260, %264 : vector<2x32xf32>
    %266 = tpu.concatenate %239, %265 in 1 : vector<2x32xf32>, vector<2x32xf32> -> vector<2x64xf32>
    %267 = tpu.concatenate %237, %263 in 1 : vector<2x32xf32>, vector<2x32xf32> -> vector<2x64xf32>
    %cst_44 = arith.constant dense<0.000000e+00> : vector<2x256xf32>
    %268 = tpu.matmul %266, %11, %cst_44 {dimension_numbers = #tpu.dot_dimension_numbers<[1], [0], [0], [1], [0, 0, 1, 1], [], []>} : vector<2x64xf32>, vector<64x256xf32>, vector<2x256xf32> -> vector<2x256xf32>
    %269 = vector.extract_strided_slice %268 {offsets = [0, 0], sizes = [2, 128], strides = [1, 1]} : vector<2x256xf32> to vector<2x128xf32>
    %270 = vector.extract_strided_slice %20 {offsets = [0, 0], sizes = [2, 128], strides = [1, 1]} : vector<2x256xf32> to vector<2x128xf32>
    %271 = arith.addf %269, %270 : vector<2x128xf32>
    %272 = vector.extract_strided_slice %268 {offsets = [0, 128], sizes = [2, 128], strides = [1, 1]} : vector<2x256xf32> to vector<2x128xf32>
    %273 = vector.extract_strided_slice %19 {offsets = [0, 128], sizes = [2, 128], strides = [1, 1]} : vector<2x256xf32> to vector<2x128xf32>
    %274 = arith.addf %272, %273 : vector<2x128xf32>
    %275 = vector.extract_strided_slice %267 {offsets = [0, 0], sizes = [2, 32], strides = [1, 1]} : vector<2x64xf32> to vector<2x32xf32>
    %276 = vector.extract_strided_slice %271 {offsets = [0, 0], sizes = [2, 32], strides = [1, 1]} : vector<2x128xf32> to vector<2x32xf32>
    %277 = arith.negf %276 : vector<2x32xf32>
    %278 = math.exp %277 : vector<2x32xf32>
    %cst_45 = arith.constant 1.000000e+00 : f32
    %279 = vector.broadcast %cst_45 : f32 to vector<2x32xf32>
    %280 = arith.addf %279, %278 : vector<2x32xf32>
    %281 = arith.divf %279, %280 : vector<2x32xf32>
    %282 = vector.extract_strided_slice %271 {offsets = [0, 32], sizes = [2, 32], strides = [1, 1]} : vector<2x128xf32> to vector<2x32xf32>
    %283 = arith.negf %282 : vector<2x32xf32>
    %284 = math.exp %283 : vector<2x32xf32>
    %cst_46 = arith.constant 1.000000e+00 : f32
    %285 = vector.broadcast %cst_46 : f32 to vector<2x32xf32>
    %286 = arith.addf %285, %284 : vector<2x32xf32>
    %287 = arith.divf %285, %286 : vector<2x32xf32>
    %288 = vector.extract_strided_slice %271 {offsets = [0, 64], sizes = [2, 32], strides = [1, 1]} : vector<2x128xf32> to vector<2x32xf32>
    %289 = math.tanh %288 : vector<2x32xf32>
    %290 = vector.extract_strided_slice %271 {offsets = [0, 96], sizes = [2, 32], strides = [1, 1]} : vector<2x128xf32> to vector<2x32xf32>
    %291 = arith.negf %290 : vector<2x32xf32>
    %292 = math.exp %291 : vector<2x32xf32>
    %cst_47 = arith.constant 1.000000e+00 : f32
    %293 = vector.broadcast %cst_47 : f32 to vector<2x32xf32>
    %294 = arith.addf %293, %292 : vector<2x32xf32>
    %295 = arith.divf %293, %294 : vector<2x32xf32>
    %296 = arith.mulf %287, %275 : vector<2x32xf32>
    %297 = arith.mulf %281, %289 : vector<2x32xf32>
    %298 = arith.addf %296, %297 : vector<2x32xf32>
    %299 = math.tanh %298 : vector<2x32xf32>
    %300 = arith.mulf %295, %299 : vector<2x32xf32>
    %301 = vector.extract_strided_slice %267 {offsets = [0, 32], sizes = [2, 32], strides = [1, 1]} : vector<2x64xf32> to vector<2x32xf32>
    %302 = vector.extract_strided_slice %274 {offsets = [0, 0], sizes = [2, 32], strides = [1, 1]} : vector<2x128xf32> to vector<2x32xf32>
    %303 = arith.negf %302 : vector<2x32xf32>
    %304 = math.exp %303 : vector<2x32xf32>
    %cst_48 = arith.constant 1.000000e+00 : f32
    %305 = vector.broadcast %cst_48 : f32 to vector<2x32xf32>
    %306 = arith.addf %305, %304 : vector<2x32xf32>
    %307 = arith.divf %305, %306 : vector<2x32xf32>
    %308 = vector.extract_strided_slice %274 {offsets = [0, 32], sizes = [2, 32], strides = [1, 1]} : vector<2x128xf32> to vector<2x32xf32>
    %309 = arith.negf %308 : vector<2x32xf32>
    %310 = math.exp %309 : vector<2x32xf32>
    %cst_49 = arith.constant 1.000000e+00 : f32
    %311 = vector.broadcast %cst_49 : f32 to vector<2x32xf32>
    %312 = arith.addf %311, %310 : vector<2x32xf32>
    %313 = arith.divf %311, %312 : vector<2x32xf32>
    %314 = vector.extract_strided_slice %274 {offsets = [0, 64], sizes = [2, 32], strides = [1, 1]} : vector<2x128xf32> to vector<2x32xf32>
    %315 = math.tanh %314 : vector<2x32xf32>
    %316 = vector.extract_strided_slice %274 {offsets = [0, 96], sizes = [2, 32], strides = [1, 1]} : vector<2x128xf32> to vector<2x32xf32>
    %317 = arith.negf %316 : vector<2x32xf32>
    %318 = math.exp %317 : vector<2x32xf32>
    %cst_50 = arith.constant 1.000000e+00 : f32
    %319 = vector.broadcast %cst_50 : f32 to vector<2x32xf32>
    %320 = arith.addf %319, %318 : vector<2x32xf32>
    %321 = arith.divf %319, %320 : vector<2x32xf32>
    %322 = arith.mulf %313, %301 : vector<2x32xf32>
    %323 = arith.mulf %307, %315 : vector<2x32xf32>
    %324 = arith.addf %322, %323 : vector<2x32xf32>
    %325 = math.tanh %324 : vector<2x32xf32>
    %326 = arith.mulf %321, %325 : vector<2x32xf32>
    %327 = tpu.concatenate %300, %326 in 1 : vector<2x32xf32>, vector<2x32xf32> -> vector<2x64xf32>
    %328 = tpu.concatenate %298, %324 in 1 : vector<2x32xf32>, vector<2x32xf32> -> vector<2x64xf32>
    %cst_51 = arith.constant dense<0.000000e+00> : vector<2x256xf32>
    %329 = tpu.matmul %327, %11, %cst_51 {dimension_numbers = #tpu.dot_dimension_numbers<[1], [0], [0], [1], [0, 0, 1, 1], [], []>} : vector<2x64xf32>, vector<64x256xf32>, vector<2x256xf32> -> vector<2x256xf32>
    %330 = vector.extract_strided_slice %329 {offsets = [0, 0], sizes = [2, 128], strides = [1, 1]} : vector<2x256xf32> to vector<2x128xf32>
    %331 = vector.extract_strided_slice %21 {offsets = [0, 0], sizes = [2, 128], strides = [1, 1]} : vector<2x256xf32> to vector<2x128xf32>
    %332 = arith.addf %330, %331 : vector<2x128xf32>
    %333 = vector.extract_strided_slice %329 {offsets = [0, 128], sizes = [2, 128], strides = [1, 1]} : vector<2x256xf32> to vector<2x128xf32>
    %334 = vector.extract_strided_slice %18 {offsets = [0, 128], sizes = [2, 128], strides = [1, 1]} : vector<2x256xf32> to vector<2x128xf32>
    %335 = arith.addf %333, %334 : vector<2x128xf32>
    %336 = vector.extract_strided_slice %328 {offsets = [0, 0], sizes = [2, 32], strides = [1, 1]} : vector<2x64xf32> to vector<2x32xf32>
    %337 = vector.extract_strided_slice %332 {offsets = [0, 0], sizes = [2, 32], strides = [1, 1]} : vector<2x128xf32> to vector<2x32xf32>
    %338 = arith.negf %337 : vector<2x32xf32>
    %339 = math.exp %338 : vector<2x32xf32>
    %cst_52 = arith.constant 1.000000e+00 : f32
    %340 = vector.broadcast %cst_52 : f32 to vector<2x32xf32>
    %341 = arith.addf %340, %339 : vector<2x32xf32>
    %342 = arith.divf %340, %341 : vector<2x32xf32>
    %343 = vector.extract_strided_slice %332 {offsets = [0, 32], sizes = [2, 32], strides = [1, 1]} : vector<2x128xf32> to vector<2x32xf32>
    %344 = arith.negf %343 : vector<2x32xf32>
    %345 = math.exp %344 : vector<2x32xf32>
    %cst_53 = arith.constant 1.000000e+00 : f32
    %346 = vector.broadcast %cst_53 : f32 to vector<2x32xf32>
    %347 = arith.addf %346, %345 : vector<2x32xf32>
    %348 = arith.divf %346, %347 : vector<2x32xf32>
    %349 = vector.extract_strided_slice %332 {offsets = [0, 64], sizes = [2, 32], strides = [1, 1]} : vector<2x128xf32> to vector<2x32xf32>
    %350 = math.tanh %349 : vector<2x32xf32>
    %351 = vector.extract_strided_slice %332 {offsets = [0, 96], sizes = [2, 32], strides = [1, 1]} : vector<2x128xf32> to vector<2x32xf32>
    %352 = arith.negf %351 : vector<2x32xf32>
    %353 = math.exp %352 : vector<2x32xf32>
    %cst_54 = arith.constant 1.000000e+00 : f32
    %354 = vector.broadcast %cst_54 : f32 to vector<2x32xf32>
    %355 = arith.addf %354, %353 : vector<2x32xf32>
    %356 = arith.divf %354, %355 : vector<2x32xf32>
    %357 = arith.mulf %348, %336 : vector<2x32xf32>
    %358 = arith.mulf %342, %350 : vector<2x32xf32>
    %359 = arith.addf %357, %358 : vector<2x32xf32>
    %360 = math.tanh %359 : vector<2x32xf32>
    %361 = arith.mulf %356, %360 : vector<2x32xf32>
    %362 = vector.extract_strided_slice %328 {offsets = [0, 32], sizes = [2, 32], strides = [1, 1]} : vector<2x64xf32> to vector<2x32xf32>
    %363 = vector.extract_strided_slice %335 {offsets = [0, 0], sizes = [2, 32], strides = [1, 1]} : vector<2x128xf32> to vector<2x32xf32>
    %364 = arith.negf %363 : vector<2x32xf32>
    %365 = math.exp %364 : vector<2x32xf32>
    %cst_55 = arith.constant 1.000000e+00 : f32
    %366 = vector.broadcast %cst_55 : f32 to vector<2x32xf32>
    %367 = arith.addf %366, %365 : vector<2x32xf32>
    %368 = arith.divf %366, %367 : vector<2x32xf32>
    %369 = vector.extract_strided_slice %335 {offsets = [0, 32], sizes = [2, 32], strides = [1, 1]} : vector<2x128xf32> to vector<2x32xf32>
    %370 = arith.negf %369 : vector<2x32xf32>
    %371 = math.exp %370 : vector<2x32xf32>
    %cst_56 = arith.constant 1.000000e+00 : f32
    %372 = vector.broadcast %cst_56 : f32 to vector<2x32xf32>
    %373 = arith.addf %372, %371 : vector<2x32xf32>
    %374 = arith.divf %372, %373 : vector<2x32xf32>
    %375 = vector.extract_strided_slice %335 {offsets = [0, 64], sizes = [2, 32], strides = [1, 1]} : vector<2x128xf32> to vector<2x32xf32>
    %376 = math.tanh %375 : vector<2x32xf32>
    %377 = vector.extract_strided_slice %335 {offsets = [0, 96], sizes = [2, 32], strides = [1, 1]} : vector<2x128xf32> to vector<2x32xf32>
    %378 = arith.negf %377 : vector<2x32xf32>
    %379 = math.exp %378 : vector<2x32xf32>
    %cst_57 = arith.constant 1.000000e+00 : f32
    %380 = vector.broadcast %cst_57 : f32 to vector<2x32xf32>
    %381 = arith.addf %380, %379 : vector<2x32xf32>
    %382 = arith.divf %380, %381 : vector<2x32xf32>
    %383 = arith.mulf %374, %362 : vector<2x32xf32>
    %384 = arith.mulf %368, %376 : vector<2x32xf32>
    %385 = arith.addf %383, %384 : vector<2x32xf32>
    %386 = math.tanh %385 : vector<2x32xf32>
    %387 = arith.mulf %382, %386 : vector<2x32xf32>
    %388 = tpu.concatenate %361, %387 in 1 : vector<2x32xf32>, vector<2x32xf32> -> vector<2x64xf32>
    %389 = tpu.concatenate %359, %385 in 1 : vector<2x32xf32>, vector<2x32xf32> -> vector<2x64xf32>
    %cst_58 = arith.constant dense<0.000000e+00> : vector<2x256xf32>
    %390 = tpu.matmul %388, %11, %cst_58 {dimension_numbers = #tpu.dot_dimension_numbers<[1], [0], [0], [1], [0, 0, 1, 1], [], []>} : vector<2x64xf32>, vector<64x256xf32>, vector<2x256xf32> -> vector<2x256xf32>
    %391 = vector.extract_strided_slice %390 {offsets = [0, 0], sizes = [2, 128], strides = [1, 1]} : vector<2x256xf32> to vector<2x128xf32>
    %392 = vector.extract_strided_slice %22 {offsets = [0, 0], sizes = [2, 128], strides = [1, 1]} : vector<2x256xf32> to vector<2x128xf32>
    %393 = arith.addf %391, %392 : vector<2x128xf32>
    %394 = vector.extract_strided_slice %390 {offsets = [0, 128], sizes = [2, 128], strides = [1, 1]} : vector<2x256xf32> to vector<2x128xf32>
    %395 = vector.extract_strided_slice %17 {offsets = [0, 128], sizes = [2, 128], strides = [1, 1]} : vector<2x256xf32> to vector<2x128xf32>
    %396 = arith.addf %394, %395 : vector<2x128xf32>
    %397 = vector.extract_strided_slice %389 {offsets = [0, 0], sizes = [2, 32], strides = [1, 1]} : vector<2x64xf32> to vector<2x32xf32>
    %398 = vector.extract_strided_slice %393 {offsets = [0, 0], sizes = [2, 32], strides = [1, 1]} : vector<2x128xf32> to vector<2x32xf32>
    %399 = arith.negf %398 : vector<2x32xf32>
    %400 = math.exp %399 : vector<2x32xf32>
    %cst_59 = arith.constant 1.000000e+00 : f32
    %401 = vector.broadcast %cst_59 : f32 to vector<2x32xf32>
    %402 = arith.addf %401, %400 : vector<2x32xf32>
    %403 = arith.divf %401, %402 : vector<2x32xf32>
    %404 = vector.extract_strided_slice %393 {offsets = [0, 32], sizes = [2, 32], strides = [1, 1]} : vector<2x128xf32> to vector<2x32xf32>
    %405 = arith.negf %404 : vector<2x32xf32>
    %406 = math.exp %405 : vector<2x32xf32>
    %cst_60 = arith.constant 1.000000e+00 : f32
    %407 = vector.broadcast %cst_60 : f32 to vector<2x32xf32>
    %408 = arith.addf %407, %406 : vector<2x32xf32>
    %409 = arith.divf %407, %408 : vector<2x32xf32>
    %410 = vector.extract_strided_slice %393 {offsets = [0, 64], sizes = [2, 32], strides = [1, 1]} : vector<2x128xf32> to vector<2x32xf32>
    %411 = math.tanh %410 : vector<2x32xf32>
    %412 = vector.extract_strided_slice %393 {offsets = [0, 96], sizes = [2, 32], strides = [1, 1]} : vector<2x128xf32> to vector<2x32xf32>
    %413 = arith.negf %412 : vector<2x32xf32>
    %414 = math.exp %413 : vector<2x32xf32>
    %cst_61 = arith.constant 1.000000e+00 : f32
    %415 = vector.broadcast %cst_61 : f32 to vector<2x32xf32>
    %416 = arith.addf %415, %414 : vector<2x32xf32>
    %417 = arith.divf %415, %416 : vector<2x32xf32>
    %418 = arith.mulf %409, %397 : vector<2x32xf32>
    %419 = arith.mulf %403, %411 : vector<2x32xf32>
    %420 = arith.addf %418, %419 : vector<2x32xf32>
    %421 = math.tanh %420 : vector<2x32xf32>
    %422 = arith.mulf %417, %421 : vector<2x32xf32>
    %423 = vector.extract_strided_slice %389 {offsets = [0, 32], sizes = [2, 32], strides = [1, 1]} : vector<2x64xf32> to vector<2x32xf32>
    %424 = vector.extract_strided_slice %396 {offsets = [0, 0], sizes = [2, 32], strides = [1, 1]} : vector<2x128xf32> to vector<2x32xf32>
    %425 = arith.negf %424 : vector<2x32xf32>
    %426 = math.exp %425 : vector<2x32xf32>
    %cst_62 = arith.constant 1.000000e+00 : f32
    %427 = vector.broadcast %cst_62 : f32 to vector<2x32xf32>
    %428 = arith.addf %427, %426 : vector<2x32xf32>
    %429 = arith.divf %427, %428 : vector<2x32xf32>
    %430 = vector.extract_strided_slice %396 {offsets = [0, 32], sizes = [2, 32], strides = [1, 1]} : vector<2x128xf32> to vector<2x32xf32>
    %431 = arith.negf %430 : vector<2x32xf32>
    %432 = math.exp %431 : vector<2x32xf32>
    %cst_63 = arith.constant 1.000000e+00 : f32
    %433 = vector.broadcast %cst_63 : f32 to vector<2x32xf32>
    %434 = arith.addf %433, %432 : vector<2x32xf32>
    %435 = arith.divf %433, %434 : vector<2x32xf32>
    %436 = vector.extract_strided_slice %396 {offsets = [0, 64], sizes = [2, 32], strides = [1, 1]} : vector<2x128xf32> to vector<2x32xf32>
    %437 = math.tanh %436 : vector<2x32xf32>
    %438 = vector.extract_strided_slice %396 {offsets = [0, 96], sizes = [2, 32], strides = [1, 1]} : vector<2x128xf32> to vector<2x32xf32>
    %439 = arith.negf %438 : vector<2x32xf32>
    %440 = math.exp %439 : vector<2x32xf32>
    %cst_64 = arith.constant 1.000000e+00 : f32
    %441 = vector.broadcast %cst_64 : f32 to vector<2x32xf32>
    %442 = arith.addf %441, %440 : vector<2x32xf32>
    %443 = arith.divf %441, %442 : vector<2x32xf32>
    %444 = arith.mulf %435, %423 : vector<2x32xf32>
    %445 = arith.mulf %429, %437 : vector<2x32xf32>
    %446 = arith.addf %444, %445 : vector<2x32xf32>
    %447 = math.tanh %446 : vector<2x32xf32>
    %448 = arith.mulf %443, %447 : vector<2x32xf32>
    %449 = tpu.concatenate %422, %448 in 1 : vector<2x32xf32>, vector<2x32xf32> -> vector<2x64xf32>
    %450 = tpu.concatenate %420, %446 in 1 : vector<2x32xf32>, vector<2x32xf32> -> vector<2x64xf32>
    %cst_65 = arith.constant dense<0.000000e+00> : vector<2x256xf32>
    %451 = tpu.matmul %449, %11, %cst_65 {dimension_numbers = #tpu.dot_dimension_numbers<[1], [0], [0], [1], [0, 0, 1, 1], [], []>} : vector<2x64xf32>, vector<64x256xf32>, vector<2x256xf32> -> vector<2x256xf32>
    %452 = vector.extract_strided_slice %451 {offsets = [0, 0], sizes = [2, 128], strides = [1, 1]} : vector<2x256xf32> to vector<2x128xf32>
    %453 = vector.extract_strided_slice %23 {offsets = [0, 0], sizes = [2, 128], strides = [1, 1]} : vector<2x256xf32> to vector<2x128xf32>
    %454 = arith.addf %452, %453 : vector<2x128xf32>
    %455 = vector.extract_strided_slice %451 {offsets = [0, 128], sizes = [2, 128], strides = [1, 1]} : vector<2x256xf32> to vector<2x128xf32>
    %456 = vector.extract_strided_slice %16 {offsets = [0, 128], sizes = [2, 128], strides = [1, 1]} : vector<2x256xf32> to vector<2x128xf32>
    %457 = arith.addf %455, %456 : vector<2x128xf32>
    %458 = vector.extract_strided_slice %450 {offsets = [0, 0], sizes = [2, 32], strides = [1, 1]} : vector<2x64xf32> to vector<2x32xf32>
    %459 = vector.extract_strided_slice %454 {offsets = [0, 0], sizes = [2, 32], strides = [1, 1]} : vector<2x128xf32> to vector<2x32xf32>
    %460 = arith.negf %459 : vector<2x32xf32>
    %461 = math.exp %460 : vector<2x32xf32>
    %cst_66 = arith.constant 1.000000e+00 : f32
    %462 = vector.broadcast %cst_66 : f32 to vector<2x32xf32>
    %463 = arith.addf %462, %461 : vector<2x32xf32>
    %464 = arith.divf %462, %463 : vector<2x32xf32>
    %465 = vector.extract_strided_slice %454 {offsets = [0, 32], sizes = [2, 32], strides = [1, 1]} : vector<2x128xf32> to vector<2x32xf32>
    %466 = arith.negf %465 : vector<2x32xf32>
    %467 = math.exp %466 : vector<2x32xf32>
    %cst_67 = arith.constant 1.000000e+00 : f32
    %468 = vector.broadcast %cst_67 : f32 to vector<2x32xf32>
    %469 = arith.addf %468, %467 : vector<2x32xf32>
    %470 = arith.divf %468, %469 : vector<2x32xf32>
    %471 = vector.extract_strided_slice %454 {offsets = [0, 64], sizes = [2, 32], strides = [1, 1]} : vector<2x128xf32> to vector<2x32xf32>
    %472 = math.tanh %471 : vector<2x32xf32>
    %473 = vector.extract_strided_slice %454 {offsets = [0, 96], sizes = [2, 32], strides = [1, 1]} : vector<2x128xf32> to vector<2x32xf32>
    %474 = arith.negf %473 : vector<2x32xf32>
    %475 = math.exp %474 : vector<2x32xf32>
    %cst_68 = arith.constant 1.000000e+00 : f32
    %476 = vector.broadcast %cst_68 : f32 to vector<2x32xf32>
    %477 = arith.addf %476, %475 : vector<2x32xf32>
    %478 = arith.divf %476, %477 : vector<2x32xf32>
    %479 = arith.mulf %470, %458 : vector<2x32xf32>
    %480 = arith.mulf %464, %472 : vector<2x32xf32>
    %481 = arith.addf %479, %480 : vector<2x32xf32>
    %482 = math.tanh %481 : vector<2x32xf32>
    %483 = arith.mulf %478, %482 : vector<2x32xf32>
    %484 = vector.extract_strided_slice %450 {offsets = [0, 32], sizes = [2, 32], strides = [1, 1]} : vector<2x64xf32> to vector<2x32xf32>
    %485 = vector.extract_strided_slice %457 {offsets = [0, 0], sizes = [2, 32], strides = [1, 1]} : vector<2x128xf32> to vector<2x32xf32>
    %486 = arith.negf %485 : vector<2x32xf32>
    %487 = math.exp %486 : vector<2x32xf32>
    %cst_69 = arith.constant 1.000000e+00 : f32
    %488 = vector.broadcast %cst_69 : f32 to vector<2x32xf32>
    %489 = arith.addf %488, %487 : vector<2x32xf32>
    %490 = arith.divf %488, %489 : vector<2x32xf32>
    %491 = vector.extract_strided_slice %457 {offsets = [0, 32], sizes = [2, 32], strides = [1, 1]} : vector<2x128xf32> to vector<2x32xf32>
    %492 = arith.negf %491 : vector<2x32xf32>
    %493 = math.exp %492 : vector<2x32xf32>
    %cst_70 = arith.constant 1.000000e+00 : f32
    %494 = vector.broadcast %cst_70 : f32 to vector<2x32xf32>
    %495 = arith.addf %494, %493 : vector<2x32xf32>
    %496 = arith.divf %494, %495 : vector<2x32xf32>
    %497 = vector.extract_strided_slice %457 {offsets = [0, 64], sizes = [2, 32], strides = [1, 1]} : vector<2x128xf32> to vector<2x32xf32>
    %498 = math.tanh %497 : vector<2x32xf32>
    %499 = vector.extract_strided_slice %457 {offsets = [0, 96], sizes = [2, 32], strides = [1, 1]} : vector<2x128xf32> to vector<2x32xf32>
    %500 = arith.negf %499 : vector<2x32xf32>
    %501 = math.exp %500 : vector<2x32xf32>
    %cst_71 = arith.constant 1.000000e+00 : f32
    %502 = vector.broadcast %cst_71 : f32 to vector<2x32xf32>
    %503 = arith.addf %502, %501 : vector<2x32xf32>
    %504 = arith.divf %502, %503 : vector<2x32xf32>
    %505 = arith.mulf %496, %484 : vector<2x32xf32>
    %506 = arith.mulf %490, %498 : vector<2x32xf32>
    %507 = arith.addf %505, %506 : vector<2x32xf32>
    %508 = math.tanh %507 : vector<2x32xf32>
    %509 = arith.mulf %504, %508 : vector<2x32xf32>
    %510 = tpu.concatenate %483, %509 in 1 : vector<2x32xf32>, vector<2x32xf32> -> vector<2x64xf32>
    %511 = vector.extract_strided_slice %510 {offsets = [0, 0], sizes = [2, 32], strides = [1, 1]} : vector<2x64xf32> to vector<2x32xf32>
    %512 = vector.extract_strided_slice %510 {offsets = [0, 32], sizes = [2, 32], strides = [1, 1]} : vector<2x64xf32> to vector<2x32xf32>
    %513 = arith.maximumf %511, %512 : vector<2x32xf32>
    %514 = tpu.concatenate %56, %509 in 1 : vector<2x32xf32>, vector<2x32xf32> -> vector<2x64xf32>
    %515 = tpu.concatenate %117, %448 in 1 : vector<2x32xf32>, vector<2x32xf32> -> vector<2x64xf32>
    %516 = tpu.concatenate %178, %387 in 1 : vector<2x32xf32>, vector<2x32xf32> -> vector<2x64xf32>
    %517 = tpu.concatenate %239, %326 in 1 : vector<2x32xf32>, vector<2x32xf32> -> vector<2x64xf32>
    %518 = tpu.concatenate %300, %265 in 1 : vector<2x32xf32>, vector<2x32xf32> -> vector<2x64xf32>
    %519 = tpu.concatenate %361, %204 in 1 : vector<2x32xf32>, vector<2x32xf32> -> vector<2x64xf32>
    %520 = tpu.concatenate %422, %143 in 1 : vector<2x32xf32>, vector<2x32xf32> -> vector<2x64xf32>
    %521 = tpu.concatenate %483, %82 in 1 : vector<2x32xf32>, vector<2x32xf32> -> vector<2x64xf32>
    %522 = tpu.concatenate %514, %515, %516, %517, %518, %519, %520, %521 in 0 : vector<2x64xf32>, vector<2x64xf32>, vector<2x64xf32>, vector<2x64xf32>, vector<2x64xf32>, vector<2x64xf32>, vector<2x64xf32>, vector<2x64xf32> -> vector<16x64xf32>
    %c0_72 = arith.constant 0 : index
    %c0_73 = arith.constant 0 : index
    %523 = vector.load %arg7[%c0_72, %c0_73] : memref<64x256xf32, #tpu.memory_space<vmem>>, vector<64x256xf32>
    %c0_74 = arith.constant 0 : index
    %c0_75 = arith.constant 0 : index
    %524 = vector.load %arg8[%c0_74, %c0_75] : memref<64x256xf32, #tpu.memory_space<vmem>>, vector<64x256xf32>
    %c0_76 = arith.constant 0 : index
    %c0_77 = arith.constant 0 : index
    %525 = vector.load %arg9[%c0_76, %c0_77] : memref<1x256xf32, #tpu.memory_space<vmem>>, vector<1x256xf32>
    %cst_78 = arith.constant dense<0.000000e+00> : vector<16x256xf32>
    %526 = tpu.matmul %522, %523, %cst_78 {dimension_numbers = #tpu.dot_dimension_numbers<[1], [0], [0], [1], [0, 0, 1, 1], [], []>} : vector<16x64xf32>, vector<64x256xf32>, vector<16x256xf32> -> vector<16x256xf32>
    %527 = vector.broadcast %525 : vector<1x256xf32> to vector<16x256xf32>
    %528 = arith.addf %526, %527 : vector<16x256xf32>
    %529 = vector.extract_strided_slice %528 {offsets = [0, 0], sizes = [2, 256], strides = [1, 1]} : vector<16x256xf32> to vector<2x256xf32>
    %530 = vector.extract_strided_slice %528 {offsets = [2, 0], sizes = [2, 256], strides = [1, 1]} : vector<16x256xf32> to vector<2x256xf32>
    %531 = vector.extract_strided_slice %528 {offsets = [4, 0], sizes = [2, 256], strides = [1, 1]} : vector<16x256xf32> to vector<2x256xf32>
    %532 = vector.extract_strided_slice %528 {offsets = [6, 0], sizes = [2, 256], strides = [1, 1]} : vector<16x256xf32> to vector<2x256xf32>
    %533 = vector.extract_strided_slice %528 {offsets = [8, 0], sizes = [2, 256], strides = [1, 1]} : vector<16x256xf32> to vector<2x256xf32>
    %534 = vector.extract_strided_slice %528 {offsets = [10, 0], sizes = [2, 256], strides = [1, 1]} : vector<16x256xf32> to vector<2x256xf32>
    %535 = vector.extract_strided_slice %528 {offsets = [12, 0], sizes = [2, 256], strides = [1, 1]} : vector<16x256xf32> to vector<2x256xf32>
    %536 = vector.extract_strided_slice %528 {offsets = [14, 0], sizes = [2, 256], strides = [1, 1]} : vector<16x256xf32> to vector<2x256xf32>
    %cst_79 = arith.constant dense<0.000000e+00> : vector<2x256xf32>
    %537 = tpu.matmul %6, %524, %cst_79 {dimension_numbers = #tpu.dot_dimension_numbers<[1], [0], [0], [1], [0, 0, 1, 1], [], []>} : vector<2x64xf32>, vector<64x256xf32>, vector<2x256xf32> -> vector<2x256xf32>
    %538 = vector.extract_strided_slice %537 {offsets = [0, 0], sizes = [2, 128], strides = [1, 1]} : vector<2x256xf32> to vector<2x128xf32>
    %539 = vector.extract_strided_slice %529 {offsets = [0, 0], sizes = [2, 128], strides = [1, 1]} : vector<2x256xf32> to vector<2x128xf32>
    %540 = arith.addf %538, %539 : vector<2x128xf32>
    %541 = vector.extract_strided_slice %537 {offsets = [0, 128], sizes = [2, 128], strides = [1, 1]} : vector<2x256xf32> to vector<2x128xf32>
    %542 = vector.extract_strided_slice %536 {offsets = [0, 128], sizes = [2, 128], strides = [1, 1]} : vector<2x256xf32> to vector<2x128xf32>
    %543 = arith.addf %541, %542 : vector<2x128xf32>
    %544 = vector.extract_strided_slice %7 {offsets = [0, 0], sizes = [2, 32], strides = [1, 1]} : vector<2x64xf32> to vector<2x32xf32>
    %545 = vector.extract_strided_slice %540 {offsets = [0, 0], sizes = [2, 32], strides = [1, 1]} : vector<2x128xf32> to vector<2x32xf32>
    %546 = arith.negf %545 : vector<2x32xf32>
    %547 = math.exp %546 : vector<2x32xf32>
    %cst_80 = arith.constant 1.000000e+00 : f32
    %548 = vector.broadcast %cst_80 : f32 to vector<2x32xf32>
    %549 = arith.addf %548, %547 : vector<2x32xf32>
    %550 = arith.divf %548, %549 : vector<2x32xf32>
    %551 = vector.extract_strided_slice %540 {offsets = [0, 32], sizes = [2, 32], strides = [1, 1]} : vector<2x128xf32> to vector<2x32xf32>
    %552 = arith.negf %551 : vector<2x32xf32>
    %553 = math.exp %552 : vector<2x32xf32>
    %cst_81 = arith.constant 1.000000e+00 : f32
    %554 = vector.broadcast %cst_81 : f32 to vector<2x32xf32>
    %555 = arith.addf %554, %553 : vector<2x32xf32>
    %556 = arith.divf %554, %555 : vector<2x32xf32>
    %557 = vector.extract_strided_slice %540 {offsets = [0, 64], sizes = [2, 32], strides = [1, 1]} : vector<2x128xf32> to vector<2x32xf32>
    %558 = math.tanh %557 : vector<2x32xf32>
    %559 = vector.extract_strided_slice %540 {offsets = [0, 96], sizes = [2, 32], strides = [1, 1]} : vector<2x128xf32> to vector<2x32xf32>
    %560 = arith.negf %559 : vector<2x32xf32>
    %561 = math.exp %560 : vector<2x32xf32>
    %cst_82 = arith.constant 1.000000e+00 : f32
    %562 = vector.broadcast %cst_82 : f32 to vector<2x32xf32>
    %563 = arith.addf %562, %561 : vector<2x32xf32>
    %564 = arith.divf %562, %563 : vector<2x32xf32>
    %565 = arith.mulf %556, %544 : vector<2x32xf32>
    %566 = arith.mulf %550, %558 : vector<2x32xf32>
    %567 = arith.addf %565, %566 : vector<2x32xf32>
    %568 = math.tanh %567 : vector<2x32xf32>
    %569 = arith.mulf %564, %568 : vector<2x32xf32>
    %570 = vector.extract_strided_slice %7 {offsets = [0, 32], sizes = [2, 32], strides = [1, 1]} : vector<2x64xf32> to vector<2x32xf32>
    %571 = vector.extract_strided_slice %543 {offsets = [0, 0], sizes = [2, 32], strides = [1, 1]} : vector<2x128xf32> to vector<2x32xf32>
    %572 = arith.negf %571 : vector<2x32xf32>
    %573 = math.exp %572 : vector<2x32xf32>
    %cst_83 = arith.constant 1.000000e+00 : f32
    %574 = vector.broadcast %cst_83 : f32 to vector<2x32xf32>
    %575 = arith.addf %574, %573 : vector<2x32xf32>
    %576 = arith.divf %574, %575 : vector<2x32xf32>
    %577 = vector.extract_strided_slice %543 {offsets = [0, 32], sizes = [2, 32], strides = [1, 1]} : vector<2x128xf32> to vector<2x32xf32>
    %578 = arith.negf %577 : vector<2x32xf32>
    %579 = math.exp %578 : vector<2x32xf32>
    %cst_84 = arith.constant 1.000000e+00 : f32
    %580 = vector.broadcast %cst_84 : f32 to vector<2x32xf32>
    %581 = arith.addf %580, %579 : vector<2x32xf32>
    %582 = arith.divf %580, %581 : vector<2x32xf32>
    %583 = vector.extract_strided_slice %543 {offsets = [0, 64], sizes = [2, 32], strides = [1, 1]} : vector<2x128xf32> to vector<2x32xf32>
    %584 = math.tanh %583 : vector<2x32xf32>
    %585 = vector.extract_strided_slice %543 {offsets = [0, 96], sizes = [2, 32], strides = [1, 1]} : vector<2x128xf32> to vector<2x32xf32>
    %586 = arith.negf %585 : vector<2x32xf32>
    %587 = math.exp %586 : vector<2x32xf32>
    %cst_85 = arith.constant 1.000000e+00 : f32
    %588 = vector.broadcast %cst_85 : f32 to vector<2x32xf32>
    %589 = arith.addf %588, %587 : vector<2x32xf32>
    %590 = arith.divf %588, %589 : vector<2x32xf32>
    %591 = arith.mulf %582, %570 : vector<2x32xf32>
    %592 = arith.mulf %576, %584 : vector<2x32xf32>
    %593 = arith.addf %591, %592 : vector<2x32xf32>
    %594 = math.tanh %593 : vector<2x32xf32>
    %595 = arith.mulf %590, %594 : vector<2x32xf32>
    %596 = tpu.concatenate %569, %595 in 1 : vector<2x32xf32>, vector<2x32xf32> -> vector<2x64xf32>
    %597 = tpu.concatenate %567, %593 in 1 : vector<2x32xf32>, vector<2x32xf32> -> vector<2x64xf32>
    %cst_86 = arith.constant dense<0.000000e+00> : vector<2x256xf32>
    %598 = tpu.matmul %596, %524, %cst_86 {dimension_numbers = #tpu.dot_dimension_numbers<[1], [0], [0], [1], [0, 0, 1, 1], [], []>} : vector<2x64xf32>, vector<64x256xf32>, vector<2x256xf32> -> vector<2x256xf32>
    %599 = vector.extract_strided_slice %598 {offsets = [0, 0], sizes = [2, 128], strides = [1, 1]} : vector<2x256xf32> to vector<2x128xf32>
    %600 = vector.extract_strided_slice %530 {offsets = [0, 0], sizes = [2, 128], strides = [1, 1]} : vector<2x256xf32> to vector<2x128xf32>
    %601 = arith.addf %599, %600 : vector<2x128xf32>
    %602 = vector.extract_strided_slice %598 {offsets = [0, 128], sizes = [2, 128], strides = [1, 1]} : vector<2x256xf32> to vector<2x128xf32>
    %603 = vector.extract_strided_slice %535 {offsets = [0, 128], sizes = [2, 128], strides = [1, 1]} : vector<2x256xf32> to vector<2x128xf32>
    %604 = arith.addf %602, %603 : vector<2x128xf32>
    %605 = vector.extract_strided_slice %597 {offsets = [0, 0], sizes = [2, 32], strides = [1, 1]} : vector<2x64xf32> to vector<2x32xf32>
    %606 = vector.extract_strided_slice %601 {offsets = [0, 0], sizes = [2, 32], strides = [1, 1]} : vector<2x128xf32> to vector<2x32xf32>
    %607 = arith.negf %606 : vector<2x32xf32>
    %608 = math.exp %607 : vector<2x32xf32>
    %cst_87 = arith.constant 1.000000e+00 : f32
    %609 = vector.broadcast %cst_87 : f32 to vector<2x32xf32>
    %610 = arith.addf %609, %608 : vector<2x32xf32>
    %611 = arith.divf %609, %610 : vector<2x32xf32>
    %612 = vector.extract_strided_slice %601 {offsets = [0, 32], sizes = [2, 32], strides = [1, 1]} : vector<2x128xf32> to vector<2x32xf32>
    %613 = arith.negf %612 : vector<2x32xf32>
    %614 = math.exp %613 : vector<2x32xf32>
    %cst_88 = arith.constant 1.000000e+00 : f32
    %615 = vector.broadcast %cst_88 : f32 to vector<2x32xf32>
    %616 = arith.addf %615, %614 : vector<2x32xf32>
    %617 = arith.divf %615, %616 : vector<2x32xf32>
    %618 = vector.extract_strided_slice %601 {offsets = [0, 64], sizes = [2, 32], strides = [1, 1]} : vector<2x128xf32> to vector<2x32xf32>
    %619 = math.tanh %618 : vector<2x32xf32>
    %620 = vector.extract_strided_slice %601 {offsets = [0, 96], sizes = [2, 32], strides = [1, 1]} : vector<2x128xf32> to vector<2x32xf32>
    %621 = arith.negf %620 : vector<2x32xf32>
    %622 = math.exp %621 : vector<2x32xf32>
    %cst_89 = arith.constant 1.000000e+00 : f32
    %623 = vector.broadcast %cst_89 : f32 to vector<2x32xf32>
    %624 = arith.addf %623, %622 : vector<2x32xf32>
    %625 = arith.divf %623, %624 : vector<2x32xf32>
    %626 = arith.mulf %617, %605 : vector<2x32xf32>
    %627 = arith.mulf %611, %619 : vector<2x32xf32>
    %628 = arith.addf %626, %627 : vector<2x32xf32>
    %629 = math.tanh %628 : vector<2x32xf32>
    %630 = arith.mulf %625, %629 : vector<2x32xf32>
    %631 = vector.extract_strided_slice %597 {offsets = [0, 32], sizes = [2, 32], strides = [1, 1]} : vector<2x64xf32> to vector<2x32xf32>
    %632 = vector.extract_strided_slice %604 {offsets = [0, 0], sizes = [2, 32], strides = [1, 1]} : vector<2x128xf32> to vector<2x32xf32>
    %633 = arith.negf %632 : vector<2x32xf32>
    %634 = math.exp %633 : vector<2x32xf32>
    %cst_90 = arith.constant 1.000000e+00 : f32
    %635 = vector.broadcast %cst_90 : f32 to vector<2x32xf32>
    %636 = arith.addf %635, %634 : vector<2x32xf32>
    %637 = arith.divf %635, %636 : vector<2x32xf32>
    %638 = vector.extract_strided_slice %604 {offsets = [0, 32], sizes = [2, 32], strides = [1, 1]} : vector<2x128xf32> to vector<2x32xf32>
    %639 = arith.negf %638 : vector<2x32xf32>
    %640 = math.exp %639 : vector<2x32xf32>
    %cst_91 = arith.constant 1.000000e+00 : f32
    %641 = vector.broadcast %cst_91 : f32 to vector<2x32xf32>
    %642 = arith.addf %641, %640 : vector<2x32xf32>
    %643 = arith.divf %641, %642 : vector<2x32xf32>
    %644 = vector.extract_strided_slice %604 {offsets = [0, 64], sizes = [2, 32], strides = [1, 1]} : vector<2x128xf32> to vector<2x32xf32>
    %645 = math.tanh %644 : vector<2x32xf32>
    %646 = vector.extract_strided_slice %604 {offsets = [0, 96], sizes = [2, 32], strides = [1, 1]} : vector<2x128xf32> to vector<2x32xf32>
    %647 = arith.negf %646 : vector<2x32xf32>
    %648 = math.exp %647 : vector<2x32xf32>
    %cst_92 = arith.constant 1.000000e+00 : f32
    %649 = vector.broadcast %cst_92 : f32 to vector<2x32xf32>
    %650 = arith.addf %649, %648 : vector<2x32xf32>
    %651 = arith.divf %649, %650 : vector<2x32xf32>
    %652 = arith.mulf %643, %631 : vector<2x32xf32>
    %653 = arith.mulf %637, %645 : vector<2x32xf32>
    %654 = arith.addf %652, %653 : vector<2x32xf32>
    %655 = math.tanh %654 : vector<2x32xf32>
    %656 = arith.mulf %651, %655 : vector<2x32xf32>
    %657 = tpu.concatenate %630, %656 in 1 : vector<2x32xf32>, vector<2x32xf32> -> vector<2x64xf32>
    %658 = tpu.concatenate %628, %654 in 1 : vector<2x32xf32>, vector<2x32xf32> -> vector<2x64xf32>
    %cst_93 = arith.constant dense<0.000000e+00> : vector<2x256xf32>
    %659 = tpu.matmul %657, %524, %cst_93 {dimension_numbers = #tpu.dot_dimension_numbers<[1], [0], [0], [1], [0, 0, 1, 1], [], []>} : vector<2x64xf32>, vector<64x256xf32>, vector<2x256xf32> -> vector<2x256xf32>
    %660 = vector.extract_strided_slice %659 {offsets = [0, 0], sizes = [2, 128], strides = [1, 1]} : vector<2x256xf32> to vector<2x128xf32>
    %661 = vector.extract_strided_slice %531 {offsets = [0, 0], sizes = [2, 128], strides = [1, 1]} : vector<2x256xf32> to vector<2x128xf32>
    %662 = arith.addf %660, %661 : vector<2x128xf32>
    %663 = vector.extract_strided_slice %659 {offsets = [0, 128], sizes = [2, 128], strides = [1, 1]} : vector<2x256xf32> to vector<2x128xf32>
    %664 = vector.extract_strided_slice %534 {offsets = [0, 128], sizes = [2, 128], strides = [1, 1]} : vector<2x256xf32> to vector<2x128xf32>
    %665 = arith.addf %663, %664 : vector<2x128xf32>
    %666 = vector.extract_strided_slice %658 {offsets = [0, 0], sizes = [2, 32], strides = [1, 1]} : vector<2x64xf32> to vector<2x32xf32>
    %667 = vector.extract_strided_slice %662 {offsets = [0, 0], sizes = [2, 32], strides = [1, 1]} : vector<2x128xf32> to vector<2x32xf32>
    %668 = arith.negf %667 : vector<2x32xf32>
    %669 = math.exp %668 : vector<2x32xf32>
    %cst_94 = arith.constant 1.000000e+00 : f32
    %670 = vector.broadcast %cst_94 : f32 to vector<2x32xf32>
    %671 = arith.addf %670, %669 : vector<2x32xf32>
    %672 = arith.divf %670, %671 : vector<2x32xf32>
    %673 = vector.extract_strided_slice %662 {offsets = [0, 32], sizes = [2, 32], strides = [1, 1]} : vector<2x128xf32> to vector<2x32xf32>
    %674 = arith.negf %673 : vector<2x32xf32>
    %675 = math.exp %674 : vector<2x32xf32>
    %cst_95 = arith.constant 1.000000e+00 : f32
    %676 = vector.broadcast %cst_95 : f32 to vector<2x32xf32>
    %677 = arith.addf %676, %675 : vector<2x32xf32>
    %678 = arith.divf %676, %677 : vector<2x32xf32>
    %679 = vector.extract_strided_slice %662 {offsets = [0, 64], sizes = [2, 32], strides = [1, 1]} : vector<2x128xf32> to vector<2x32xf32>
    %680 = math.tanh %679 : vector<2x32xf32>
    %681 = vector.extract_strided_slice %662 {offsets = [0, 96], sizes = [2, 32], strides = [1, 1]} : vector<2x128xf32> to vector<2x32xf32>
    %682 = arith.negf %681 : vector<2x32xf32>
    %683 = math.exp %682 : vector<2x32xf32>
    %cst_96 = arith.constant 1.000000e+00 : f32
    %684 = vector.broadcast %cst_96 : f32 to vector<2x32xf32>
    %685 = arith.addf %684, %683 : vector<2x32xf32>
    %686 = arith.divf %684, %685 : vector<2x32xf32>
    %687 = arith.mulf %678, %666 : vector<2x32xf32>
    %688 = arith.mulf %672, %680 : vector<2x32xf32>
    %689 = arith.addf %687, %688 : vector<2x32xf32>
    %690 = math.tanh %689 : vector<2x32xf32>
    %691 = arith.mulf %686, %690 : vector<2x32xf32>
    %692 = vector.extract_strided_slice %658 {offsets = [0, 32], sizes = [2, 32], strides = [1, 1]} : vector<2x64xf32> to vector<2x32xf32>
    %693 = vector.extract_strided_slice %665 {offsets = [0, 0], sizes = [2, 32], strides = [1, 1]} : vector<2x128xf32> to vector<2x32xf32>
    %694 = arith.negf %693 : vector<2x32xf32>
    %695 = math.exp %694 : vector<2x32xf32>
    %cst_97 = arith.constant 1.000000e+00 : f32
    %696 = vector.broadcast %cst_97 : f32 to vector<2x32xf32>
    %697 = arith.addf %696, %695 : vector<2x32xf32>
    %698 = arith.divf %696, %697 : vector<2x32xf32>
    %699 = vector.extract_strided_slice %665 {offsets = [0, 32], sizes = [2, 32], strides = [1, 1]} : vector<2x128xf32> to vector<2x32xf32>
    %700 = arith.negf %699 : vector<2x32xf32>
    %701 = math.exp %700 : vector<2x32xf32>
    %cst_98 = arith.constant 1.000000e+00 : f32
    %702 = vector.broadcast %cst_98 : f32 to vector<2x32xf32>
    %703 = arith.addf %702, %701 : vector<2x32xf32>
    %704 = arith.divf %702, %703 : vector<2x32xf32>
    %705 = vector.extract_strided_slice %665 {offsets = [0, 64], sizes = [2, 32], strides = [1, 1]} : vector<2x128xf32> to vector<2x32xf32>
    %706 = math.tanh %705 : vector<2x32xf32>
    %707 = vector.extract_strided_slice %665 {offsets = [0, 96], sizes = [2, 32], strides = [1, 1]} : vector<2x128xf32> to vector<2x32xf32>
    %708 = arith.negf %707 : vector<2x32xf32>
    %709 = math.exp %708 : vector<2x32xf32>
    %cst_99 = arith.constant 1.000000e+00 : f32
    %710 = vector.broadcast %cst_99 : f32 to vector<2x32xf32>
    %711 = arith.addf %710, %709 : vector<2x32xf32>
    %712 = arith.divf %710, %711 : vector<2x32xf32>
    %713 = arith.mulf %704, %692 : vector<2x32xf32>
    %714 = arith.mulf %698, %706 : vector<2x32xf32>
    %715 = arith.addf %713, %714 : vector<2x32xf32>
    %716 = math.tanh %715 : vector<2x32xf32>
    %717 = arith.mulf %712, %716 : vector<2x32xf32>
    %718 = tpu.concatenate %691, %717 in 1 : vector<2x32xf32>, vector<2x32xf32> -> vector<2x64xf32>
    %719 = tpu.concatenate %689, %715 in 1 : vector<2x32xf32>, vector<2x32xf32> -> vector<2x64xf32>
    %cst_100 = arith.constant dense<0.000000e+00> : vector<2x256xf32>
    %720 = tpu.matmul %718, %524, %cst_100 {dimension_numbers = #tpu.dot_dimension_numbers<[1], [0], [0], [1], [0, 0, 1, 1], [], []>} : vector<2x64xf32>, vector<64x256xf32>, vector<2x256xf32> -> vector<2x256xf32>
    %721 = vector.extract_strided_slice %720 {offsets = [0, 0], sizes = [2, 128], strides = [1, 1]} : vector<2x256xf32> to vector<2x128xf32>
    %722 = vector.extract_strided_slice %532 {offsets = [0, 0], sizes = [2, 128], strides = [1, 1]} : vector<2x256xf32> to vector<2x128xf32>
    %723 = arith.addf %721, %722 : vector<2x128xf32>
    %724 = vector.extract_strided_slice %720 {offsets = [0, 128], sizes = [2, 128], strides = [1, 1]} : vector<2x256xf32> to vector<2x128xf32>
    %725 = vector.extract_strided_slice %533 {offsets = [0, 128], sizes = [2, 128], strides = [1, 1]} : vector<2x256xf32> to vector<2x128xf32>
    %726 = arith.addf %724, %725 : vector<2x128xf32>
    %727 = vector.extract_strided_slice %719 {offsets = [0, 0], sizes = [2, 32], strides = [1, 1]} : vector<2x64xf32> to vector<2x32xf32>
    %728 = vector.extract_strided_slice %723 {offsets = [0, 0], sizes = [2, 32], strides = [1, 1]} : vector<2x128xf32> to vector<2x32xf32>
    %729 = arith.negf %728 : vector<2x32xf32>
    %730 = math.exp %729 : vector<2x32xf32>
    %cst_101 = arith.constant 1.000000e+00 : f32
    %731 = vector.broadcast %cst_101 : f32 to vector<2x32xf32>
    %732 = arith.addf %731, %730 : vector<2x32xf32>
    %733 = arith.divf %731, %732 : vector<2x32xf32>
    %734 = vector.extract_strided_slice %723 {offsets = [0, 32], sizes = [2, 32], strides = [1, 1]} : vector<2x128xf32> to vector<2x32xf32>
    %735 = arith.negf %734 : vector<2x32xf32>
    %736 = math.exp %735 : vector<2x32xf32>
    %cst_102 = arith.constant 1.000000e+00 : f32
    %737 = vector.broadcast %cst_102 : f32 to vector<2x32xf32>
    %738 = arith.addf %737, %736 : vector<2x32xf32>
    %739 = arith.divf %737, %738 : vector<2x32xf32>
    %740 = vector.extract_strided_slice %723 {offsets = [0, 64], sizes = [2, 32], strides = [1, 1]} : vector<2x128xf32> to vector<2x32xf32>
    %741 = math.tanh %740 : vector<2x32xf32>
    %742 = vector.extract_strided_slice %723 {offsets = [0, 96], sizes = [2, 32], strides = [1, 1]} : vector<2x128xf32> to vector<2x32xf32>
    %743 = arith.negf %742 : vector<2x32xf32>
    %744 = math.exp %743 : vector<2x32xf32>
    %cst_103 = arith.constant 1.000000e+00 : f32
    %745 = vector.broadcast %cst_103 : f32 to vector<2x32xf32>
    %746 = arith.addf %745, %744 : vector<2x32xf32>
    %747 = arith.divf %745, %746 : vector<2x32xf32>
    %748 = arith.mulf %739, %727 : vector<2x32xf32>
    %749 = arith.mulf %733, %741 : vector<2x32xf32>
    %750 = arith.addf %748, %749 : vector<2x32xf32>
    %751 = math.tanh %750 : vector<2x32xf32>
    %752 = arith.mulf %747, %751 : vector<2x32xf32>
    %753 = vector.extract_strided_slice %719 {offsets = [0, 32], sizes = [2, 32], strides = [1, 1]} : vector<2x64xf32> to vector<2x32xf32>
    %754 = vector.extract_strided_slice %726 {offsets = [0, 0], sizes = [2, 32], strides = [1, 1]} : vector<2x128xf32> to vector<2x32xf32>
    %755 = arith.negf %754 : vector<2x32xf32>
    %756 = math.exp %755 : vector<2x32xf32>
    %cst_104 = arith.constant 1.000000e+00 : f32
    %757 = vector.broadcast %cst_104 : f32 to vector<2x32xf32>
    %758 = arith.addf %757, %756 : vector<2x32xf32>
    %759 = arith.divf %757, %758 : vector<2x32xf32>
    %760 = vector.extract_strided_slice %726 {offsets = [0, 32], sizes = [2, 32], strides = [1, 1]} : vector<2x128xf32> to vector<2x32xf32>
    %761 = arith.negf %760 : vector<2x32xf32>
    %762 = math.exp %761 : vector<2x32xf32>
    %cst_105 = arith.constant 1.000000e+00 : f32
    %763 = vector.broadcast %cst_105 : f32 to vector<2x32xf32>
    %764 = arith.addf %763, %762 : vector<2x32xf32>
    %765 = arith.divf %763, %764 : vector<2x32xf32>
    %766 = vector.extract_strided_slice %726 {offsets = [0, 64], sizes = [2, 32], strides = [1, 1]} : vector<2x128xf32> to vector<2x32xf32>
    %767 = math.tanh %766 : vector<2x32xf32>
    %768 = vector.extract_strided_slice %726 {offsets = [0, 96], sizes = [2, 32], strides = [1, 1]} : vector<2x128xf32> to vector<2x32xf32>
    %769 = arith.negf %768 : vector<2x32xf32>
    %770 = math.exp %769 : vector<2x32xf32>
    %cst_106 = arith.constant 1.000000e+00 : f32
    %771 = vector.broadcast %cst_106 : f32 to vector<2x32xf32>
    %772 = arith.addf %771, %770 : vector<2x32xf32>
    %773 = arith.divf %771, %772 : vector<2x32xf32>
    %774 = arith.mulf %765, %753 : vector<2x32xf32>
    %775 = arith.mulf %759, %767 : vector<2x32xf32>
    %776 = arith.addf %774, %775 : vector<2x32xf32>
    %777 = math.tanh %776 : vector<2x32xf32>
    %778 = arith.mulf %773, %777 : vector<2x32xf32>
    %779 = tpu.concatenate %752, %778 in 1 : vector<2x32xf32>, vector<2x32xf32> -> vector<2x64xf32>
    %780 = tpu.concatenate %750, %776 in 1 : vector<2x32xf32>, vector<2x32xf32> -> vector<2x64xf32>
    %cst_107 = arith.constant dense<0.000000e+00> : vector<2x256xf32>
    %781 = tpu.matmul %779, %524, %cst_107 {dimension_numbers = #tpu.dot_dimension_numbers<[1], [0], [0], [1], [0, 0, 1, 1], [], []>} : vector<2x64xf32>, vector<64x256xf32>, vector<2x256xf32> -> vector<2x256xf32>
    %782 = vector.extract_strided_slice %781 {offsets = [0, 0], sizes = [2, 128], strides = [1, 1]} : vector<2x256xf32> to vector<2x128xf32>
    %783 = vector.extract_strided_slice %533 {offsets = [0, 0], sizes = [2, 128], strides = [1, 1]} : vector<2x256xf32> to vector<2x128xf32>
    %784 = arith.addf %782, %783 : vector<2x128xf32>
    %785 = vector.extract_strided_slice %781 {offsets = [0, 128], sizes = [2, 128], strides = [1, 1]} : vector<2x256xf32> to vector<2x128xf32>
    %786 = vector.extract_strided_slice %532 {offsets = [0, 128], sizes = [2, 128], strides = [1, 1]} : vector<2x256xf32> to vector<2x128xf32>
    %787 = arith.addf %785, %786 : vector<2x128xf32>
    %788 = vector.extract_strided_slice %780 {offsets = [0, 0], sizes = [2, 32], strides = [1, 1]} : vector<2x64xf32> to vector<2x32xf32>
    %789 = vector.extract_strided_slice %784 {offsets = [0, 0], sizes = [2, 32], strides = [1, 1]} : vector<2x128xf32> to vector<2x32xf32>
    %790 = arith.negf %789 : vector<2x32xf32>
    %791 = math.exp %790 : vector<2x32xf32>
    %cst_108 = arith.constant 1.000000e+00 : f32
    %792 = vector.broadcast %cst_108 : f32 to vector<2x32xf32>
    %793 = arith.addf %792, %791 : vector<2x32xf32>
    %794 = arith.divf %792, %793 : vector<2x32xf32>
    %795 = vector.extract_strided_slice %784 {offsets = [0, 32], sizes = [2, 32], strides = [1, 1]} : vector<2x128xf32> to vector<2x32xf32>
    %796 = arith.negf %795 : vector<2x32xf32>
    %797 = math.exp %796 : vector<2x32xf32>
    %cst_109 = arith.constant 1.000000e+00 : f32
    %798 = vector.broadcast %cst_109 : f32 to vector<2x32xf32>
    %799 = arith.addf %798, %797 : vector<2x32xf32>
    %800 = arith.divf %798, %799 : vector<2x32xf32>
    %801 = vector.extract_strided_slice %784 {offsets = [0, 64], sizes = [2, 32], strides = [1, 1]} : vector<2x128xf32> to vector<2x32xf32>
    %802 = math.tanh %801 : vector<2x32xf32>
    %803 = vector.extract_strided_slice %784 {offsets = [0, 96], sizes = [2, 32], strides = [1, 1]} : vector<2x128xf32> to vector<2x32xf32>
    %804 = arith.negf %803 : vector<2x32xf32>
    %805 = math.exp %804 : vector<2x32xf32>
    %cst_110 = arith.constant 1.000000e+00 : f32
    %806 = vector.broadcast %cst_110 : f32 to vector<2x32xf32>
    %807 = arith.addf %806, %805 : vector<2x32xf32>
    %808 = arith.divf %806, %807 : vector<2x32xf32>
    %809 = arith.mulf %800, %788 : vector<2x32xf32>
    %810 = arith.mulf %794, %802 : vector<2x32xf32>
    %811 = arith.addf %809, %810 : vector<2x32xf32>
    %812 = math.tanh %811 : vector<2x32xf32>
    %813 = arith.mulf %808, %812 : vector<2x32xf32>
    %814 = vector.extract_strided_slice %780 {offsets = [0, 32], sizes = [2, 32], strides = [1, 1]} : vector<2x64xf32> to vector<2x32xf32>
    %815 = vector.extract_strided_slice %787 {offsets = [0, 0], sizes = [2, 32], strides = [1, 1]} : vector<2x128xf32> to vector<2x32xf32>
    %816 = arith.negf %815 : vector<2x32xf32>
    %817 = math.exp %816 : vector<2x32xf32>
    %cst_111 = arith.constant 1.000000e+00 : f32
    %818 = vector.broadcast %cst_111 : f32 to vector<2x32xf32>
    %819 = arith.addf %818, %817 : vector<2x32xf32>
    %820 = arith.divf %818, %819 : vector<2x32xf32>
    %821 = vector.extract_strided_slice %787 {offsets = [0, 32], sizes = [2, 32], strides = [1, 1]} : vector<2x128xf32> to vector<2x32xf32>
    %822 = arith.negf %821 : vector<2x32xf32>
    %823 = math.exp %822 : vector<2x32xf32>
    %cst_112 = arith.constant 1.000000e+00 : f32
    %824 = vector.broadcast %cst_112 : f32 to vector<2x32xf32>
    %825 = arith.addf %824, %823 : vector<2x32xf32>
    %826 = arith.divf %824, %825 : vector<2x32xf32>
    %827 = vector.extract_strided_slice %787 {offsets = [0, 64], sizes = [2, 32], strides = [1, 1]} : vector<2x128xf32> to vector<2x32xf32>
    %828 = math.tanh %827 : vector<2x32xf32>
    %829 = vector.extract_strided_slice %787 {offsets = [0, 96], sizes = [2, 32], strides = [1, 1]} : vector<2x128xf32> to vector<2x32xf32>
    %830 = arith.negf %829 : vector<2x32xf32>
    %831 = math.exp %830 : vector<2x32xf32>
    %cst_113 = arith.constant 1.000000e+00 : f32
    %832 = vector.broadcast %cst_113 : f32 to vector<2x32xf32>
    %833 = arith.addf %832, %831 : vector<2x32xf32>
    %834 = arith.divf %832, %833 : vector<2x32xf32>
    %835 = arith.mulf %826, %814 : vector<2x32xf32>
    %836 = arith.mulf %820, %828 : vector<2x32xf32>
    %837 = arith.addf %835, %836 : vector<2x32xf32>
    %838 = math.tanh %837 : vector<2x32xf32>
    %839 = arith.mulf %834, %838 : vector<2x32xf32>
    %840 = tpu.concatenate %813, %839 in 1 : vector<2x32xf32>, vector<2x32xf32> -> vector<2x64xf32>
    %841 = tpu.concatenate %811, %837 in 1 : vector<2x32xf32>, vector<2x32xf32> -> vector<2x64xf32>
    %cst_114 = arith.constant dense<0.000000e+00> : vector<2x256xf32>
    %842 = tpu.matmul %840, %524, %cst_114 {dimension_numbers = #tpu.dot_dimension_numbers<[1], [0], [0], [1], [0, 0, 1, 1], [], []>} : vector<2x64xf32>, vector<64x256xf32>, vector<2x256xf32> -> vector<2x256xf32>
    %843 = vector.extract_strided_slice %842 {offsets = [0, 0], sizes = [2, 128], strides = [1, 1]} : vector<2x256xf32> to vector<2x128xf32>
    %844 = vector.extract_strided_slice %534 {offsets = [0, 0], sizes = [2, 128], strides = [1, 1]} : vector<2x256xf32> to vector<2x128xf32>
    %845 = arith.addf %843, %844 : vector<2x128xf32>
    %846 = vector.extract_strided_slice %842 {offsets = [0, 128], sizes = [2, 128], strides = [1, 1]} : vector<2x256xf32> to vector<2x128xf32>
    %847 = vector.extract_strided_slice %531 {offsets = [0, 128], sizes = [2, 128], strides = [1, 1]} : vector<2x256xf32> to vector<2x128xf32>
    %848 = arith.addf %846, %847 : vector<2x128xf32>
    %849 = vector.extract_strided_slice %841 {offsets = [0, 0], sizes = [2, 32], strides = [1, 1]} : vector<2x64xf32> to vector<2x32xf32>
    %850 = vector.extract_strided_slice %845 {offsets = [0, 0], sizes = [2, 32], strides = [1, 1]} : vector<2x128xf32> to vector<2x32xf32>
    %851 = arith.negf %850 : vector<2x32xf32>
    %852 = math.exp %851 : vector<2x32xf32>
    %cst_115 = arith.constant 1.000000e+00 : f32
    %853 = vector.broadcast %cst_115 : f32 to vector<2x32xf32>
    %854 = arith.addf %853, %852 : vector<2x32xf32>
    %855 = arith.divf %853, %854 : vector<2x32xf32>
    %856 = vector.extract_strided_slice %845 {offsets = [0, 32], sizes = [2, 32], strides = [1, 1]} : vector<2x128xf32> to vector<2x32xf32>
    %857 = arith.negf %856 : vector<2x32xf32>
    %858 = math.exp %857 : vector<2x32xf32>
    %cst_116 = arith.constant 1.000000e+00 : f32
    %859 = vector.broadcast %cst_116 : f32 to vector<2x32xf32>
    %860 = arith.addf %859, %858 : vector<2x32xf32>
    %861 = arith.divf %859, %860 : vector<2x32xf32>
    %862 = vector.extract_strided_slice %845 {offsets = [0, 64], sizes = [2, 32], strides = [1, 1]} : vector<2x128xf32> to vector<2x32xf32>
    %863 = math.tanh %862 : vector<2x32xf32>
    %864 = vector.extract_strided_slice %845 {offsets = [0, 96], sizes = [2, 32], strides = [1, 1]} : vector<2x128xf32> to vector<2x32xf32>
    %865 = arith.negf %864 : vector<2x32xf32>
    %866 = math.exp %865 : vector<2x32xf32>
    %cst_117 = arith.constant 1.000000e+00 : f32
    %867 = vector.broadcast %cst_117 : f32 to vector<2x32xf32>
    %868 = arith.addf %867, %866 : vector<2x32xf32>
    %869 = arith.divf %867, %868 : vector<2x32xf32>
    %870 = arith.mulf %861, %849 : vector<2x32xf32>
    %871 = arith.mulf %855, %863 : vector<2x32xf32>
    %872 = arith.addf %870, %871 : vector<2x32xf32>
    %873 = math.tanh %872 : vector<2x32xf32>
    %874 = arith.mulf %869, %873 : vector<2x32xf32>
    %875 = vector.extract_strided_slice %841 {offsets = [0, 32], sizes = [2, 32], strides = [1, 1]} : vector<2x64xf32> to vector<2x32xf32>
    %876 = vector.extract_strided_slice %848 {offsets = [0, 0], sizes = [2, 32], strides = [1, 1]} : vector<2x128xf32> to vector<2x32xf32>
    %877 = arith.negf %876 : vector<2x32xf32>
    %878 = math.exp %877 : vector<2x32xf32>
    %cst_118 = arith.constant 1.000000e+00 : f32
    %879 = vector.broadcast %cst_118 : f32 to vector<2x32xf32>
    %880 = arith.addf %879, %878 : vector<2x32xf32>
    %881 = arith.divf %879, %880 : vector<2x32xf32>
    %882 = vector.extract_strided_slice %848 {offsets = [0, 32], sizes = [2, 32], strides = [1, 1]} : vector<2x128xf32> to vector<2x32xf32>
    %883 = arith.negf %882 : vector<2x32xf32>
    %884 = math.exp %883 : vector<2x32xf32>
    %cst_119 = arith.constant 1.000000e+00 : f32
    %885 = vector.broadcast %cst_119 : f32 to vector<2x32xf32>
    %886 = arith.addf %885, %884 : vector<2x32xf32>
    %887 = arith.divf %885, %886 : vector<2x32xf32>
    %888 = vector.extract_strided_slice %848 {offsets = [0, 64], sizes = [2, 32], strides = [1, 1]} : vector<2x128xf32> to vector<2x32xf32>
    %889 = math.tanh %888 : vector<2x32xf32>
    %890 = vector.extract_strided_slice %848 {offsets = [0, 96], sizes = [2, 32], strides = [1, 1]} : vector<2x128xf32> to vector<2x32xf32>
    %891 = arith.negf %890 : vector<2x32xf32>
    %892 = math.exp %891 : vector<2x32xf32>
    %cst_120 = arith.constant 1.000000e+00 : f32
    %893 = vector.broadcast %cst_120 : f32 to vector<2x32xf32>
    %894 = arith.addf %893, %892 : vector<2x32xf32>
    %895 = arith.divf %893, %894 : vector<2x32xf32>
    %896 = arith.mulf %887, %875 : vector<2x32xf32>
    %897 = arith.mulf %881, %889 : vector<2x32xf32>
    %898 = arith.addf %896, %897 : vector<2x32xf32>
    %899 = math.tanh %898 : vector<2x32xf32>
    %900 = arith.mulf %895, %899 : vector<2x32xf32>
    %901 = tpu.concatenate %874, %900 in 1 : vector<2x32xf32>, vector<2x32xf32> -> vector<2x64xf32>
    %902 = tpu.concatenate %872, %898 in 1 : vector<2x32xf32>, vector<2x32xf32> -> vector<2x64xf32>
    %cst_121 = arith.constant dense<0.000000e+00> : vector<2x256xf32>
    %903 = tpu.matmul %901, %524, %cst_121 {dimension_numbers = #tpu.dot_dimension_numbers<[1], [0], [0], [1], [0, 0, 1, 1], [], []>} : vector<2x64xf32>, vector<64x256xf32>, vector<2x256xf32> -> vector<2x256xf32>
    %904 = vector.extract_strided_slice %903 {offsets = [0, 0], sizes = [2, 128], strides = [1, 1]} : vector<2x256xf32> to vector<2x128xf32>
    %905 = vector.extract_strided_slice %535 {offsets = [0, 0], sizes = [2, 128], strides = [1, 1]} : vector<2x256xf32> to vector<2x128xf32>
    %906 = arith.addf %904, %905 : vector<2x128xf32>
    %907 = vector.extract_strided_slice %903 {offsets = [0, 128], sizes = [2, 128], strides = [1, 1]} : vector<2x256xf32> to vector<2x128xf32>
    %908 = vector.extract_strided_slice %530 {offsets = [0, 128], sizes = [2, 128], strides = [1, 1]} : vector<2x256xf32> to vector<2x128xf32>
    %909 = arith.addf %907, %908 : vector<2x128xf32>
    %910 = vector.extract_strided_slice %902 {offsets = [0, 0], sizes = [2, 32], strides = [1, 1]} : vector<2x64xf32> to vector<2x32xf32>
    %911 = vector.extract_strided_slice %906 {offsets = [0, 0], sizes = [2, 32], strides = [1, 1]} : vector<2x128xf32> to vector<2x32xf32>
    %912 = arith.negf %911 : vector<2x32xf32>
    %913 = math.exp %912 : vector<2x32xf32>
    %cst_122 = arith.constant 1.000000e+00 : f32
    %914 = vector.broadcast %cst_122 : f32 to vector<2x32xf32>
    %915 = arith.addf %914, %913 : vector<2x32xf32>
    %916 = arith.divf %914, %915 : vector<2x32xf32>
    %917 = vector.extract_strided_slice %906 {offsets = [0, 32], sizes = [2, 32], strides = [1, 1]} : vector<2x128xf32> to vector<2x32xf32>
    %918 = arith.negf %917 : vector<2x32xf32>
    %919 = math.exp %918 : vector<2x32xf32>
    %cst_123 = arith.constant 1.000000e+00 : f32
    %920 = vector.broadcast %cst_123 : f32 to vector<2x32xf32>
    %921 = arith.addf %920, %919 : vector<2x32xf32>
    %922 = arith.divf %920, %921 : vector<2x32xf32>
    %923 = vector.extract_strided_slice %906 {offsets = [0, 64], sizes = [2, 32], strides = [1, 1]} : vector<2x128xf32> to vector<2x32xf32>
    %924 = math.tanh %923 : vector<2x32xf32>
    %925 = vector.extract_strided_slice %906 {offsets = [0, 96], sizes = [2, 32], strides = [1, 1]} : vector<2x128xf32> to vector<2x32xf32>
    %926 = arith.negf %925 : vector<2x32xf32>
    %927 = math.exp %926 : vector<2x32xf32>
    %cst_124 = arith.constant 1.000000e+00 : f32
    %928 = vector.broadcast %cst_124 : f32 to vector<2x32xf32>
    %929 = arith.addf %928, %927 : vector<2x32xf32>
    %930 = arith.divf %928, %929 : vector<2x32xf32>
    %931 = arith.mulf %922, %910 : vector<2x32xf32>
    %932 = arith.mulf %916, %924 : vector<2x32xf32>
    %933 = arith.addf %931, %932 : vector<2x32xf32>
    %934 = math.tanh %933 : vector<2x32xf32>
    %935 = arith.mulf %930, %934 : vector<2x32xf32>
    %936 = vector.extract_strided_slice %902 {offsets = [0, 32], sizes = [2, 32], strides = [1, 1]} : vector<2x64xf32> to vector<2x32xf32>
    %937 = vector.extract_strided_slice %909 {offsets = [0, 0], sizes = [2, 32], strides = [1, 1]} : vector<2x128xf32> to vector<2x32xf32>
    %938 = arith.negf %937 : vector<2x32xf32>
    %939 = math.exp %938 : vector<2x32xf32>
    %cst_125 = arith.constant 1.000000e+00 : f32
    %940 = vector.broadcast %cst_125 : f32 to vector<2x32xf32>
    %941 = arith.addf %940, %939 : vector<2x32xf32>
    %942 = arith.divf %940, %941 : vector<2x32xf32>
    %943 = vector.extract_strided_slice %909 {offsets = [0, 32], sizes = [2, 32], strides = [1, 1]} : vector<2x128xf32> to vector<2x32xf32>
    %944 = arith.negf %943 : vector<2x32xf32>
    %945 = math.exp %944 : vector<2x32xf32>
    %cst_126 = arith.constant 1.000000e+00 : f32
    %946 = vector.broadcast %cst_126 : f32 to vector<2x32xf32>
    %947 = arith.addf %946, %945 : vector<2x32xf32>
    %948 = arith.divf %946, %947 : vector<2x32xf32>
    %949 = vector.extract_strided_slice %909 {offsets = [0, 64], sizes = [2, 32], strides = [1, 1]} : vector<2x128xf32> to vector<2x32xf32>
    %950 = math.tanh %949 : vector<2x32xf32>
    %951 = vector.extract_strided_slice %909 {offsets = [0, 96], sizes = [2, 32], strides = [1, 1]} : vector<2x128xf32> to vector<2x32xf32>
    %952 = arith.negf %951 : vector<2x32xf32>
    %953 = math.exp %952 : vector<2x32xf32>
    %cst_127 = arith.constant 1.000000e+00 : f32
    %954 = vector.broadcast %cst_127 : f32 to vector<2x32xf32>
    %955 = arith.addf %954, %953 : vector<2x32xf32>
    %956 = arith.divf %954, %955 : vector<2x32xf32>
    %957 = arith.mulf %948, %936 : vector<2x32xf32>
    %958 = arith.mulf %942, %950 : vector<2x32xf32>
    %959 = arith.addf %957, %958 : vector<2x32xf32>
    %960 = math.tanh %959 : vector<2x32xf32>
    %961 = arith.mulf %956, %960 : vector<2x32xf32>
    %962 = tpu.concatenate %935, %961 in 1 : vector<2x32xf32>, vector<2x32xf32> -> vector<2x64xf32>
    %963 = tpu.concatenate %933, %959 in 1 : vector<2x32xf32>, vector<2x32xf32> -> vector<2x64xf32>
    %cst_128 = arith.constant dense<0.000000e+00> : vector<2x256xf32>
    %964 = tpu.matmul %962, %524, %cst_128 {dimension_numbers = #tpu.dot_dimension_numbers<[1], [0], [0], [1], [0, 0, 1, 1], [], []>} : vector<2x64xf32>, vector<64x256xf32>, vector<2x256xf32> -> vector<2x256xf32>
    %965 = vector.extract_strided_slice %964 {offsets = [0, 0], sizes = [2, 128], strides = [1, 1]} : vector<2x256xf32> to vector<2x128xf32>
    %966 = vector.extract_strided_slice %536 {offsets = [0, 0], sizes = [2, 128], strides = [1, 1]} : vector<2x256xf32> to vector<2x128xf32>
    %967 = arith.addf %965, %966 : vector<2x128xf32>
    %968 = vector.extract_strided_slice %964 {offsets = [0, 128], sizes = [2, 128], strides = [1, 1]} : vector<2x256xf32> to vector<2x128xf32>
    %969 = vector.extract_strided_slice %529 {offsets = [0, 128], sizes = [2, 128], strides = [1, 1]} : vector<2x256xf32> to vector<2x128xf32>
    %970 = arith.addf %968, %969 : vector<2x128xf32>
    %971 = vector.extract_strided_slice %963 {offsets = [0, 0], sizes = [2, 32], strides = [1, 1]} : vector<2x64xf32> to vector<2x32xf32>
    %972 = vector.extract_strided_slice %967 {offsets = [0, 0], sizes = [2, 32], strides = [1, 1]} : vector<2x128xf32> to vector<2x32xf32>
    %973 = arith.negf %972 : vector<2x32xf32>
    %974 = math.exp %973 : vector<2x32xf32>
    %cst_129 = arith.constant 1.000000e+00 : f32
    %975 = vector.broadcast %cst_129 : f32 to vector<2x32xf32>
    %976 = arith.addf %975, %974 : vector<2x32xf32>
    %977 = arith.divf %975, %976 : vector<2x32xf32>
    %978 = vector.extract_strided_slice %967 {offsets = [0, 32], sizes = [2, 32], strides = [1, 1]} : vector<2x128xf32> to vector<2x32xf32>
    %979 = arith.negf %978 : vector<2x32xf32>
    %980 = math.exp %979 : vector<2x32xf32>
    %cst_130 = arith.constant 1.000000e+00 : f32
    %981 = vector.broadcast %cst_130 : f32 to vector<2x32xf32>
    %982 = arith.addf %981, %980 : vector<2x32xf32>
    %983 = arith.divf %981, %982 : vector<2x32xf32>
    %984 = vector.extract_strided_slice %967 {offsets = [0, 64], sizes = [2, 32], strides = [1, 1]} : vector<2x128xf32> to vector<2x32xf32>
    %985 = math.tanh %984 : vector<2x32xf32>
    %986 = vector.extract_strided_slice %967 {offsets = [0, 96], sizes = [2, 32], strides = [1, 1]} : vector<2x128xf32> to vector<2x32xf32>
    %987 = arith.negf %986 : vector<2x32xf32>
    %988 = math.exp %987 : vector<2x32xf32>
    %cst_131 = arith.constant 1.000000e+00 : f32
    %989 = vector.broadcast %cst_131 : f32 to vector<2x32xf32>
    %990 = arith.addf %989, %988 : vector<2x32xf32>
    %991 = arith.divf %989, %990 : vector<2x32xf32>
    %992 = arith.mulf %983, %971 : vector<2x32xf32>
    %993 = arith.mulf %977, %985 : vector<2x32xf32>
    %994 = arith.addf %992, %993 : vector<2x32xf32>
    %995 = math.tanh %994 : vector<2x32xf32>
    %996 = arith.mulf %991, %995 : vector<2x32xf32>
    %997 = vector.extract_strided_slice %963 {offsets = [0, 32], sizes = [2, 32], strides = [1, 1]} : vector<2x64xf32> to vector<2x32xf32>
    %998 = vector.extract_strided_slice %970 {offsets = [0, 0], sizes = [2, 32], strides = [1, 1]} : vector<2x128xf32> to vector<2x32xf32>
    %999 = arith.negf %998 : vector<2x32xf32>
    %1000 = math.exp %999 : vector<2x32xf32>
    %cst_132 = arith.constant 1.000000e+00 : f32
    %1001 = vector.broadcast %cst_132 : f32 to vector<2x32xf32>
    %1002 = arith.addf %1001, %1000 : vector<2x32xf32>
    %1003 = arith.divf %1001, %1002 : vector<2x32xf32>
    %1004 = vector.extract_strided_slice %970 {offsets = [0, 32], sizes = [2, 32], strides = [1, 1]} : vector<2x128xf32> to vector<2x32xf32>
    %1005 = arith.negf %1004 : vector<2x32xf32>
    %1006 = math.exp %1005 : vector<2x32xf32>
    %cst_133 = arith.constant 1.000000e+00 : f32
    %1007 = vector.broadcast %cst_133 : f32 to vector<2x32xf32>
    %1008 = arith.addf %1007, %1006 : vector<2x32xf32>
    %1009 = arith.divf %1007, %1008 : vector<2x32xf32>
    %1010 = vector.extract_strided_slice %970 {offsets = [0, 64], sizes = [2, 32], strides = [1, 1]} : vector<2x128xf32> to vector<2x32xf32>
    %1011 = math.tanh %1010 : vector<2x32xf32>
    %1012 = vector.extract_strided_slice %970 {offsets = [0, 96], sizes = [2, 32], strides = [1, 1]} : vector<2x128xf32> to vector<2x32xf32>
    %1013 = arith.negf %1012 : vector<2x32xf32>
    %1014 = math.exp %1013 : vector<2x32xf32>
    %cst_134 = arith.constant 1.000000e+00 : f32
    %1015 = vector.broadcast %cst_134 : f32 to vector<2x32xf32>
    %1016 = arith.addf %1015, %1014 : vector<2x32xf32>
    %1017 = arith.divf %1015, %1016 : vector<2x32xf32>
    %1018 = arith.mulf %1009, %997 : vector<2x32xf32>
    %1019 = arith.mulf %1003, %1011 : vector<2x32xf32>
    %1020 = arith.addf %1018, %1019 : vector<2x32xf32>
    %1021 = math.tanh %1020 : vector<2x32xf32>
    %1022 = arith.mulf %1017, %1021 : vector<2x32xf32>
    %1023 = tpu.concatenate %996, %1022 in 1 : vector<2x32xf32>, vector<2x32xf32> -> vector<2x64xf32>
    %1024 = vector.extract_strided_slice %1023 {offsets = [0, 0], sizes = [2, 32], strides = [1, 1]} : vector<2x64xf32> to vector<2x32xf32>
    %1025 = vector.extract_strided_slice %1023 {offsets = [0, 32], sizes = [2, 32], strides = [1, 1]} : vector<2x64xf32> to vector<2x32xf32>
    %1026 = arith.maximumf %1024, %1025 : vector<2x32xf32>
    %1027 = arith.maximumf %513, %1026 : vector<2x32xf32>
    %c0_135 = arith.constant 0 : index
    %c0_136 = arith.constant 0 : index
    %1028 = vector.load %arg10[%c0_135, %c0_136] : memref<32x16xf32, #tpu.memory_space<vmem>>, vector<32x16xf32>
    %cst_137 = arith.constant dense<0.000000e+00> : vector<2x16xf32>
    %1029 = tpu.matmul %1027, %1028, %cst_137 {dimension_numbers = #tpu.dot_dimension_numbers<[1], [0], [0], [1], [0, 0, 1, 1], [], []>} : vector<2x32xf32>, vector<32x16xf32>, vector<2x16xf32> -> vector<2x16xf32>
    %c0_138 = arith.constant 0 : index
    %c0_139 = arith.constant 0 : index
    %1030 = vector.load %arg11[%c0_138, %c0_139] : memref<1x16xf32, #tpu.memory_space<vmem>>, vector<1x16xf32>
    %1031 = vector.broadcast %1030 : vector<1x16xf32> to vector<2x16xf32>
    %1032 = arith.addf %1029, %1031 : vector<2x16xf32>
    %c0_140 = arith.constant 0 : index
    %c0_141 = arith.constant 0 : index
    %1033 = vector.load %arg12[%c0_140, %c0_141] : memref<1x16xf32, #tpu.memory_space<vmem>>, vector<1x16xf32>
    %1034 = vector.broadcast %1033 : vector<1x16xf32> to vector<2x16xf32>
    %1035 = arith.mulf %1032, %1034 : vector<2x16xf32>
    %cst_142 = arith.constant dense<0.000000e+00> : vector<2xf32>
    %1036 = vector.multi_reduction <add>, %1035, %cst_142 [1] : vector<2x16xf32> to vector<2xf32>
    %1037 = vector.shape_cast %1036 : vector<2xf32> to vector<2x1xf32>
    %c0_143 = arith.constant 0 : index
    %c0_144 = arith.constant 0 : index
    %1038 = vector.load %arg13[%c0_143, %c0_144] : memref<1x1xf32, #tpu.memory_space<vmem>>, vector<1x1xf32>
    %1039 = vector.broadcast %1038 : vector<1x1xf32> to vector<2x1xf32>
    %1040 = arith.addf %1037, %1039 : vector<2x1xf32>
    %c0_145 = arith.constant 0 : index
    %c0_146 = arith.constant 0 : index
    %1041 = vector.load %arg14[%c0_145, %c0_146] : memref<2x1xf32, #tpu.memory_space<vmem>>, vector<2x1xf32>
    tpu.vector_store %arg14[%c0_145, %c0_146], %1040 {strides = array<i32>} : memref<2x1xf32, #tpu.memory_space<vmem>>, vector<2x1xf32>,
    return
  }
}

</mosaic_0001>

<llo_original>
// kernel: model_forward.1
$region0: #{model_forward.1}
  #allocation0 [shape = 'u32[]', space=smem, size = 0x4, offset = 0x4, fixed_abs, tag = 'smem constant byte address 0x4 - core index']
  #allocation1 [shape = 'u32[144,128]{1,0:T(1,128)}', space=vmem, size = 0x12000, scoped, tag = 'internal scratch']
  #allocation2 [shape = 'f32[1,1]{1,0:T(1,128)S(1)}', space=vmem, size = 0x200, scoped, tag = 'scoped memory for model_forward.1']
  %s0 = inlined_call_operand.vmem [shape: f32[8,2,8], index: 0, kind: input, shape index: {}]
  %s1 = inlined_call_operand.vmem [shape: f32[2,8], index: 1, kind: input, shape index: {}]
  %s2 = inlined_call_operand.vmem [shape: f32[8,32], index: 2, kind: input, shape index: {}]
  %s3 = inlined_call_operand.vmem [shape: f32[1,32], index: 3, kind: input, shape index: {}]
  %s4 = inlined_call_operand.vmem [shape: f32[8,256], index: 4, kind: input, shape index: {}]
  %s5 = inlined_call_operand.hbm [shape: f32[64,256], index: 5, kind: input, shape index: {}]
  %s6 = inlined_call_operand.vmem [shape: f32[1,256], index: 6, kind: input, shape index: {}]
  %s7 = inlined_call_operand.hbm [shape: f32[64,256], index: 7, kind: input, shape index: {}]
  %s8 = inlined_call_operand.hbm [shape: f32[64,256], index: 8, kind: input, shape index: {}]
  %s9 = inlined_call_operand.vmem [shape: f32[1,256], index: 9, kind: input, shape index: {}]
  %s10 = inlined_call_operand.vmem [shape: f32[32,16], index: 10, kind: input, shape index: {}]
  %s11 = inlined_call_operand.vmem [shape: f32[1,16], index: 11, kind: input, shape index: {}]
  %s12 = inlined_call_operand.vmem [shape: f32[1,16], index: 12, kind: input, shape index: {}]
  %s13 = inlined_call_operand.<no memory space> [shape: f32[1,1], index: 13, kind: input, shape index: {}]
  %s14 = inlined_call_operand.vmem [shape: f32[2,1], index: 14, kind: output, shape index: {}]
  %s15 = sld [smem:[#allocation0]]
  $region78: #{model_forward.1} parent=0
    _
  %s17 = ssub.s32 1, %s15
  %s18 = scalar_select 0, %s17, %s15
  %v19 = vstv %s13
  %20 = vst [vmem:[#allocation2] sm:$0x1] %v19
  $region1: #{model_forward.1} parent=0
    #allocation3 [shape = 'u8[65536]{0}', space=vmem, size = 0x10000, scoped, tag = 'input window, operand 5, single buffered']
    #allocation4 [shape = 's32[1]{0}', space=sflag, size = 0x4, scoped, tag = 'scoped memory for model_forward.1']
    #allocation5 [shape = 'u8[65536]{0}', space=vmem, size = 0x10000, scoped, tag = 'input window, operand 7, single buffered']
    #allocation6 [shape = 's32[1]{0}', space=sflag, size = 0x4, scoped, tag = 'scoped memory for model_forward.1']
    #allocation7 [shape = 'u8[65536]{0}', space=vmem, size = 0x10000, scoped, tag = 'input window, operand 8, single buffered']
    %21 = vsyncpa [#allocation4], 0
    %22 = vsyncpa [#allocation6], 0
    // Predicated region
    $region2: #{model_forward.1} parent=1 // pred_check
      _
    $region3: #{model_forward.1} parent=1 // pred_check_branch
      %24 = sbr.rel (0) target = $region5
    $region4: #{model_forward.1} parent=1 // pred_region
      _
    $region5: #{model_forward.1} parent=1 // pred_fallthru
      _
    // Predicated region
    $region6: #{model_forward.1} parent=1 // pred_check
      _
    $region7: #{model_forward.1} parent=1 // pred_check_branch
      %26 = sbr.rel (0) target = $region9
    $region8: #{model_forward.1} parent=1 // pred_region
      _
    $region9: #{model_forward.1} parent=1 // pred_fallthru
      _
    // Predicated region
    $region10: #{model_forward.1} parent=1 // pred_check
      _
    $region11: #{model_forward.1} parent=1 // pred_check_branch
      %28 = sbr.rel (0) target = $region13
    $region12: #{model_forward.1} parent=1 // pred_region
      _
    $region13: #{model_forward.1} parent=1 // pred_fallthru
      _
    // Predicated region
    $region14: #{model_forward.1} parent=1 // pred_check
      _
    $region15: #{model_forward.1} parent=1 // pred_check_branch
      %30 = sbr.rel (0) target = $region17
    $region16: #{model_forward.1} parent=1 // pred_region
      _
    $region17: #{model_forward.1} parent=1 // pred_fallthru
      _
    // Predicated region
    $region18: #{model_forward.1} parent=1 // pred_check
      _
    $region19: #{model_forward.1} parent=1 // pred_check_branch
      %32 = sbr.rel (0) target = $region21
    $region20: #{model_forward.1} parent=1 // pred_region
      _
    $region21: #{model_forward.1} parent=1 // pred_fallthru
      _
    // Predicated region
    $region22: #{model_forward.1} parent=1 // pred_check
      _
    $region23: #{model_forward.1} parent=1 // pred_check_branch
      %34 = sbr.rel (0) target = $region25
    $region24: #{model_forward.1} parent=1 // pred_region
      %s36 = ssub.s32 2048, 2048
      %37 = vsyncadd [#allocation4], %s36
      %s38 = sshll.u32 [#allocation3], 4
      %s39 = int_to_ptr.vmem [resolvable:$true] %s38
      %44 = dma.hbm_to_vmem [thread:$0]  %s5, 2048, %s39, [#allocation4], 256, 256, 16
    $region25: #{model_forward.1} parent=1 // pred_fallthru
      _
    // Predicated region
    $region26: #{model_forward.1} parent=1 // pred_check
      _
    $region27: #{model_forward.1} parent=1 // pred_check_branch
      %46 = sbr.rel (0) target = $region29
    $region28: #{model_forward.1} parent=1 // pred_region
      _
    $region29: #{model_forward.1} parent=1 // pred_fallthru
      _
    // Predicated region
    $region30: #{model_forward.1} parent=1 // pred_check
      _
    $region31: #{model_forward.1} parent=1 // pred_check_branch
      %48 = sbr.rel (0) target = $region33
    $region32: #{model_forward.1} parent=1 // pred_region
      %s50 = ssub.s32 2048, 2048
      %51 = vsyncadd [#allocation6], %s50
      %s52 = sshll.u32 [#allocation5], 4
      %s53 = int_to_ptr.vmem [resolvable:$true] %s52
      %58 = dma.hbm_to_vmem [thread:$0]  %s7, 2048, %s53, [#allocation6], 256, 256, 16
    $region33: #{model_forward.1} parent=1 // pred_fallthru
      _
    // Predicated region
    $region34: #{model_forward.1} parent=1 // pred_check
      _
    $region35: #{model_forward.1} parent=1 // pred_check_branch
      %60 = sbr.rel (0) target = $region37
    $region36: #{model_forward.1} parent=1 // pred_region
      %s62 = ssub.s32 2048, 2048
      %63 = vsyncadd [#allocation6], %s62
      %s64 = sshll.u32 [#allocation7], 4
      %s65 = int_to_ptr.vmem [resolvable:$true] %s64
      %70 = dma.hbm_to_vmem [thread:$0]  %s8, 2048, %s65, [#allocation6], 256, 256, 16
    $region37: #{model_forward.1} parent=1 // pred_fallthru
      _
    // Predicated region
    $region38: #{model_forward.1} parent=1 // pred_check
      _
    $region39: #{model_forward.1} parent=1 // pred_check_branch
      %72 = sbr.rel (0) target = $region41
    $region40: #{model_forward.1} parent=1 // pred_region
      _
    $region41: #{model_forward.1} parent=1 // pred_fallthru
      _
    // Predicated region
    $region42: #{model_forward.1} parent=1 // pred_check
      _
    $region43: #{model_forward.1} parent=1 // pred_check_branch
      %74 = sbr.rel (0) target = $region45
    $region44: #{model_forward.1} parent=1 // pred_region
      _
    $region45: #{model_forward.1} parent=1 // pred_fallthru
      _
    // Predicated region
    $region46: #{model_forward.1} parent=1 // pred_check
      _
    $region47: #{model_forward.1} parent=1 // pred_check_branch
      %76 = sbr.rel (0) target = $region49
    $region48: #{model_forward.1} parent=1 // pred_region
      _
    $region49: #{model_forward.1} parent=1 // pred_fallthru
      _
    // Predicated region
    $region50: #{model_forward.1} parent=1 // pred_check
      _
    $region51: #{model_forward.1} parent=1 // pred_check_branch
      %78 = sbr.rel (0) target = $region53
    $region52: #{model_forward.1} parent=1 // pred_region
      _
    $region53: #{model_forward.1} parent=1 // pred_fallthru
      _
    // Predicated region
    $region54: #{model_forward.1} parent=1 // pred_check
      _
    $region55: #{model_forward.1} parent=1 // pred_check_branch
      %80 = sbr.rel (0) target = $region57
    $region56: #{model_forward.1} parent=1 // pred_region
      _
    $region57: #{model_forward.1} parent=1 // pred_fallthru
      _
    // Predicated region
    $region58: #{model_forward.1} parent=1 // pred_check
      _
    $region59: #{model_forward.1} parent=1 // pred_check_branch
      %82 = sbr.rel (0) target = $region61
    $region60: #{model_forward.1} parent=1 // pred_region
      %83 = dma.done [#allocation4], 2048
    $region61: #{model_forward.1} parent=1 // pred_fallthru
      _
    // Predicated region
    $region62: #{model_forward.1} parent=1 // pred_check
      _
    $region63: #{model_forward.1} parent=1 // pred_check_branch
      %85 = sbr.rel (0) target = $region65
    $region64: #{model_forward.1} parent=1 // pred_region
      %86 = dma.done [#allocation6], 2048
    $region65: #{model_forward.1} parent=1 // pred_fallthru
      _
    // Predicated region
    $region66: #{model_forward.1} parent=1 // pred_check
      _
    $region67: #{model_forward.1} parent=1 // pred_check_branch
      %88 = sbr.rel (0) target = $region69
    $region68: #{model_forward.1} parent=1 // pred_region
      %89 = dma.done [#allocation6], 2048
    $region69: #{model_forward.1} parent=1 // pred_fallthru
      _
    %v90 = vld [vmem:[%s1] sm:$0x3]
    %v91 = vld [vmem:[%s2] sm:$0xff]
    %v92 = vld [vmem:[%s3] sm:$0x1]
    %v94 = vlaneseq
    %v95 = vshrl.u32 %v94, 7
    %v96 = vsub.s32 0, %v95
    %v97 = vrot.slane %v92, %v96
    %vm99 = vcmask 64512
    %v101 = vsel %vm99, %v90, 0
    %103 = vmatprep.subr.mxu0 0.0
    %104 = vmatpush1.msra.mxu0 0.0
    %105 = vmatprep.subr.mxu0 0.0
    %106 = vmatpush1.msra.mxu0 0.0
    %107 = vmatprep.subr.mxu0 0.0
    %108 = vmatpush1.msra.mxu0 0.0
    %109 = vmatprep.subr.mxu0 0.0
    %110 = vmatpush1.msra.mxu0 0.0
    %111 = vmatprep.subr.mxu0 0.0
    %112 = vmatpush1.msra.mxu0 0.0
    %113 = vmatprep.subr.mxu0 0.0
    %114 = vmatpush1.msra.mxu0 0.0
    %115 = vmatprep.subr.mxu0 0.0
    %116 = vmatpush1.msra.mxu0 0.0
    %117 = vmatprep.subr.mxu0 0.0
    %118 = vmatpush1.msra.mxu0 0.0
    %119 = vmatprep.subr.mxu0 0.0
    %120 = vmatpush1.msra.mxu0 0.0
    %121 = vmatprep.subr.mxu0 0.0
    %122 = vmatpush1.msra.mxu0 0.0
    %123 = vmatprep.subr.mxu0 0.0
    %124 = vmatpush1.msra.mxu0 0.0
    %125 = vmatprep.subr.mxu0 0.0
    %126 = vmatpush1.msra.mxu0 0.0
    %127 = vmatprep.subr.mxu0 0.0
    %128 = vmatpush1.msra.mxu0 0.0
    %129 = vmatprep.subr.mxu0 0.0
    %130 = vmatpush1.msra.mxu0 0.0
    %131 = vmatprep.subr.mxu0 0.0
    %132 = vmatpush1.msra.mxu0 0.0
    %133 = vmatprep.subr.mxu0 0.0
    %134 = vmatpush1.msra.mxu0 %v91
    %135 = vmatprep.subr.mxu0 0.0
    %136 = vmatpush2.msra.mxu0 0.0
    %137 = vmatprep.subr.mxu0 0.0
    %138 = vmatpush2.msra.mxu0 0.0
    %139 = vmatprep.subr.mxu0 0.0
    %140 = vmatpush2.msra.mxu0 0.0
    %141 = vmatprep.subr.mxu0 0.0
    %142 = vmatpush2.msra.mxu0 0.0
    %143 = vmatprep.subr.mxu0 0.0
    %144 = vmatpush2.msra.mxu0 0.0
    %145 = vmatprep.subr.mxu0 0.0
    %146 = vmatpush2.msra.mxu0 0.0
    %147 = vmatprep.subr.mxu0 0.0
    %148 = vmatpush2.msra.mxu0 0.0
    %149 = vmatprep.subr.mxu0 0.0
    %150 = vmatpush2.msra.mxu0 0.0
    %151 = vmatprep.subr.mxu0 0.0
    %152 = vmatpush2.msra.mxu0 0.0
    %153 = vmatprep.subr.mxu0 0.0
    %154 = vmatpush2.msra.mxu0 0.0
    %155 = vmatprep.subr.mxu0 0.0
    %156 = vmatpush2.msra.mxu0 0.0
    %157 = vmatprep.subr.mxu0 0.0
    %158 = vmatpush2.msra.mxu0 0.0
    %159 = vmatprep.subr.mxu0 0.0
    %160 = vmatpush2.msra.mxu0 0.0
    %161 = vmatprep.subr.mxu0 0.0
    %162 = vmatpush2.msra.mxu0 0.0
    %163 = vmatprep.subr.mxu0 0.0
    %164 = vmatpush2.msra.mxu0 0.0
    %165 = vmatprep.subr.mxu0 0.0
    %166 = vmatpush2.msra.mxu0 0.0
    %167 = vmatprep.mubr.f32.mxu0 0.0
    %168 = vmatmul.mubr.f32.gmra.mxu0 %v101
    %v169 = vpop.f32.mrf.mxu0
    %v170 = vadd.f32 %v97, %v169
    %v171 = vpop.f32.mrf.mxu0
    %172 = vdwg.mxu0
    %174 = vrot.lane.b32.xlu0 %v170, 32
    %v175 = vpop.permute.xlu0 %174
    %vm177 = vcmask 261120
    %v178 = vsel %vm177, %v170, %v175
    %v179 = vld [vmem:[%s0] sm:$0x3]
    %v180 = vld [vmem:[%s0 + $0x2] sm:$0x3]
    %v181 = vld [vmem:[%s0 + $0x4] sm:$0x3]
    %v182 = vld [vmem:[%s0 + $0x6] sm:$0x3]
    %v183 = vld [vmem:[%s0 + $0x8] sm:$0x3]
    %v184 = vld [vmem:[%s0 + $0xa] sm:$0x3]
    %v185 = vld [vmem:[%s0 + $0xc] sm:$0x3]
    %v186 = vld [vmem:[%s0 + $0xe] sm:$0x3]
    %v187 = vld [vmem:[%s4] sm:$0xff]
    %v188 = vld [vmem:[%s4 + $0x8] sm:$0xff]
    %v189 = vld [vmem:[#allocation3] sm:$0xff]
    %v190 = vld [vmem:[#allocation3 + $0x8] sm:$0xff]
    %v191 = vld [vmem:[#allocation3 + $0x10] sm:$0xff]
    %v192 = vld [vmem:[#allocation3 + $0x18] sm:$0xff]
    %v193 = vld [vmem:[#allocation3 + $0x20] sm:$0xff]
    %v194 = vld [vmem:[#allocation3 + $0x28] sm:$0xff]
    %v195 = vld [vmem:[#allocation3 + $0x30] sm:$0xff]
    %v196 = vld [vmem:[#allocation3 + $0x38] sm:$0xff]
    %v197 = vld [vmem:[#allocation3 + $0x40] sm:$0xff]
    %v198 = vld [vmem:[#allocation3 + $0x48] sm:$0xff]
    %v199 = vld [vmem:[#allocation3 + $0x50] sm:$0xff]
    %v200 = vld [vmem:[#allocation3 + $0x58] sm:$0xff]
    %v201 = vld [vmem:[#allocation3 + $0x60] sm:$0xff]
    %v202 = vld [vmem:[#allocation3 + $0x68] sm:$0xff]
    %v203 = vld [vmem:[#allocation3 + $0x70] sm:$0xff]
    %v204 = vld [vmem:[#allocation3 + $0x78] sm:$0xff]
    %v205 = vld [vmem:[%s6] sm:$0x3]
    %v207 = vlaneseq
    %v208 = vshrl.u32 %v207, 7
    %v209 = vsub.s32 0, %v208
    %v210 = vrot.slane %v205, %v209
    %v211 = vlaneseq
    %v212 = vshrl.u32 %v211, 7
    %v213 = vsub.s32 1, %v212
    %v214 = vrot.slane %v205, %v213
    %v225 = vcombine.low %v179, %v180
    %v226 = vcombine.low %v181, %v182
    %v228 = vunpack.c.l.s4 1983009808
    %v229 = vunpack.c.0.s8 %v228
    %v230 = vlaneseq
    %v231 = vshrl.u32 %v230, 7
    %v232 = vsub.s32 %v229, %v231
    %v233 = vrot.slane %v225, %v232
    %v235 = vunpack.c.l.s4 1983009808
    %v236 = vunpack.c.0.s8 %v235
    %v237 = vlaneseq
    %v238 = vshrl.u32 %v237, 7
    %v239 = vsub.s32 %v236, %v238
    %v240 = vrot.slane %v226, %v239
    %v241 = vcombine.low %v233, %v240
    %v242 = vcombine.low %v183, %v184
    %v243 = vcombine.low %v185, %v186
    %v245 = vunpack.c.l.s4 1983009808
    %v246 = vunpack.c.0.s8 %v245
    %v247 = vlaneseq
    %v248 = vshrl.u32 %v247, 7
    %v249 = vsub.s32 %v246, %v248
    %v250 = vrot.slane %v242, %v249
    %v252 = vunpack.c.l.s4 1983009808
    %v253 = vunpack.c.0.s8 %v252
    %v254 = vlaneseq
    %v255 = vshrl.u32 %v254, 7
    %v256 = vsub.s32 %v253, %v255
    %v257 = vrot.slane %v243, %v256
    %v258 = vcombine.low %v250, %v257
    %v259 = vsel %vm99, %v241, 0
    %v261 = vsel %vm99, %v258, 0
    %263 = vmatprep.subr.mxu0 0.0
    %264 = vmatpush1.msra.mxu0 0.0
    %265 = vmatprep.subr.mxu0 0.0
    %266 = vmatpush1.msra.mxu0 0.0
    %267 = vmatprep.subr.mxu0 0.0
    %268 = vmatpush1.msra.mxu0 0.0
    %269 = vmatprep.subr.mxu0 0.0
    %270 = vmatpush1.msra.mxu0 0.0
    %271 = vmatprep.subr.mxu0 0.0
    %272 = vmatpush1.msra.mxu0 0.0
    %273 = vmatprep.subr.mxu0 0.0
    %274 = vmatpush1.msra.mxu0 0.0
    %275 = vmatprep.subr.mxu0 0.0
    %276 = vmatpush1.msra.mxu0 0.0
    %277 = vmatprep.subr.mxu0 0.0
    %278 = vmatpush1.msra.mxu0 0.0
    %279 = vmatprep.subr.mxu0 0.0
    %280 = vmatpush1.msra.mxu0 0.0
    %281 = vmatprep.subr.mxu0 0.0
    %282 = vmatpush1.msra.mxu0 0.0
    %283 = vmatprep.subr.mxu0 0.0
    %284 = vmatpush1.msra.mxu0 0.0
    %285 = vmatprep.subr.mxu0 0.0
    %286 = vmatpush1.msra.mxu0 0.0
    %287 = vmatprep.subr.mxu0 0.0
    %288 = vmatpush1.msra.mxu0 0.0
    %289 = vmatprep.subr.mxu0 0.0
    %290 = vmatpush1.msra.mxu0 0.0
    %291 = vmatprep.subr.mxu0 0.0
    %292 = vmatpush1.msra.mxu0 0.0
    %293 = vmatprep.subr.mxu0 %v188
    %294 = vmatpush1.msra.mxu0 %v187
    %295 = vmatprep.subr.mxu0 0.0
    %296 = vmatpush2.msra.mxu0 0.0
    %297 = vmatprep.subr.mxu0 0.0
    %298 = vmatpush2.msra.mxu0 0.0
    %299 = vmatprep.subr.mxu0 0.0
    %300 = vmatpush2.msra.mxu0 0.0
    %301 = vmatprep.subr.mxu0 0.0
    %302 = vmatpush2.msra.mxu0 0.0
    %303 = vmatprep.subr.mxu0 0.0
    %304 = vmatpush2.msra.mxu0 0.0
    %305 = vmatprep.subr.mxu0 0.0
    %306 = vmatpush2.msra.mxu0 0.0
    %307 = vmatprep.subr.mxu0 0.0
    %308 = vmatpush2.msra.mxu0 0.0
    %309 = vmatprep.subr.mxu0 0.0
    %310 = vmatpush2.msra.mxu0 0.0
    %311 = vmatprep.subr.mxu0 0.0
    %312 = vmatpush2.msra.mxu0 0.0
    %313 = vmatprep.subr.mxu0 0.0
    %314 = vmatpush2.msra.mxu0 0.0
    %315 = vmatprep.subr.mxu0 0.0
    %316 = vmatpush2.msra.mxu0 0.0
    %317 = vmatprep.subr.mxu0 0.0
    %318 = vmatpush2.msra.mxu0 0.0
    %319 = vmatprep.subr.mxu0 0.0
    %320 = vmatpush2.msra.mxu0 0.0
    %321 = vmatprep.subr.mxu0 0.0
    %322 = vmatpush2.msra.mxu0 0.0
    %323 = vmatprep.subr.mxu0 0.0
    %324 = vmatpush2.msra.mxu0 0.0
    %325 = vmatprep.subr.mxu0 0.0
    %326 = vmatpush2.msra.mxu0 0.0
    %327 = vmatprep.mubr.f32.mxu0 0.0
    %328 = vmatmul.mubr.f32.gmra.mxu0 %v259
    %v329 = vpop.f32.mrf.mxu0
    %v330 = vadd.f32 %v210, %v329
    %v331 = vpop.f32.mrf.mxu0
    %v332 = vadd.f32 %v214, %v331
    %333 = vmatprep.mubr.f32.mxu0 0.0
    %334 = vmatmul.mubr.f32.gmra.mxu0 %v261
    %v335 = vpop.f32.mrf.mxu0
    %v336 = vadd.f32 %v210, %v335
    %v337 = vpop.f32.mrf.mxu0
    %v338 = vadd.f32 %v214, %v337
    %339 = vdwg.mxu0
    %vm340 = vcmask 523264
    %v342 = vsel %vm340, %v178, 0
    %344 = vmatprep.subr.mxu0 0.0
    %345 = vmatpush1.msra.mxu0 0.0
    %346 = vmatprep.subr.mxu0 0.0
    %347 = vmatpush1.msra.mxu0 0.0
    %348 = vmatprep.subr.mxu0 0.0
    %349 = vmatpush1.msra.mxu0 0.0
    %350 = vmatprep.subr.mxu0 0.0
    %351 = vmatpush1.msra.mxu0 0.0
    %352 = vmatprep.subr.mxu0 0.0
    %353 = vmatpush1.msra.mxu0 0.0
    %354 = vmatprep.subr.mxu0 0.0
    %355 = vmatpush1.msra.mxu0 0.0
    %356 = vmatprep.subr.mxu0 0.0
    %357 = vmatpush1.msra.mxu0 0.0
    %358 = vmatprep.subr.mxu0 0.0
    %359 = vmatpush1.msra.mxu0 0.0
    %360 = vmatprep.subr.mxu0 %v204
    %361 = vmatpush1.msra.mxu0 %v203
    %362 = vmatprep.subr.mxu0 %v202
    %363 = vmatpush1.msra.mxu0 %v201
    %364 = vmatprep.subr.mxu0 %v200
    %365 = vmatpush1.msra.mxu0 %v199
    %366 = vmatprep.subr.mxu0 %v198
    %367 = vmatpush1.msra.mxu0 %v197
    %368 = vmatprep.subr.mxu0 %v196
    %369 = vmatpush1.msra.mxu0 %v195
    %370 = vmatprep.subr.mxu0 %v194
    %371 = vmatpush1.msra.mxu0 %v193
    %372 = vmatprep.subr.mxu0 %v192
    %373 = vmatpush1.msra.mxu0 %v191
    %374 = vmatprep.subr.mxu0 %v190
    %375 = vmatpush1.msra.mxu0 %v189
    %376 = vmatprep.subr.mxu0 0.0
    %377 = vmatpush2.msra.mxu0 0.0
    %378 = vmatprep.subr.mxu0 0.0
    %379 = vmatpush2.msra.mxu0 0.0
    %380 = vmatprep.subr.mxu0 0.0
    %381 = vmatpush2.msra.mxu0 0.0
    %382 = vmatprep.subr.mxu0 0.0
    %383 = vmatpush2.msra.mxu0 0.0
    %384 = vmatprep.subr.mxu0 0.0
    %385 = vmatpush2.msra.mxu0 0.0
    %386 = vmatprep.subr.mxu0 0.0
    %387 = vmatpush2.msra.mxu0 0.0
    %388 = vmatprep.subr.mxu0 0.0
    %389 = vmatpush2.msra.mxu0 0.0
    %390 = vmatprep.subr.mxu0 0.0
    %391 = vmatpush2.msra.mxu0 0.0
    %392 = vmatprep.subr.mxu0 0.0
    %393 = vmatpush2.msra.mxu0 0.0
    %394 = vmatprep.subr.mxu0 0.0
    %395 = vmatpush2.msra.mxu0 0.0
    %396 = vmatprep.subr.mxu0 0.0
    %397 = vmatpush2.msra.mxu0 0.0
    %398 = vmatprep.subr.mxu0 0.0
    %399 = vmatpush2.msra.mxu0 0.0
    %400 = vmatprep.subr.mxu0 0.0
    %401 = vmatpush2.msra.mxu0 0.0
    %402 = vmatprep.subr.mxu0 0.0
    %403 = vmatpush2.msra.mxu0 0.0
    %404 = vmatprep.subr.mxu0 0.0
    %405 = vmatpush2.msra.mxu0 0.0
    %406 = vmatprep.subr.mxu0 0.0
    %407 = vmatpush2.msra.mxu0 0.0
    %408 = vmatprep.mubr.f32.mxu0 0.0
    %409 = vmatmul.mubr.f32.gmra.mxu0 %v342
    %v410 = vpop.f32.mrf.mxu0
    %v411 = vadd.f32 0.0, %v410
    %v412 = vpop.f32.mrf.mxu0
    %v413 = vadd.f32 0.0, %v412
    %414 = vdwg.mxu0
    %v415 = vadd.f32 %v411, %v330
    %v417 = vrot.slane %v338, 6
    %v419 = vadd.f32 %v413, %v417
    %v420 = vxor.u32 %v415, 2147483648
    %v421 = vmul.f32 %v420, 1.442695
    %v422 = vpow.pop %v421
    %v423 = vadd.f32 %v422, 1.0
    %v424 = vrcp.pop %v423
    %v425 = vmul.f32 1.0, %v424
    %v426 = vtanh.pop %v415
    %v427 = vmul.f32 %v425, 0.0
    %429 = vrot.lane.b32.xlu0 %v426, 64
    %v430 = vpop.permute.xlu0 %429
    %v432 = vmul.f32 %v425, %v430
    %434 = vrot.lane.b32.xlu0 %v432, 32
    %v435 = vpop.permute.xlu0 %434
    %v437 = vadd.f32 %v427, %v435
    %v438 = vtanh.pop %v437
    %440 = vrot.lane.b32.xlu0 %v438, 64
    %v441 = vpop.permute.xlu0 %440
    %v443 = vmul.f32 %v425, %v441
    %v444 = vxor.u32 %v419, 2147483648
    %v445 = vmul.f32 %v444, 1.442695
    %v446 = vpow.pop %v445
    %v447 = vadd.f32 %v446, 1.0
    %v448 = vrcp.pop %v447
    %v449 = vmul.f32 1.0, %v448
    %v450 = vtanh.pop %v419
    %v451 = vmul.f32 %v449, 0.0
    %453 = vrot.lane.b32.xlu0 %v450, 64
    %v454 = vpop.permute.xlu0 %453
    %v456 = vmul.f32 %v449, %v454
    %458 = vrot.lane.b32.xlu0 %v456, 32
    %v459 = vpop.permute.xlu0 %458
    %v461 = vadd.f32 %v451, %v459
    %v462 = vtanh.pop %v461
    %464 = vrot.lane.b32.xlu0 %v462, 64
    %v465 = vpop.permute.xlu0 %464
    %v467 = vmul.f32 %v449, %v465
    %469 = vrot.lane.b32.xlu0 %v443, 32
    %v470 = vpop.permute.xlu0 %469
    %473 = vrot.lane.b32.xlu0 %v467, 64
    %v474 = vpop.permute.xlu0 %473
    %v476 = vsel %vm177, %v470, %v474
    %478 = vrot.lane.b32.xlu0 %v437, 96
    %v479 = vpop.permute.xlu0 %478
    %v481 = vsel %vm177, %v479, %v461
    %v483 = vsel %vm340, %v476, 0
    %485 = vmatprep.subr.mxu0 0.0
    %486 = vmatpush1.msra.mxu0 0.0
    %487 = vmatprep.subr.mxu0 0.0
    %488 = vmatpush1.msra.mxu0 0.0
    %489 = vmatprep.subr.mxu0 0.0
    %490 = vmatpush1.msra.mxu0 0.0
    %491 = vmatprep.subr.mxu0 0.0
    %492 = vmatpush1.msra.mxu0 0.0
    %493 = vmatprep.subr.mxu0 0.0
    %494 = vmatpush1.msra.mxu0 0.0
    %495 = vmatprep.subr.mxu0 0.0
    %496 = vmatpush1.msra.mxu0 0.0
    %497 = vmatprep.subr.mxu0 0.0
    %498 = vmatpush1.msra.mxu0 0.0
    %499 = vmatprep.subr.mxu0 0.0
    %500 = vmatpush1.msra.mxu0 0.0
    %501 = vmatprep.subr.mxu0 %v204
    %502 = vmatpush1.msra.mxu0 %v203
    %503 = vmatprep.subr.mxu0 %v202
    %504 = vmatpush1.msra.mxu0 %v201
    %505 = vmatprep.subr.mxu0 %v200
    %506 = vmatpush1.msra.mxu0 %v199
    %507 = vmatprep.subr.mxu0 %v198
    %508 = vmatpush1.msra.mxu0 %v197
    %509 = vmatprep.subr.mxu0 %v196
    %510 = vmatpush1.msra.mxu0 %v195
    %511 = vmatprep.subr.mxu0 %v194
    %512 = vmatpush1.msra.mxu0 %v193
    %513 = vmatprep.subr.mxu0 %v192
    %514 = vmatpush1.msra.mxu0 %v191
    %515 = vmatprep.subr.mxu0 %v190
    %516 = vmatpush1.msra.mxu0 %v189
    %517 = vmatprep.subr.mxu0 0.0
    %518 = vmatpush2.msra.mxu0 0.0
    %519 = vmatprep.subr.mxu0 0.0
    %520 = vmatpush2.msra.mxu0 0.0
    %521 = vmatprep.subr.mxu0 0.0
    %522 = vmatpush2.msra.mxu0 0.0
    %523 = vmatprep.subr.mxu0 0.0
    %524 = vmatpush2.msra.mxu0 0.0
    %525 = vmatprep.subr.mxu0 0.0
    %526 = vmatpush2.msra.mxu0 0.0
    %527 = vmatprep.subr.mxu0 0.0
    %528 = vmatpush2.msra.mxu0 0.0
    %529 = vmatprep.subr.mxu0 0.0
    %530 = vmatpush2.msra.mxu0 0.0
    %531 = vmatprep.subr.mxu0 0.0
    %532 = vmatpush2.msra.mxu0 0.0
    %533 = vmatprep.subr.mxu0 0.0
    %534 = vmatpush2.msra.mxu0 0.0
    %535 = vmatprep.subr.mxu0 0.0
    %536 = vmatpush2.msra.mxu0 0.0
    %537 = vmatprep.subr.mxu0 0.0
    %538 = vmatpush2.msra.mxu0 0.0
    %539 = vmatprep.subr.mxu0 0.0
    %540 = vmatpush2.msra.mxu0 0.0
    %541 = vmatprep.subr.mxu0 0.0
    %542 = vmatpush2.msra.mxu0 0.0
    %543 = vmatprep.subr.mxu0 0.0
    %544 = vmatpush2.msra.mxu0 0.0
    %545 = vmatprep.subr.mxu0 0.0
    %546 = vmatpush2.msra.mxu0 0.0
    %547 = vmatprep.subr.mxu0 0.0
    %548 = vmatpush2.msra.mxu0 0.0
    %549 = vmatprep.mubr.f32.mxu0 0.0
    %550 = vmatmul.mubr.f32.gmra.mxu0 %v483
    %v551 = vpop.f32.mrf.mxu0
    %v552 = vadd.f32 0.0, %v551
    %v553 = vpop.f32.mrf.mxu0
    %v554 = vadd.f32 0.0, %v553
    %555 = vdwg.mxu0
    %v557 = vrot.slane %v330, 2
    %v559 = vadd.f32 %v552, %v557
    %v560 = vrot.slane %v338, 4
    %v562 = vadd.f32 %v554, %v560
    %v563 = vxor.u32 %v559, 2147483648
    %v564 = vmul.f32 %v563, 1.442695
    %v565 = vpow.pop %v564
    %v566 = vadd.f32 %v565, 1.0
    %v567 = vrcp.pop %v566
    %v568 = vmul.f32 1.0, %v567
    %v569 = vtanh.pop %v559
    %571 = vrot.lane.b32.xlu0 %v481, 32
    %v572 = vpop.permute.xlu0 %571
    %v574 = vmul.f32 %v568, %v572
    %576 = vrot.lane.b32.xlu0 %v569, 64
    %v577 = vpop.permute.xlu0 %576
    %v579 = vmul.f32 %v568, %v577
    %581 = vrot.lane.b32.xlu0 %v579, 32
    %v582 = vpop.permute.xlu0 %581
    %v584 = vadd.f32 %v574, %v582
    %v585 = vtanh.pop %v584
    %587 = vrot.lane.b32.xlu0 %v585, 64
    %v588 = vpop.permute.xlu0 %587
    %v590 = vmul.f32 %v568, %v588
    %v591 = vxor.u32 %v562, 2147483648
    %v592 = vmul.f32 %v591, 1.442695
    %v593 = vpow.pop %v592
    %v594 = vadd.f32 %v593, 1.0
    %v595 = vrcp.pop %v594
    %v596 = vmul.f32 1.0, %v595
    %v597 = vtanh.pop %v562
    %v598 = vmul.f32 %v596, %v481
    %600 = vrot.lane.b32.xlu0 %v597, 64
    %v601 = vpop.permute.xlu0 %600
    %v603 = vmul.f32 %v596, %v601
    %605 = vrot.lane.b32.xlu0 %v603, 32
    %v606 = vpop.permute.xlu0 %605
    %v608 = vadd.f32 %v598, %v606
    %v609 = vtanh.pop %v608
    %611 = vrot.lane.b32.xlu0 %v609, 64
    %v612 = vpop.permute.xlu0 %611
    %v614 = vmul.f32 %v596, %v612
    %616 = vrot.lane.b32.xlu0 %v590, 32
    %v617 = vpop.permute.xlu0 %616
    %620 = vrot.lane.b32.xlu0 %v614, 64
    %v621 = vpop.permute.xlu0 %620
    %v623 = vsel %vm177, %v617, %v621
    %625 = vrot.lane.b32.xlu0 %v584, 96
    %v626 = vpop.permute.xlu0 %625
    %v628 = vsel %vm177, %v626, %v608
    %v630 = vsel %vm340, %v623, 0
    %632 = vmatprep.subr.mxu0 0.0
    %633 = vmatpush1.msra.mxu0 0.0
    %634 = vmatprep.subr.mxu0 0.0
    %635 = vmatpush1.msra.mxu0 0.0
    %636 = vmatprep.subr.mxu0 0.0
    %637 = vmatpush1.msra.mxu0 0.0
    %638 = vmatprep.subr.mxu0 0.0
    %639 = vmatpush1.msra.mxu0 0.0
    %640 = vmatprep.subr.mxu0 0.0
    %641 = vmatpush1.msra.mxu0 0.0
    %642 = vmatprep.subr.mxu0 0.0
    %643 = vmatpush1.msra.mxu0 0.0
    %644 = vmatprep.subr.mxu0 0.0
    %645 = vmatpush1.msra.mxu0 0.0
    %646 = vmatprep.subr.mxu0 0.0
    %647 = vmatpush1.msra.mxu0 0.0
    %648 = vmatprep.subr.mxu0 %v204
    %649 = vmatpush1.msra.mxu0 %v203
    %650 = vmatprep.subr.mxu0 %v202
    %651 = vmatpush1.msra.mxu0 %v201
    %652 = vmatprep.subr.mxu0 %v200
    %653 = vmatpush1.msra.mxu0 %v199
    %654 = vmatprep.subr.mxu0 %v198
    %655 = vmatpush1.msra.mxu0 %v197
    %656 = vmatprep.subr.mxu0 %v196
    %657 = vmatpush1.msra.mxu0 %v195
    %658 = vmatprep.subr.mxu0 %v194
    %659 = vmatpush1.msra.mxu0 %v193
    %660 = vmatprep.subr.mxu0 %v192
    %661 = vmatpush1.msra.mxu0 %v191
    %662 = vmatprep.subr.mxu0 %v190
    %663 = vmatpush1.msra.mxu0 %v189
    %664 = vmatprep.subr.mxu0 0.0
    %665 = vmatpush2.msra.mxu0 0.0
    %666 = vmatprep.subr.mxu0 0.0
    %667 = vmatpush2.msra.mxu0 0.0
    %668 = vmatprep.subr.mxu0 0.0
    %669 = vmatpush2.msra.mxu0 0.0
    %670 = vmatprep.subr.mxu0 0.0
    %671 = vmatpush2.msra.mxu0 0.0
    %672 = vmatprep.subr.mxu0 0.0
    %673 = vmatpush2.msra.mxu0 0.0
    %674 = vmatprep.subr.mxu0 0.0
    %675 = vmatpush2.msra.mxu0 0.0
    %676 = vmatprep.subr.mxu0 0.0
    %677 = vmatpush2.msra.mxu0 0.0
    %678 = vmatprep.subr.mxu0 0.0
    %679 = vmatpush2.msra.mxu0 0.0
    %680 = vmatprep.subr.mxu0 0.0
    %681 = vmatpush2.msra.mxu0 0.0
    %682 = vmatprep.subr.mxu0 0.0
    %683 = vmatpush2.msra.mxu0 0.0
    %684 = vmatprep.subr.mxu0 0.0
    %685 = vmatpush2.msra.mxu0 0.0
    %686 = vmatprep.subr.mxu0 0.0
    %687 = vmatpush2.msra.mxu0 0.0
    %688 = vmatprep.subr.mxu0 0.0
    %689 = vmatpush2.msra.mxu0 0.0
    %690 = vmatprep.subr.mxu0 0.0
    %691 = vmatpush2.msra.mxu0 0.0
    %692 = vmatprep.subr.mxu0 0.0
    %693 = vmatpush2.msra.mxu0 0.0
    %694 = vmatprep.subr.mxu0 0.0
    %695 = vmatpush2.msra.mxu0 0.0
    %696 = vmatprep.mubr.f32.mxu0 0.0
    %697 = vmatmul.mubr.f32.gmra.mxu0 %v630
    %v698 = vpop.f32.mrf.mxu0
    %v699 = vadd.f32 0.0, %v698
    %v700 = vpop.f32.mrf.mxu0
    %v701 = vadd.f32 0.0, %v700
    %702 = vdwg.mxu0
    %v703 = vrot.slane %v330, 4
    %v705 = vadd.f32 %v699, %v703
    %v706 = vrot.slane %v338, 2
    %v708 = vadd.f32 %v701, %v706
    %v709 = vxor.u32 %v705, 2147483648
    %v710 = vmul.f32 %v709, 1.442695
    %v711 = vpow.pop %v710
    %v712 = vadd.f32 %v711, 1.0
    %v713 = vrcp.pop %v712
    %v714 = vmul.f32 1.0, %v713
    %v715 = vtanh.pop %v705
    %717 = vrot.lane.b32.xlu0 %v628, 32
    %v718 = vpop.permute.xlu0 %717
    %v720 = vmul.f32 %v714, %v718
    %722 = vrot.lane.b32.xlu0 %v715, 64
    %v723 = vpop.permute.xlu0 %722
    %v725 = vmul.f32 %v714, %v723
    %727 = vrot.lane.b32.xlu0 %v725, 32
    %v728 = vpop.permute.xlu0 %727
    %v730 = vadd.f32 %v720, %v728
    %v731 = vtanh.pop %v730
    %733 = vrot.lane.b32.xlu0 %v731, 64
    %v734 = vpop.permute.xlu0 %733
    %v736 = vmul.f32 %v714, %v734
    %v737 = vxor.u32 %v708, 2147483648
    %v738 = vmul.f32 %v737, 1.442695
    %v739 = vpow.pop %v738
    %v740 = vadd.f32 %v739, 1.0
    %v741 = vrcp.pop %v740
    %v742 = vmul.f32 1.0, %v741
    %v743 = vtanh.pop %v708
    %v744 = vmul.f32 %v742, %v628
    %746 = vrot.lane.b32.xlu0 %v743, 64
    %v747 = vpop.permute.xlu0 %746
    %v749 = vmul.f32 %v742, %v747
    %751 = vrot.lane.b32.xlu0 %v749, 32
    %v752 = vpop.permute.xlu0 %751
    %v754 = vadd.f32 %v744, %v752
    %v755 = vtanh.pop %v754
    %757 = vrot.lane.b32.xlu0 %v755, 64
    %v758 = vpop.permute.xlu0 %757
    %v760 = vmul.f32 %v742, %v758
    %762 = vrot.lane.b32.xlu0 %v736, 32
    %v763 = vpop.permute.xlu0 %762
    %766 = vrot.lane.b32.xlu0 %v760, 64
    %v767 = vpop.permute.xlu0 %766
    %v769 = vsel %vm177, %v763, %v767
    %771 = vrot.lane.b32.xlu0 %v730, 96
    %v772 = vpop.permute.xlu0 %771
    %v774 = vsel %vm177, %v772, %v754
    %v776 = vsel %vm340, %v769, 0
    %778 = vmatprep.subr.mxu0 0.0
    %779 = vmatpush1.msra.mxu0 0.0
    %780 = vmatprep.subr.mxu0 0.0
    %781 = vmatpush1.msra.mxu0 0.0
    %782 = vmatprep.subr.mxu0 0.0
    %783 = vmatpush1.msra.mxu0 0.0
    %784 = vmatprep.subr.mxu0 0.0
    %785 = vmatpush1.msra.mxu0 0.0
    %786 = vmatprep.subr.mxu0 0.0
    %787 = vmatpush1.msra.mxu0 0.0
    %788 = vmatprep.subr.mxu0 0.0
    %789 = vmatpush1.msra.mxu0 0.0
    %790 = vmatprep.subr.mxu0 0.0
    %791 = vmatpush1.msra.mxu0 0.0
    %792 = vmatprep.subr.mxu0 0.0
    %793 = vmatpush1.msra.mxu0 0.0
    %794 = vmatprep.subr.mxu0 %v204
    %795 = vmatpush1.msra.mxu0 %v203
    %796 = vmatprep.subr.mxu0 %v202
    %797 = vmatpush1.msra.mxu0 %v201
    %798 = vmatprep.subr.mxu0 %v200
    %799 = vmatpush1.msra.mxu0 %v199
    %800 = vmatprep.subr.mxu0 %v198
    %801 = vmatpush1.msra.mxu0 %v197
    %802 = vmatprep.subr.mxu0 %v196
    %803 = vmatpush1.msra.mxu0 %v195
    %804 = vmatprep.subr.mxu0 %v194
    %805 = vmatpush1.msra.mxu0 %v193
    %806 = vmatprep.subr.mxu0 %v192
    %807 = vmatpush1.msra.mxu0 %v191
    %808 = vmatprep.subr.mxu0 %v190
    %809 = vmatpush1.msra.mxu0 %v189
    %810 = vmatprep.subr.mxu0 0.0
    %811 = vmatpush2.msra.mxu0 0.0
    %812 = vmatprep.subr.mxu0 0.0
    %813 = vmatpush2.msra.mxu0 0.0
    %814 = vmatprep.subr.mxu0 0.0
    %815 = vmatpush2.msra.mxu0 0.0
    %816 = vmatprep.subr.mxu0 0.0
    %817 = vmatpush2.msra.mxu0 0.0
    %818 = vmatprep.subr.mxu0 0.0
    %819 = vmatpush2.msra.mxu0 0.0
    %820 = vmatprep.subr.mxu0 0.0
    %821 = vmatpush2.msra.mxu0 0.0
    %822 = vmatprep.subr.mxu0 0.0
    %823 = vmatpush2.msra.mxu0 0.0
    %824 = vmatprep.subr.mxu0 0.0
    %825 = vmatpush2.msra.mxu0 0.0
    %826 = vmatprep.subr.mxu0 0.0
    %827 = vmatpush2.msra.mxu0 0.0
    %828 = vmatprep.subr.mxu0 0.0
    %829 = vmatpush2.msra.mxu0 0.0
    %830 = vmatprep.subr.mxu0 0.0
    %831 = vmatpush2.msra.mxu0 0.0
    %832 = vmatprep.subr.mxu0 0.0
    %833 = vmatpush2.msra.mxu0 0.0
    %834 = vmatprep.subr.mxu0 0.0
    %835 = vmatpush2.msra.mxu0 0.0
    %836 = vmatprep.subr.mxu0 0.0
    %837 = vmatpush2.msra.mxu0 0.0
    %838 = vmatprep.subr.mxu0 0.0
    %839 = vmatpush2.msra.mxu0 0.0
    %840 = vmatprep.subr.mxu0 0.0
    %841 = vmatpush2.msra.mxu0 0.0
    %842 = vmatprep.mubr.f32.mxu0 0.0
    %843 = vmatmul.mubr.f32.gmra.mxu0 %v776
    %v844 = vpop.f32.mrf.mxu0
    %v845 = vadd.f32 0.0, %v844
    %v846 = vpop.f32.mrf.mxu0
    %v847 = vadd.f32 0.0, %v846
    %848 = vdwg.mxu0
    %v849 = vrot.slane %v330, 6
    %v851 = vadd.f32 %v845, %v849
    %v852 = vadd.f32 %v847, %v338
    %v853 = vxor.u32 %v851, 2147483648
    %v854 = vmul.f32 %v853, 1.442695
    %v855 = vpow.pop %v854
    %v856 = vadd.f32 %v855, 1.0
    %v857 = vrcp.pop %v856
    %v858 = vmul.f32 1.0, %v857
    %v859 = vtanh.pop %v851
    %861 = vrot.lane.b32.xlu0 %v774, 32
    %v862 = vpop.permute.xlu0 %861
    %v864 = vmul.f32 %v858, %v862
    %866 = vrot.lane.b32.xlu0 %v859, 64
    %v867 = vpop.permute.xlu0 %866
    %v869 = vmul.f32 %v858, %v867
    %871 = vrot.lane.b32.xlu0 %v869, 32
    %v872 = vpop.permute.xlu0 %871
    %v874 = vadd.f32 %v864, %v872
    %v875 = vtanh.pop %v874
    %877 = vrot.lane.b32.xlu0 %v875, 64
    %v878 = vpop.permute.xlu0 %877
    %v880 = vmul.f32 %v858, %v878
    %v881 = vxor.u32 %v852, 2147483648
    %v882 = vmul.f32 %v881, 1.442695
    %v883 = vpow.pop %v882
    %v884 = vadd.f32 %v883, 1.0
    %v885 = vrcp.pop %v884
    %v886 = vmul.f32 1.0, %v885
    %v887 = vtanh.pop %v852
    %v888 = vmul.f32 %v886, %v774
    %890 = vrot.lane.b32.xlu0 %v887, 64
    %v891 = vpop.permute.xlu0 %890
    %v893 = vmul.f32 %v886, %v891
    %895 = vrot.lane.b32.xlu0 %v893, 32
    %v896 = vpop.permute.xlu0 %895
    %v898 = vadd.f32 %v888, %v896
    %v899 = vtanh.pop %v898
    %901 = vrot.lane.b32.xlu0 %v899, 64
    %v902 = vpop.permute.xlu0 %901
    %v904 = vmul.f32 %v886, %v902
    %906 = vrot.lane.b32.xlu0 %v880, 32
    %v907 = vpop.permute.xlu0 %906
    %910 = vrot.lane.b32.xlu0 %v904, 64
    %v911 = vpop.permute.xlu0 %910
    %v913 = vsel %vm177, %v907, %v911
    %915 = vrot.lane.b32.xlu0 %v874, 96
    %v916 = vpop.permute.xlu0 %915
    %v918 = vsel %vm177, %v916, %v898
    %v920 = vsel %vm340, %v913, 0
    %922 = vmatprep.subr.mxu0 0.0
    %923 = vmatpush1.msra.mxu0 0.0
    %924 = vmatprep.subr.mxu0 0.0
    %925 = vmatpush1.msra.mxu0 0.0
    %926 = vmatprep.subr.mxu0 0.0
    %927 = vmatpush1.msra.mxu0 0.0
    %928 = vmatprep.subr.mxu0 0.0
    %929 = vmatpush1.msra.mxu0 0.0
    %930 = vmatprep.subr.mxu0 0.0
    %931 = vmatpush1.msra.mxu0 0.0
    %932 = vmatprep.subr.mxu0 0.0
    %933 = vmatpush1.msra.mxu0 0.0
    %934 = vmatprep.subr.mxu0 0.0
    %935 = vmatpush1.msra.mxu0 0.0
    %936 = vmatprep.subr.mxu0 0.0
    %937 = vmatpush1.msra.mxu0 0.0
    %938 = vmatprep.subr.mxu0 %v204
    %939 = vmatpush1.msra.mxu0 %v203
    %940 = vmatprep.subr.mxu0 %v202
    %941 = vmatpush1.msra.mxu0 %v201
    %942 = vmatprep.subr.mxu0 %v200
    %943 = vmatpush1.msra.mxu0 %v199
    %944 = vmatprep.subr.mxu0 %v198
    %945 = vmatpush1.msra.mxu0 %v197
    %946 = vmatprep.subr.mxu0 %v196
    %947 = vmatpush1.msra.mxu0 %v195
    %948 = vmatprep.subr.mxu0 %v194
    %949 = vmatpush1.msra.mxu0 %v193
    %950 = vmatprep.subr.mxu0 %v192
    %951 = vmatpush1.msra.mxu0 %v191
    %952 = vmatprep.subr.mxu0 %v190
    %953 = vmatpush1.msra.mxu0 %v189
    %954 = vmatprep.subr.mxu0 0.0
    %955 = vmatpush2.msra.mxu0 0.0
    %956 = vmatprep.subr.mxu0 0.0
    %957 = vmatpush2.msra.mxu0 0.0
    %958 = vmatprep.subr.mxu0 0.0
    %959 = vmatpush2.msra.mxu0 0.0
    %960 = vmatprep.subr.mxu0 0.0
    %961 = vmatpush2.msra.mxu0 0.0
    %962 = vmatprep.subr.mxu0 0.0
    %963 = vmatpush2.msra.mxu0 0.0
    %964 = vmatprep.subr.mxu0 0.0
    %965 = vmatpush2.msra.mxu0 0.0
    %966 = vmatprep.subr.mxu0 0.0
    %967 = vmatpush2.msra.mxu0 0.0
    %968 = vmatprep.subr.mxu0 0.0
    %969 = vmatpush2.msra.mxu0 0.0
    %970 = vmatprep.subr.mxu0 0.0
    %971 = vmatpush2.msra.mxu0 0.0
    %972 = vmatprep.subr.mxu0 0.0
    %973 = vmatpush2.msra.mxu0 0.0
    %974 = vmatprep.subr.mxu0 0.0
    %975 = vmatpush2.msra.mxu0 0.0
    %976 = vmatprep.subr.mxu0 0.0
    %977 = vmatpush2.msra.mxu0 0.0
    %978 = vmatprep.subr.mxu0 0.0
    %979 = vmatpush2.msra.mxu0 0.0
    %980 = vmatprep.subr.mxu0 0.0
    %981 = vmatpush2.msra.mxu0 0.0
    %982 = vmatprep.subr.mxu0 0.0
    %983 = vmatpush2.msra.mxu0 0.0
    %984 = vmatprep.subr.mxu0 0.0
    %985 = vmatpush2.msra.mxu0 0.0
    %986 = vmatprep.mubr.f32.mxu0 0.0
    %987 = vmatmul.mubr.f32.gmra.mxu0 %v920
    %v988 = vpop.f32.mrf.mxu0
    %v989 = vadd.f32 0.0, %v988
    %v990 = vpop.f32.mrf.mxu0
    %v991 = vadd.f32 0.0, %v990
    %992 = vdwg.mxu0
    %v993 = vadd.f32 %v989, %v336
    %v995 = vrot.slane %v332, 6
    %v997 = vadd.f32 %v991, %v995
    %v998 = vxor.u32 %v993, 2147483648
    %v999 = vmul.f32 %v998, 1.442695
    %v1000 = vpow.pop %v999
    %v1001 = vadd.f32 %v1000, 1.0
    %v1002 = vrcp.pop %v1001
    %v1003 = vmul.f32 1.0, %v1002
    %v1004 = vtanh.pop %v993
    %1006 = vrot.lane.b32.xlu0 %v918, 32
    %v1007 = vpop.permute.xlu0 %1006
    %v1009 = vmul.f32 %v1003, %v1007
    %1011 = vrot.lane.b32.xlu0 %v1004, 64
    %v1012 = vpop.permute.xlu0 %1011
    %v1014 = vmul.f32 %v1003, %v1012
    %1016 = vrot.lane.b32.xlu0 %v1014, 32
    %v1017 = vpop.permute.xlu0 %1016
    %v1019 = vadd.f32 %v1009, %v1017
    %v1020 = vtanh.pop %v1019
    %1022 = vrot.lane.b32.xlu0 %v1020, 64
    %v1023 = vpop.permute.xlu0 %1022
    %v1025 = vmul.f32 %v1003, %v1023
    %v1026 = vxor.u32 %v997, 2147483648
    %v1027 = vmul.f32 %v1026, 1.442695
    %v1028 = vpow.pop %v1027
    %v1029 = vadd.f32 %v1028, 1.0
    %v1030 = vrcp.pop %v1029
    %v1031 = vmul.f32 1.0, %v1030
    %v1032 = vtanh.pop %v997
    %v1033 = vmul.f32 %v1031, %v918
    %1035 = vrot.lane.b32.xlu0 %v1032, 64
    %v1036 = vpop.permute.xlu0 %1035
    %v1038 = vmul.f32 %v1031, %v1036
    %1040 = vrot.lane.b32.xlu0 %v1038, 32
    %v1041 = vpop.permute.xlu0 %1040
    %v1043 = vadd.f32 %v1033, %v1041
    %v1044 = vtanh.pop %v1043
    %1046 = vrot.lane.b32.xlu0 %v1044, 64
    %v1047 = vpop.permute.xlu0 %1046
    %v1049 = vmul.f32 %v1031, %v1047
    %1051 = vrot.lane.b32.xlu0 %v1025, 32
    %v1052 = vpop.permute.xlu0 %1051
    %1055 = vrot.lane.b32.xlu0 %v1049, 64
    %v1056 = vpop.permute.xlu0 %1055
    %v1058 = vsel %vm177, %v1052, %v1056
    %1060 = vrot.lane.b32.xlu0 %v1019, 96
    %v1061 = vpop.permute.xlu0 %1060
    %v1063 = vsel %vm177, %v1061, %v1043
    %v1065 = vsel %vm340, %v1058, 0
    %1067 = vmatprep.subr.mxu0 0.0
    %1068 = vmatpush1.msra.mxu0 0.0
    %1069 = vmatprep.subr.mxu0 0.0
    %1070 = vmatpush1.msra.mxu0 0.0
    %1071 = vmatprep.subr.mxu0 0.0
    %1072 = vmatpush1.msra.mxu0 0.0
    %1073 = vmatprep.subr.mxu0 0.0
    %1074 = vmatpush1.msra.mxu0 0.0
    %1075 = vmatprep.subr.mxu0 0.0
    %1076 = vmatpush1.msra.mxu0 0.0
    %1077 = vmatprep.subr.mxu0 0.0
    %1078 = vmatpush1.msra.mxu0 0.0
    %1079 = vmatprep.subr.mxu0 0.0
    %1080 = vmatpush1.msra.mxu0 0.0
    %1081 = vmatprep.subr.mxu0 0.0
    %1082 = vmatpush1.msra.mxu0 0.0
    %1083 = vmatprep.subr.mxu0 %v204
    %1084 = vmatpush1.msra.mxu0 %v203
    %1085 = vmatprep.subr.mxu0 %v202
    %1086 = vmatpush1.msra.mxu0 %v201
    %1087 = vmatprep.subr.mxu0 %v200
    %1088 = vmatpush1.msra.mxu0 %v199
    %1089 = vmatprep.subr.mxu0 %v198
    %1090 = vmatpush1.msra.mxu0 %v197
    %1091 = vmatprep.subr.mxu0 %v196
    %1092 = vmatpush1.msra.mxu0 %v195
    %1093 = vmatprep.subr.mxu0 %v194
    %1094 = vmatpush1.msra.mxu0 %v193
    %1095 = vmatprep.subr.mxu0 %v192
    %1096 = vmatpush1.msra.mxu0 %v191
    %1097 = vmatprep.subr.mxu0 %v190
    %1098 = vmatpush1.msra.mxu0 %v189
    %1099 = vmatprep.subr.mxu0 0.0
    %1100 = vmatpush2.msra.mxu0 0.0
    %1101 = vmatprep.subr.mxu0 0.0
    %1102 = vmatpush2.msra.mxu0 0.0
    %1103 = vmatprep.subr.mxu0 0.0
    %1104 = vmatpush2.msra.mxu0 0.0
    %1105 = vmatprep.subr.mxu0 0.0
    %1106 = vmatpush2.msra.mxu0 0.0
    %1107 = vmatprep.subr.mxu0 0.0
    %1108 = vmatpush2.msra.mxu0 0.0
    %1109 = vmatprep.subr.mxu0 0.0
    %1110 = vmatpush2.msra.mxu0 0.0
    %1111 = vmatprep.subr.mxu0 0.0
    %1112 = vmatpush2.msra.mxu0 0.0
    %1113 = vmatprep.subr.mxu0 0.0
    %1114 = vmatpush2.msra.mxu0 0.0
    %1115 = vmatprep.subr.mxu0 0.0
    %1116 = vmatpush2.msra.mxu0 0.0
    %1117 = vmatprep.subr.mxu0 0.0
    %1118 = vmatpush2.msra.mxu0 0.0
    %1119 = vmatprep.subr.mxu0 0.0
    %1120 = vmatpush2.msra.mxu0 0.0
    %1121 = vmatprep.subr.mxu0 0.0
    %1122 = vmatpush2.msra.mxu0 0.0
    %1123 = vmatprep.subr.mxu0 0.0
    %1124 = vmatpush2.msra.mxu0 0.0
    %1125 = vmatprep.subr.mxu0 0.0
    %1126 = vmatpush2.msra.mxu0 0.0
    %1127 = vmatprep.subr.mxu0 0.0
    %1128 = vmatpush2.msra.mxu0 0.0
    %1129 = vmatprep.subr.mxu0 0.0
    %1130 = vmatpush2.msra.mxu0 0.0
    %1131 = vmatprep.mubr.f32.mxu0 0.0
    %1132 = vmatmul.mubr.f32.gmra.mxu0 %v1065
    %v1133 = vpop.f32.mrf.mxu0
    %v1134 = vadd.f32 0.0, %v1133
    %v1135 = vpop.f32.mrf.mxu0
    %v1136 = vadd.f32 0.0, %v1135
    %1137 = vdwg.mxu0
    %v1139 = vrot.slane %v336, 2
    %v1141 = vadd.f32 %v1134, %v1139
    %v1142 = vrot.slane %v332, 4
    %v1144 = vadd.f32 %v1136, %v1142
    %v1145 = vxor.u32 %v1141, 2147483648
    %v1146 = vmul.f32 %v1145, 1.442695
    %v1147 = vpow.pop %v1146
    %v1148 = vadd.f32 %v1147, 1.0
    %v1149 = vrcp.pop %v1148
    %v1150 = vmul.f32 1.0, %v1149
    %v1151 = vtanh.pop %v1141
    %1153 = vrot.lane.b32.xlu0 %v1063, 32
    %v1154 = vpop.permute.xlu0 %1153
    %v1156 = vmul.f32 %v1150, %v1154
    %1158 = vrot.lane.b32.xlu0 %v1151, 64
    %v1159 = vpop.permute.xlu0 %1158
    %v1161 = vmul.f32 %v1150, %v1159
    %1163 = vrot.lane.b32.xlu0 %v1161, 32
    %v1164 = vpop.permute.xlu0 %1163
    %v1166 = vadd.f32 %v1156, %v1164
    %v1167 = vtanh.pop %v1166
    %1169 = vrot.lane.b32.xlu0 %v1167, 64
    %v1170 = vpop.permute.xlu0 %1169
    %v1172 = vmul.f32 %v1150, %v1170
    %v1173 = vxor.u32 %v1144, 2147483648
    %v1174 = vmul.f32 %v1173, 1.442695
    %v1175 = vpow.pop %v1174
    %v1176 = vadd.f32 %v1175, 1.0
    %v1177 = vrcp.pop %v1176
    %v1178 = vmul.f32 1.0, %v1177
    %v1179 = vtanh.pop %v1144
    %v1180 = vmul.f32 %v1178, %v1063
    %1182 = vrot.lane.b32.xlu0 %v1179, 64
    %v1183 = vpop.permute.xlu0 %1182
    %v1185 = vmul.f32 %v1178, %v1183
    %1187 = vrot.lane.b32.xlu0 %v1185, 32
    %v1188 = vpop.permute.xlu0 %1187
    %v1190 = vadd.f32 %v1180, %v1188
    %v1191 = vtanh.pop %v1190
    %1193 = vrot.lane.b32.xlu0 %v1191, 64
    %v1194 = vpop.permute.xlu0 %1193
    %v1196 = vmul.f32 %v1178, %v1194
    %1198 = vrot.lane.b32.xlu0 %v1172, 32
    %v1199 = vpop.permute.xlu0 %1198
    %1202 = vrot.lane.b32.xlu0 %v1196, 64
    %v1203 = vpop.permute.xlu0 %1202
    %v1205 = vsel %vm177, %v1199, %v1203
    %1207 = vrot.lane.b32.xlu0 %v1166, 96
    %v1208 = vpop.permute.xlu0 %1207
    %v1210 = vsel %vm177, %v1208, %v1190
    %v1212 = vsel %vm340, %v1205, 0
    %1214 = vmatprep.subr.mxu0 0.0
    %1215 = vmatpush1.msra.mxu0 0.0
    %1216 = vmatprep.subr.mxu0 0.0
    %1217 = vmatpush1.msra.mxu0 0.0
    %1218 = vmatprep.subr.mxu0 0.0
    %1219 = vmatpush1.msra.mxu0 0.0
    %1220 = vmatprep.subr.mxu0 0.0
    %1221 = vmatpush1.msra.mxu0 0.0
    %1222 = vmatprep.subr.mxu0 0.0
    %1223 = vmatpush1.msra.mxu0 0.0
    %1224 = vmatprep.subr.mxu0 0.0
    %1225 = vmatpush1.msra.mxu0 0.0
    %1226 = vmatprep.subr.mxu0 0.0
    %1227 = vmatpush1.msra.mxu0 0.0
    %1228 = vmatprep.subr.mxu0 0.0
    %1229 = vmatpush1.msra.mxu0 0.0
    %1230 = vmatprep.subr.mxu0 %v204
    %1231 = vmatpush1.msra.mxu0 %v203
    %1232 = vmatprep.subr.mxu0 %v202
    %1233 = vmatpush1.msra.mxu0 %v201
    %1234 = vmatprep.subr.mxu0 %v200
    %1235 = vmatpush1.msra.mxu0 %v199
    %1236 = vmatprep.subr.mxu0 %v198
    %1237 = vmatpush1.msra.mxu0 %v197
    %1238 = vmatprep.subr.mxu0 %v196
    %1239 = vmatpush1.msra.mxu0 %v195
    %1240 = vmatprep.subr.mxu0 %v194
    %1241 = vmatpush1.msra.mxu0 %v193
    %1242 = vmatprep.subr.mxu0 %v192
    %1243 = vmatpush1.msra.mxu0 %v191
    %1244 = vmatprep.subr.mxu0 %v190
    %1245 = vmatpush1.msra.mxu0 %v189
    %1246 = vmatprep.subr.mxu0 0.0
    %1247 = vmatpush2.msra.mxu0 0.0
    %1248 = vmatprep.subr.mxu0 0.0
    %1249 = vmatpush2.msra.mxu0 0.0
    %1250 = vmatprep.subr.mxu0 0.0
    %1251 = vmatpush2.msra.mxu0 0.0
    %1252 = vmatprep.subr.mxu0 0.0
    %1253 = vmatpush2.msra.mxu0 0.0
    %1254 = vmatprep.subr.mxu0 0.0
    %1255 = vmatpush2.msra.mxu0 0.0
    %1256 = vmatprep.subr.mxu0 0.0
    %1257 = vmatpush2.msra.mxu0 0.0
    %1258 = vmatprep.subr.mxu0 0.0
    %1259 = vmatpush2.msra.mxu0 0.0
    %1260 = vmatprep.subr.mxu0 0.0
    %1261 = vmatpush2.msra.mxu0 0.0
    %1262 = vmatprep.subr.mxu0 0.0
    %1263 = vmatpush2.msra.mxu0 0.0
    %1264 = vmatprep.subr.mxu0 0.0
    %1265 = vmatpush2.msra.mxu0 0.0
    %1266 = vmatprep.subr.mxu0 0.0
    %1267 = vmatpush2.msra.mxu0 0.0
    %1268 = vmatprep.subr.mxu0 0.0
    %1269 = vmatpush2.msra.mxu0 0.0
    %1270 = vmatprep.subr.mxu0 0.0
    %1271 = vmatpush2.msra.mxu0 0.0
    %1272 = vmatprep.subr.mxu0 0.0
    %1273 = vmatpush2.msra.mxu0 0.0
    %1274 = vmatprep.subr.mxu0 0.0
    %1275 = vmatpush2.msra.mxu0 0.0
    %1276 = vmatprep.subr.mxu0 0.0
    %1277 = vmatpush2.msra.mxu0 0.0
    %1278 = vmatprep.mubr.f32.mxu0 0.0
    %1279 = vmatmul.mubr.f32.gmra.mxu0 %v1212
    %v1280 = vpop.f32.mrf.mxu0
    %v1281 = vadd.f32 0.0, %v1280
    %v1282 = vpop.f32.mrf.mxu0
    %v1283 = vadd.f32 0.0, %v1282
    %1284 = vdwg.mxu0
    %v1285 = vrot.slane %v336, 4
    %v1287 = vadd.f32 %v1281, %v1285
    %v1288 = vrot.slane %v332, 2
    %v1290 = vadd.f32 %v1283, %v1288
    %v1291 = vxor.u32 %v1287, 2147483648
    %v1292 = vmul.f32 %v1291, 1.442695
    %v1293 = vpow.pop %v1292
    %v1294 = vadd.f32 %v1293, 1.0
    %v1295 = vrcp.pop %v1294
    %v1296 = vmul.f32 1.0, %v1295
    %v1297 = vtanh.pop %v1287
    %1299 = vrot.lane.b32.xlu0 %v1210, 32
    %v1300 = vpop.permute.xlu0 %1299
    %v1302 = vmul.f32 %v1296, %v1300
    %1304 = vrot.lane.b32.xlu0 %v1297, 64
    %v1305 = vpop.permute.xlu0 %1304
    %v1307 = vmul.f32 %v1296, %v1305
    %1309 = vrot.lane.b32.xlu0 %v1307, 32
    %v1310 = vpop.permute.xlu0 %1309
    %v1312 = vadd.f32 %v1302, %v1310
    %v1313 = vtanh.pop %v1312
    %1315 = vrot.lane.b32.xlu0 %v1313, 64
    %v1316 = vpop.permute.xlu0 %1315
    %v1318 = vmul.f32 %v1296, %v1316
    %v1319 = vxor.u32 %v1290, 2147483648
    %v1320 = vmul.f32 %v1319, 1.442695
    %v1321 = vpow.pop %v1320
    %v1322 = vadd.f32 %v1321, 1.0
    %v1323 = vrcp.pop %v1322
    %v1324 = vmul.f32 1.0, %v1323
    %v1325 = vtanh.pop %v1290
    %v1326 = vmul.f32 %v1324, %v1210
    %1328 = vrot.lane.b32.xlu0 %v1325, 64
    %v1329 = vpop.permute.xlu0 %1328
    %v1331 = vmul.f32 %v1324, %v1329
    %1333 = vrot.lane.b32.xlu0 %v1331, 32
    %v1334 = vpop.permute.xlu0 %1333
    %v1336 = vadd.f32 %v1326, %v1334
    %v1337 = vtanh.pop %v1336
    %1339 = vrot.lane.b32.xlu0 %v1337, 64
    %v1340 = vpop.permute.xlu0 %1339
    %v1342 = vmul.f32 %v1324, %v1340
    %1344 = vrot.lane.b32.xlu0 %v1318, 32
    %v1345 = vpop.permute.xlu0 %1344
    %1348 = vrot.lane.b32.xlu0 %v1342, 64
    %v1349 = vpop.permute.xlu0 %1348
    %v1351 = vsel %vm177, %v1345, %v1349
    %1353 = vrot.lane.b32.xlu0 %v1312, 96
    %v1354 = vpop.permute.xlu0 %1353
    %v1356 = vsel %vm177, %v1354, %v1336
    %v1358 = vsel %vm340, %v1351, 0
    %1360 = vmatprep.subr.mxu0 0.0
    %1361 = vmatpush1.msra.mxu0 0.0
    %1362 = vmatprep.subr.mxu0 0.0
    %1363 = vmatpush1.msra.mxu0 0.0
    %1364 = vmatprep.subr.mxu0 0.0
    %1365 = vmatpush1.msra.mxu0 0.0
    %1366 = vmatprep.subr.mxu0 0.0
    %1367 = vmatpush1.msra.mxu0 0.0
    %1368 = vmatprep.subr.mxu0 0.0
    %1369 = vmatpush1.msra.mxu0 0.0
    %1370 = vmatprep.subr.mxu0 0.0
    %1371 = vmatpush1.msra.mxu0 0.0
    %1372 = vmatprep.subr.mxu0 0.0
    %1373 = vmatpush1.msra.mxu0 0.0
    %1374 = vmatprep.subr.mxu0 0.0
    %1375 = vmatpush1.msra.mxu0 0.0
    %1376 = vmatprep.subr.mxu0 %v204
    %1377 = vmatpush1.msra.mxu0 %v203
    %1378 = vmatprep.subr.mxu0 %v202
    %1379 = vmatpush1.msra.mxu0 %v201
    %1380 = vmatprep.subr.mxu0 %v200
    %1381 = vmatpush1.msra.mxu0 %v199
    %1382 = vmatprep.subr.mxu0 %v198
    %1383 = vmatpush1.msra.mxu0 %v197
    %1384 = vmatprep.subr.mxu0 %v196
    %1385 = vmatpush1.msra.mxu0 %v195
    %1386 = vmatprep.subr.mxu0 %v194
    %1387 = vmatpush1.msra.mxu0 %v193
    %1388 = vmatprep.subr.mxu0 %v192
    %1389 = vmatpush1.msra.mxu0 %v191
    %1390 = vmatprep.subr.mxu0 %v190
    %1391 = vmatpush1.msra.mxu0 %v189
    %1392 = vmatprep.subr.mxu0 0.0
    %1393 = vmatpush2.msra.mxu0 0.0
    %1394 = vmatprep.subr.mxu0 0.0
    %1395 = vmatpush2.msra.mxu0 0.0
    %1396 = vmatprep.subr.mxu0 0.0
    %1397 = vmatpush2.msra.mxu0 0.0
    %1398 = vmatprep.subr.mxu0 0.0
    %1399 = vmatpush2.msra.mxu0 0.0
    %1400 = vmatprep.subr.mxu0 0.0
    %1401 = vmatpush2.msra.mxu0 0.0
    %1402 = vmatprep.subr.mxu0 0.0
    %1403 = vmatpush2.msra.mxu0 0.0
    %1404 = vmatprep.subr.mxu0 0.0
    %1405 = vmatpush2.msra.mxu0 0.0
    %1406 = vmatprep.subr.mxu0 0.0
    %1407 = vmatpush2.msra.mxu0 0.0
    %1408 = vmatprep.subr.mxu0 0.0
    %1409 = vmatpush2.msra.mxu0 0.0
    %1410 = vmatprep.subr.mxu0 0.0
    %1411 = vmatpush2.msra.mxu0 0.0
    %1412 = vmatprep.subr.mxu0 0.0
    %1413 = vmatpush2.msra.mxu0 0.0
    %1414 = vmatprep.subr.mxu0 0.0
    %1415 = vmatpush2.msra.mxu0 0.0
    %1416 = vmatprep.subr.mxu0 0.0
    %1417 = vmatpush2.msra.mxu0 0.0
    %1418 = vmatprep.subr.mxu0 0.0
    %1419 = vmatpush2.msra.mxu0 0.0
    %1420 = vmatprep.subr.mxu0 0.0
    %1421 = vmatpush2.msra.mxu0 0.0
    %1422 = vmatprep.subr.mxu0 0.0
    %1423 = vmatpush2.msra.mxu0 0.0
    %1424 = vmatprep.mubr.f32.mxu0 0.0
    %1425 = vmatmul.mubr.f32.gmra.mxu0 %v1358
    %v1426 = vpop.f32.mrf.mxu0
    %v1427 = vadd.f32 0.0, %v1426
    %v1428 = vpop.f32.mrf.mxu0
    %v1429 = vadd.f32 0.0, %v1428
    %1430 = vdwg.mxu0
    %v1431 = vrot.slane %v336, 6
    %v1433 = vadd.f32 %v1427, %v1431
    %v1434 = vadd.f32 %v1429, %v332
    %v1435 = vxor.u32 %v1433, 2147483648
    %v1436 = vmul.f32 %v1435, 1.442695
    %v1437 = vpow.pop %v1436
    %v1438 = vadd.f32 %v1437, 1.0
    %v1439 = vrcp.pop %v1438
    %v1440 = vmul.f32 1.0, %v1439
    %v1441 = vtanh.pop %v1433
    %1443 = vrot.lane.b32.xlu0 %v1356, 32
    %v1444 = vpop.permute.xlu0 %1443
    %v1446 = vmul.f32 %v1440, %v1444
    %1448 = vrot.lane.b32.xlu0 %v1441, 64
    %v1449 = vpop.permute.xlu0 %1448
    %v1451 = vmul.f32 %v1440, %v1449
    %1453 = vrot.lane.b32.xlu0 %v1451, 32
    %v1454 = vpop.permute.xlu0 %1453
    %v1456 = vadd.f32 %v1446, %v1454
    %v1457 = vtanh.pop %v1456
    %1459 = vrot.lane.b32.xlu0 %v1457, 64
    %v1460 = vpop.permute.xlu0 %1459
    %v1462 = vmul.f32 %v1440, %v1460
    %v1463 = vxor.u32 %v1434, 2147483648
    %v1464 = vmul.f32 %v1463, 1.442695
    %v1465 = vpow.pop %v1464
    %v1466 = vadd.f32 %v1465, 1.0
    %v1467 = vrcp.pop %v1466
    %v1468 = vmul.f32 1.0, %v1467
    %v1469 = vtanh.pop %v1434
    %v1470 = vmul.f32 %v1468, %v1356
    %1472 = vrot.lane.b32.xlu0 %v1469, 64
    %v1473 = vpop.permute.xlu0 %1472
    %v1475 = vmul.f32 %v1468, %v1473
    %1477 = vrot.lane.b32.xlu0 %v1475, 32
    %v1478 = vpop.permute.xlu0 %1477
    %v1480 = vadd.f32 %v1470, %v1478
    %v1481 = vtanh.pop %v1480
    %1483 = vrot.lane.b32.xlu0 %v1481, 64
    %v1484 = vpop.permute.xlu0 %1483
    %v1486 = vmul.f32 %v1468, %v1484
    %1488 = vrot.lane.b32.xlu0 %v1462, 32
    %v1489 = vpop.permute.xlu0 %1488
    %1492 = vrot.lane.b32.xlu0 %v1486, 64
    %v1493 = vpop.permute.xlu0 %1492
    %v1495 = vsel %vm177, %v1489, %v1493
    %1497 = vrot.lane.b32.xlu0 %v1495, 96
    %v1498 = vpop.permute.xlu0 %1497
    %v1500 = vmax.f32 %v1495, %v1498
    %v1501 = vsel %vm177, %v470, %v1493
    %v1502 = vsel %vm177, %v617, %v1349
    %v1503 = vsel %vm177, %v763, %v1203
    %v1504 = vsel %vm177, %v907, %v1056
    %v1505 = vsel %vm177, %v1052, %v911
    %v1506 = vsel %vm177, %v1199, %v767
    %v1507 = vsel %vm177, %v1345, %v621
    %v1508 = vsel %vm177, %v1489, %v474
    %v1510 = vrot.slane %v1502, 6
    %v1513 = vrot.slane %v1503, 4
    %v1516 = vrot.slane %v1504, 2
    %v1519 = vrot.slane %v1506, 6
    %v1522 = vrot.slane %v1507, 4
    %v1525 = vrot.slane %v1508, 2
    %vm1527 = vcmask 1041408
    %v1528 = vsel %vm1527, %v1501, %v1510
    %vm1529 = vcmask 1043456
    %v1530 = vsel %vm1529, %v1528, %v1513
    %vm1531 = vcmask 1045504
    %v1532 = vsel %vm1531, %v1530, %v1516
    %v1533 = vsel %vm1527, %v1505, %v1519
    %v1534 = vsel %vm1529, %v1533, %v1522
    %v1535 = vsel %vm1531, %v1534, %v1525
    %v1536 = vld [vmem:[#allocation5] sm:$0xff]
    %v1537 = vld [vmem:[#allocation5 + $0x8] sm:$0xff]
    %v1538 = vld [vmem:[#allocation5 + $0x10] sm:$0xff]
    %v1539 = vld [vmem:[#allocation5 + $0x18] sm:$0xff]
    %v1540 = vld [vmem:[#allocation5 + $0x20] sm:$0xff]
    %v1541 = vld [vmem:[#allocation5 + $0x28] sm:$0xff]
    %v1542 = vld [vmem:[#allocation5 + $0x30] sm:$0xff]
    %v1543 = vld [vmem:[#allocation5 + $0x38] sm:$0xff]
    %v1544 = vld [vmem:[#allocation5 + $0x40] sm:$0xff]
    %v1545 = vld [vmem:[#allocation5 + $0x48] sm:$0xff]
    %v1546 = vld [vmem:[#allocation5 + $0x50] sm:$0xff]
    %v1547 = vld [vmem:[#allocation5 + $0x58] sm:$0xff]
    %v1548 = vld [vmem:[#allocation5 + $0x60] sm:$0xff]
    %v1549 = vld [vmem:[#allocation5 + $0x68] sm:$0xff]
    %v1550 = vld [vmem:[#allocation5 + $0x70] sm:$0xff]
    %v1551 = vld [vmem:[#allocation5 + $0x78] sm:$0xff]
    %v1552 = vld [vmem:[#allocation7] sm:$0xff]
    %v1553 = vld [vmem:[#allocation7 + $0x8] sm:$0xff]
    %v1554 = vld [vmem:[#allocation7 + $0x10] sm:$0xff]
    %v1555 = vld [vmem:[#allocation7 + $0x18] sm:$0xff]
    %v1556 = vld [vmem:[#allocation7 + $0x20] sm:$0xff]
    %v1557 = vld [vmem:[#allocation7 + $0x28] sm:$0xff]
    %v1558 = vld [vmem:[#allocation7 + $0x30] sm:$0xff]
    %v1559 = vld [vmem:[#allocation7 + $0x38] sm:$0xff]
    %v1560 = vld [vmem:[#allocation7 + $0x40] sm:$0xff]
    %v1561 = vld [vmem:[#allocation7 + $0x48] sm:$0xff]
    %v1562 = vld [vmem:[#allocation7 + $0x50] sm:$0xff]
    %v1563 = vld [vmem:[#allocation7 + $0x58] sm:$0xff]
    %v1564 = vld [vmem:[#allocation7 + $0x60] sm:$0xff]
    %v1565 = vld [vmem:[#allocation7 + $0x68] sm:$0xff]
    %v1566 = vld [vmem:[#allocation7 + $0x70] sm:$0xff]
    %v1567 = vld [vmem:[#allocation7 + $0x78] sm:$0xff]
    %v1568 = vld [vmem:[%s9] sm:$0x3]
    %v1570 = vlaneseq
    %v1571 = vshrl.u32 %v1570, 7
    %v1572 = vsub.s32 0, %v1571
    %v1573 = vrot.slane %v1568, %v1572
    %v1574 = vlaneseq
    %v1575 = vshrl.u32 %v1574, 7
    %v1576 = vsub.s32 1, %v1575
    %v1577 = vrot.slane %v1568, %v1576
    %v1581 = vsel %vm340, %v1532, 0
    %v1584 = vsel %vm340, %v1535, 0
    %1586 = vmatprep.subr.mxu0 0.0
    %1587 = vmatpush1.msra.mxu0 0.0
    %1588 = vmatprep.subr.mxu0 0.0
    %1589 = vmatpush1.msra.mxu0 0.0
    %1590 = vmatprep.subr.mxu0 0.0
    %1591 = vmatpush1.msra.mxu0 0.0
    %1592 = vmatprep.subr.mxu0 0.0
    %1593 = vmatpush1.msra.mxu0 0.0
    %1594 = vmatprep.subr.mxu0 0.0
    %1595 = vmatpush1.msra.mxu0 0.0
    %1596 = vmatprep.subr.mxu0 0.0
    %1597 = vmatpush1.msra.mxu0 0.0
    %1598 = vmatprep.subr.mxu0 0.0
    %1599 = vmatpush1.msra.mxu0 0.0
    %1600 = vmatprep.subr.mxu0 0.0
    %1601 = vmatpush1.msra.mxu0 0.0
    %1602 = vmatprep.subr.mxu0 %v1551
    %1603 = vmatpush1.msra.mxu0 %v1550
    %1604 = vmatprep.subr.mxu0 %v1549
    %1605 = vmatpush1.msra.mxu0 %v1548
    %1606 = vmatprep.subr.mxu0 %v1547
    %1607 = vmatpush1.msra.mxu0 %v1546
    %1608 = vmatprep.subr.mxu0 %v1545
    %1609 = vmatpush1.msra.mxu0 %v1544
    %1610 = vmatprep.subr.mxu0 %v1543
    %1611 = vmatpush1.msra.mxu0 %v1542
    %1612 = vmatprep.subr.mxu0 %v1541
    %1613 = vmatpush1.msra.mxu0 %v1540
    %1614 = vmatprep.subr.mxu0 %v1539
    %1615 = vmatpush1.msra.mxu0 %v1538
    %1616 = vmatprep.subr.mxu0 %v1537
    %1617 = vmatpush1.msra.mxu0 %v1536
    %1618 = vmatprep.subr.mxu0 0.0
    %1619 = vmatpush2.msra.mxu0 0.0
    %1620 = vmatprep.subr.mxu0 0.0
    %1621 = vmatpush2.msra.mxu0 0.0
    %1622 = vmatprep.subr.mxu0 0.0
    %1623 = vmatpush2.msra.mxu0 0.0
    %1624 = vmatprep.subr.mxu0 0.0
    %1625 = vmatpush2.msra.mxu0 0.0
    %1626 = vmatprep.subr.mxu0 0.0
    %1627 = vmatpush2.msra.mxu0 0.0
    %1628 = vmatprep.subr.mxu0 0.0
    %1629 = vmatpush2.msra.mxu0 0.0
    %1630 = vmatprep.subr.mxu0 0.0
    %1631 = vmatpush2.msra.mxu0 0.0
    %1632 = vmatprep.subr.mxu0 0.0
    %1633 = vmatpush2.msra.mxu0 0.0
    %1634 = vmatprep.subr.mxu0 0.0
    %1635 = vmatpush2.msra.mxu0 0.0
    %1636 = vmatprep.subr.mxu0 0.0
    %1637 = vmatpush2.msra.mxu0 0.0
    %1638 = vmatprep.subr.mxu0 0.0
    %1639 = vmatpush2.msra.mxu0 0.0
    %1640 = vmatprep.subr.mxu0 0.0
    %1641 = vmatpush2.msra.mxu0 0.0
    %1642 = vmatprep.subr.mxu0 0.0
    %1643 = vmatpush2.msra.mxu0 0.0
    %1644 = vmatprep.subr.mxu0 0.0
    %1645 = vmatpush2.msra.mxu0 0.0
    %1646 = vmatprep.subr.mxu0 0.0
    %1647 = vmatpush2.msra.mxu0 0.0
    %1648 = vmatprep.subr.mxu0 0.0
    %1649 = vmatpush2.msra.mxu0 0.0
    %1650 = vmatprep.mubr.f32.mxu0 0.0
    %1651 = vmatmul.mubr.f32.gmra.mxu0 %v1581
    %v1652 = vpop.f32.mrf.mxu0
    %v1653 = vadd.f32 %v1573, %v1652
    %v1654 = vpop.f32.mrf.mxu0
    %v1655 = vadd.f32 %v1577, %v1654
    %1656 = vmatprep.mubr.f32.mxu0 0.0
    %1657 = vmatmul.mubr.f32.gmra.mxu0 %v1584
    %v1658 = vpop.f32.mrf.mxu0
    %v1659 = vadd.f32 %v1573, %v1658
    %v1660 = vpop.f32.mrf.mxu0
    %v1661 = vadd.f32 %v1577, %v1660
    %1662 = vdwg.mxu0
    %1663 = vmatprep.subr.mxu0 0.0
    %1664 = vmatpush1.msra.mxu0 0.0
    %1665 = vmatprep.subr.mxu0 0.0
    %1666 = vmatpush1.msra.mxu0 0.0
    %1667 = vmatprep.subr.mxu0 0.0
    %1668 = vmatpush1.msra.mxu0 0.0
    %1669 = vmatprep.subr.mxu0 0.0
    %1670 = vmatpush1.msra.mxu0 0.0
    %1671 = vmatprep.subr.mxu0 0.0
    %1672 = vmatpush1.msra.mxu0 0.0
    %1673 = vmatprep.subr.mxu0 0.0
    %1674 = vmatpush1.msra.mxu0 0.0
    %1675 = vmatprep.subr.mxu0 0.0
    %1676 = vmatpush1.msra.mxu0 0.0
    %1677 = vmatprep.subr.mxu0 0.0
    %1678 = vmatpush1.msra.mxu0 0.0
    %1679 = vmatprep.subr.mxu0 %v1567
    %1680 = vmatpush1.msra.mxu0 %v1566
    %1681 = vmatprep.subr.mxu0 %v1565
    %1682 = vmatpush1.msra.mxu0 %v1564
    %1683 = vmatprep.subr.mxu0 %v1563
    %1684 = vmatpush1.msra.mxu0 %v1562
    %1685 = vmatprep.subr.mxu0 %v1561
    %1686 = vmatpush1.msra.mxu0 %v1560
    %1687 = vmatprep.subr.mxu0 %v1559
    %1688 = vmatpush1.msra.mxu0 %v1558
    %1689 = vmatprep.subr.mxu0 %v1557
    %1690 = vmatpush1.msra.mxu0 %v1556
    %1691 = vmatprep.subr.mxu0 %v1555
    %1692 = vmatpush1.msra.mxu0 %v1554
    %1693 = vmatprep.subr.mxu0 %v1553
    %1694 = vmatpush1.msra.mxu0 %v1552
    %1695 = vmatprep.subr.mxu0 0.0
    %1696 = vmatpush2.msra.mxu0 0.0
    %1697 = vmatprep.subr.mxu0 0.0
    %1698 = vmatpush2.msra.mxu0 0.0
    %1699 = vmatprep.subr.mxu0 0.0
    %1700 = vmatpush2.msra.mxu0 0.0
    %1701 = vmatprep.subr.mxu0 0.0
    %1702 = vmatpush2.msra.mxu0 0.0
    %1703 = vmatprep.subr.mxu0 0.0
    %1704 = vmatpush2.msra.mxu0 0.0
    %1705 = vmatprep.subr.mxu0 0.0
    %1706 = vmatpush2.msra.mxu0 0.0
    %1707 = vmatprep.subr.mxu0 0.0
    %1708 = vmatpush2.msra.mxu0 0.0
    %1709 = vmatprep.subr.mxu0 0.0
    %1710 = vmatpush2.msra.mxu0 0.0
    %1711 = vmatprep.subr.mxu0 0.0
    %1712 = vmatpush2.msra.mxu0 0.0
    %1713 = vmatprep.subr.mxu0 0.0
    %1714 = vmatpush2.msra.mxu0 0.0
    %1715 = vmatprep.subr.mxu0 0.0
    %1716 = vmatpush2.msra.mxu0 0.0
    %1717 = vmatprep.subr.mxu0 0.0
    %1718 = vmatpush2.msra.mxu0 0.0
    %1719 = vmatprep.subr.mxu0 0.0
    %1720 = vmatpush2.msra.mxu0 0.0
    %1721 = vmatprep.subr.mxu0 0.0
    %1722 = vmatpush2.msra.mxu0 0.0
    %1723 = vmatprep.subr.mxu0 0.0
    %1724 = vmatpush2.msra.mxu0 0.0
    %1725 = vmatprep.subr.mxu0 0.0
    %1726 = vmatpush2.msra.mxu0 0.0
    %1727 = vmatprep.mubr.f32.mxu0 0.0
    %1728 = vmatmul.mubr.f32.gmra.mxu0 %v342
    %v1729 = vpop.f32.mrf.mxu0
    %v1730 = vadd.f32 0.0, %v1729
    %v1731 = vpop.f32.mrf.mxu0
    %v1732 = vadd.f32 0.0, %v1731
    %1733 = vdwg.mxu0
    %v1734 = vadd.f32 %v1730, %v1653
    %v1736 = vrot.slane %v1661, 6
    %v1738 = vadd.f32 %v1732, %v1736
    %v1739 = vxor.u32 %v1734, 2147483648
    %v1740 = vmul.f32 %v1739, 1.442695
    %v1741 = vpow.pop %v1740
    %v1742 = vadd.f32 %v1741, 1.0
    %v1743 = vrcp.pop %v1742
    %v1744 = vmul.f32 1.0, %v1743
    %v1745 = vtanh.pop %v1734
    %v1746 = vmul.f32 %v1744, 0.0
    %1748 = vrot.lane.b32.xlu0 %v1745, 64
    %v1749 = vpop.permute.xlu0 %1748
    %v1751 = vmul.f32 %v1744, %v1749
    %1753 = vrot.lane.b32.xlu0 %v1751, 32
    %v1754 = vpop.permute.xlu0 %1753
    %v1756 = vadd.f32 %v1746, %v1754
    %v1757 = vtanh.pop %v1756
    %1759 = vrot.lane.b32.xlu0 %v1757, 64
    %v1760 = vpop.permute.xlu0 %1759
    %v1762 = vmul.f32 %v1744, %v1760
    %v1763 = vxor.u32 %v1738, 2147483648
    %v1764 = vmul.f32 %v1763, 1.442695
    %v1765 = vpow.pop %v1764
    %v1766 = vadd.f32 %v1765, 1.0
    %v1767 = vrcp.pop %v1766
    %v1768 = vmul.f32 1.0, %v1767
    %v1769 = vtanh.pop %v1738
    %v1770 = vmul.f32 %v1768, 0.0
    %1772 = vrot.lane.b32.xlu0 %v1769, 64
    %v1773 = vpop.permute.xlu0 %1772
    %v1775 = vmul.f32 %v1768, %v1773
    %1777 = vrot.lane.b32.xlu0 %v1775, 32
    %v1778 = vpop.permute.xlu0 %1777
    %v1780 = vadd.f32 %v1770, %v1778
    %v1781 = vtanh.pop %v1780
    %1783 = vrot.lane.b32.xlu0 %v1781, 64
    %v1784 = vpop.permute.xlu0 %1783
    %v1786 = vmul.f32 %v1768, %v1784
    %1788 = vrot.lane.b32.xlu0 %v1762, 32
    %v1789 = vpop.permute.xlu0 %1788
    %1792 = vrot.lane.b32.xlu0 %v1786, 64
    %v1793 = vpop.permute.xlu0 %1792
    %v1795 = vsel %vm177, %v1789, %v1793
    %1797 = vrot.lane.b32.xlu0 %v1756, 96
    %v1798 = vpop.permute.xlu0 %1797
    %v1800 = vsel %vm177, %v1798, %v1780
    %v1802 = vsel %vm340, %v1795, 0
    %1804 = vmatprep.subr.mxu0 0.0
    %1805 = vmatpush1.msra.mxu0 0.0
    %1806 = vmatprep.subr.mxu0 0.0
    %1807 = vmatpush1.msra.mxu0 0.0
    %1808 = vmatprep.subr.mxu0 0.0
    %1809 = vmatpush1.msra.mxu0 0.0
    %1810 = vmatprep.subr.mxu0 0.0
    %1811 = vmatpush1.msra.mxu0 0.0
    %1812 = vmatprep.subr.mxu0 0.0
    %1813 = vmatpush1.msra.mxu0 0.0
    %1814 = vmatprep.subr.mxu0 0.0
    %1815 = vmatpush1.msra.mxu0 0.0
    %1816 = vmatprep.subr.mxu0 0.0
    %1817 = vmatpush1.msra.mxu0 0.0
    %1818 = vmatprep.subr.mxu0 0.0
    %1819 = vmatpush1.msra.mxu0 0.0
    %1820 = vmatprep.subr.mxu0 %v1567
    %1821 = vmatpush1.msra.mxu0 %v1566
    %1822 = vmatprep.subr.mxu0 %v1565
    %1823 = vmatpush1.msra.mxu0 %v1564
    %1824 = vmatprep.subr.mxu0 %v1563
    %1825 = vmatpush1.msra.mxu0 %v1562
    %1826 = vmatprep.subr.mxu0 %v1561
    %1827 = vmatpush1.msra.mxu0 %v1560
    %1828 = vmatprep.subr.mxu0 %v1559
    %1829 = vmatpush1.msra.mxu0 %v1558
    %1830 = vmatprep.subr.mxu0 %v1557
    %1831 = vmatpush1.msra.mxu0 %v1556
    %1832 = vmatprep.subr.mxu0 %v1555
    %1833 = vmatpush1.msra.mxu0 %v1554
    %1834 = vmatprep.subr.mxu0 %v1553
    %1835 = vmatpush1.msra.mxu0 %v1552
    %1836 = vmatprep.subr.mxu0 0.0
    %1837 = vmatpush2.msra.mxu0 0.0
    %1838 = vmatprep.subr.mxu0 0.0
    %1839 = vmatpush2.msra.mxu0 0.0
    %1840 = vmatprep.subr.mxu0 0.0
    %1841 = vmatpush2.msra.mxu0 0.0
    %1842 = vmatprep.subr.mxu0 0.0
    %1843 = vmatpush2.msra.mxu0 0.0
    %1844 = vmatprep.subr.mxu0 0.0
    %1845 = vmatpush2.msra.mxu0 0.0
    %1846 = vmatprep.subr.mxu0 0.0
    %1847 = vmatpush2.msra.mxu0 0.0
    %1848 = vmatprep.subr.mxu0 0.0
    %1849 = vmatpush2.msra.mxu0 0.0
    %1850 = vmatprep.subr.mxu0 0.0
    %1851 = vmatpush2.msra.mxu0 0.0
    %1852 = vmatprep.subr.mxu0 0.0
    %1853 = vmatpush2.msra.mxu0 0.0
    %1854 = vmatprep.subr.mxu0 0.0
    %1855 = vmatpush2.msra.mxu0 0.0
    %1856 = vmatprep.subr.mxu0 0.0
    %1857 = vmatpush2.msra.mxu0 0.0
    %1858 = vmatprep.subr.mxu0 0.0
    %1859 = vmatpush2.msra.mxu0 0.0
    %1860 = vmatprep.subr.mxu0 0.0
    %1861 = vmatpush2.msra.mxu0 0.0
    %1862 = vmatprep.subr.mxu0 0.0
    %1863 = vmatpush2.msra.mxu0 0.0
    %1864 = vmatprep.subr.mxu0 0.0
    %1865 = vmatpush2.msra.mxu0 0.0
    %1866 = vmatprep.subr.mxu0 0.0
    %1867 = vmatpush2.msra.mxu0 0.0
    %1868 = vmatprep.mubr.f32.mxu0 0.0
    %1869 = vmatmul.mubr.f32.gmra.mxu0 %v1802
    %v1870 = vpop.f32.mrf.mxu0
    %v1871 = vadd.f32 0.0, %v1870
    %v1872 = vpop.f32.mrf.mxu0
    %v1873 = vadd.f32 0.0, %v1872
    %1874 = vdwg.mxu0
    %v1876 = vrot.slane %v1653, 2
    %v1878 = vadd.f32 %v1871, %v1876
    %v1879 = vrot.slane %v1661, 4
    %v1881 = vadd.f32 %v1873, %v1879
    %v1882 = vxor.u32 %v1878, 2147483648
    %v1883 = vmul.f32 %v1882, 1.442695
    %v1884 = vpow.pop %v1883
    %v1885 = vadd.f32 %v1884, 1.0
    %v1886 = vrcp.pop %v1885
    %v1887 = vmul.f32 1.0, %v1886
    %v1888 = vtanh.pop %v1878
    %1890 = vrot.lane.b32.xlu0 %v1800, 32
    %v1891 = vpop.permute.xlu0 %1890
    %v1893 = vmul.f32 %v1887, %v1891
    %1895 = vrot.lane.b32.xlu0 %v1888, 64
    %v1896 = vpop.permute.xlu0 %1895
    %v1898 = vmul.f32 %v1887, %v1896
    %1900 = vrot.lane.b32.xlu0 %v1898, 32
    %v1901 = vpop.permute.xlu0 %1900
    %v1903 = vadd.f32 %v1893, %v1901
    %v1904 = vtanh.pop %v1903
    %1906 = vrot.lane.b32.xlu0 %v1904, 64
    %v1907 = vpop.permute.xlu0 %1906
    %v1909 = vmul.f32 %v1887, %v1907
    %v1910 = vxor.u32 %v1881, 2147483648
    %v1911 = vmul.f32 %v1910, 1.442695
    %v1912 = vpow.pop %v1911
    %v1913 = vadd.f32 %v1912, 1.0
    %v1914 = vrcp.pop %v1913
    %v1915 = vmul.f32 1.0, %v1914
    %v1916 = vtanh.pop %v1881
    %v1917 = vmul.f32 %v1915, %v1800
    %1919 = vrot.lane.b32.xlu0 %v1916, 64
    %v1920 = vpop.permute.xlu0 %1919
    %v1922 = vmul.f32 %v1915, %v1920
    %1924 = vrot.lane.b32.xlu0 %v1922, 32
    %v1925 = vpop.permute.xlu0 %1924
    %v1927 = vadd.f32 %v1917, %v1925
    %v1928 = vtanh.pop %v1927
    %1930 = vrot.lane.b32.xlu0 %v1928, 64
    %v1931 = vpop.permute.xlu0 %1930
    %v1933 = vmul.f32 %v1915, %v1931
    %1935 = vrot.lane.b32.xlu0 %v1909, 32
    %v1936 = vpop.permute.xlu0 %1935
    %1939 = vrot.lane.b32.xlu0 %v1933, 64
    %v1940 = vpop.permute.xlu0 %1939
    %v1942 = vsel %vm177, %v1936, %v1940
    %1944 = vrot.lane.b32.xlu0 %v1903, 96
    %v1945 = vpop.permute.xlu0 %1944
    %v1947 = vsel %vm177, %v1945, %v1927
    %v1949 = vsel %vm340, %v1942, 0
    %1951 = vmatprep.subr.mxu0 0.0
    %1952 = vmatpush1.msra.mxu0 0.0
    %1953 = vmatprep.subr.mxu0 0.0
    %1954 = vmatpush1.msra.mxu0 0.0
    %1955 = vmatprep.subr.mxu0 0.0
    %1956 = vmatpush1.msra.mxu0 0.0
    %1957 = vmatprep.subr.mxu0 0.0
    %1958 = vmatpush1.msra.mxu0 0.0
    %1959 = vmatprep.subr.mxu0 0.0
    %1960 = vmatpush1.msra.mxu0 0.0
    %1961 = vmatprep.subr.mxu0 0.0
    %1962 = vmatpush1.msra.mxu0 0.0
    %1963 = vmatprep.subr.mxu0 0.0
    %1964 = vmatpush1.msra.mxu0 0.0
    %1965 = vmatprep.subr.mxu0 0.0
    %1966 = vmatpush1.msra.mxu0 0.0
    %1967 = vmatprep.subr.mxu0 %v1567
    %1968 = vmatpush1.msra.mxu0 %v1566
    %1969 = vmatprep.subr.mxu0 %v1565
    %1970 = vmatpush1.msra.mxu0 %v1564
    %1971 = vmatprep.subr.mxu0 %v1563
    %1972 = vmatpush1.msra.mxu0 %v1562
    %1973 = vmatprep.subr.mxu0 %v1561
    %1974 = vmatpush1.msra.mxu0 %v1560
    %1975 = vmatprep.subr.mxu0 %v1559
    %1976 = vmatpush1.msra.mxu0 %v1558
    %1977 = vmatprep.subr.mxu0 %v1557
    %1978 = vmatpush1.msra.mxu0 %v1556
    %1979 = vmatprep.subr.mxu0 %v1555
    %1980 = vmatpush1.msra.mxu0 %v1554
    %1981 = vmatprep.subr.mxu0 %v1553
    %1982 = vmatpush1.msra.mxu0 %v1552
    %1983 = vmatprep.subr.mxu0 0.0
    %1984 = vmatpush2.msra.mxu0 0.0
    %1985 = vmatprep.subr.mxu0 0.0
    %1986 = vmatpush2.msra.mxu0 0.0
    %1987 = vmatprep.subr.mxu0 0.0
    %1988 = vmatpush2.msra.mxu0 0.0
    %1989 = vmatprep.subr.mxu0 0.0
    %1990 = vmatpush2.msra.mxu0 0.0
    %1991 = vmatprep.subr.mxu0 0.0
    %1992 = vmatpush2.msra.mxu0 0.0
    %1993 = vmatprep.subr.mxu0 0.0
    %1994 = vmatpush2.msra.mxu0 0.0
    %1995 = vmatprep.subr.mxu0 0.0
    %1996 = vmatpush2.msra.mxu0 0.0
    %1997 = vmatprep.subr.mxu0 0.0
    %1998 = vmatpush2.msra.mxu0 0.0
    %1999 = vmatprep.subr.mxu0 0.0
    %2000 = vmatpush2.msra.mxu0 0.0
    %2001 = vmatprep.subr.mxu0 0.0
    %2002 = vmatpush2.msra.mxu0 0.0
    %2003 = vmatprep.subr.mxu0 0.0
    %2004 = vmatpush2.msra.mxu0 0.0
    %2005 = vmatprep.subr.mxu0 0.0
    %2006 = vmatpush2.msra.mxu0 0.0
    %2007 = vmatprep.subr.mxu0 0.0
    %2008 = vmatpush2.msra.mxu0 0.0
    %2009 = vmatprep.subr.mxu0 0.0
    %2010 = vmatpush2.msra.mxu0 0.0
    %2011 = vmatprep.subr.mxu0 0.0
    %2012 = vmatpush2.msra.mxu0 0.0
    %2013 = vmatprep.subr.mxu0 0.0
    %2014 = vmatpush2.msra.mxu0 0.0
    %2015 = vmatprep.mubr.f32.mxu0 0.0
    %2016 = vmatmul.mubr.f32.gmra.mxu0 %v1949
    %v2017 = vpop.f32.mrf.mxu0
    %v2018 = vadd.f32 0.0, %v2017
    %v2019 = vpop.f32.mrf.mxu0
    %v2020 = vadd.f32 0.0, %v2019
    %2021 = vdwg.mxu0
    %v2022 = vrot.slane %v1653, 4
    %v2024 = vadd.f32 %v2018, %v2022
    %v2025 = vrot.slane %v1661, 2
    %v2027 = vadd.f32 %v2020, %v2025
    %v2028 = vxor.u32 %v2024, 2147483648
    %v2029 = vmul.f32 %v2028, 1.442695
    %v2030 = vpow.pop %v2029
    %v2031 = vadd.f32 %v2030, 1.0
    %v2032 = vrcp.pop %v2031
    %v2033 = vmul.f32 1.0, %v2032
    %v2034 = vtanh.pop %v2024
    %2036 = vrot.lane.b32.xlu0 %v1947, 32
    %v2037 = vpop.permute.xlu0 %2036
    %v2039 = vmul.f32 %v2033, %v2037
    %2041 = vrot.lane.b32.xlu0 %v2034, 64
    %v2042 = vpop.permute.xlu0 %2041
    %v2044 = vmul.f32 %v2033, %v2042
    %2046 = vrot.lane.b32.xlu0 %v2044, 32
    %v2047 = vpop.permute.xlu0 %2046
    %v2049 = vadd.f32 %v2039, %v2047
    %v2050 = vtanh.pop %v2049
    %2052 = vrot.lane.b32.xlu0 %v2050, 64
    %v2053 = vpop.permute.xlu0 %2052
    %v2055 = vmul.f32 %v2033, %v2053
    %v2056 = vxor.u32 %v2027, 2147483648
    %v2057 = vmul.f32 %v2056, 1.442695
    %v2058 = vpow.pop %v2057
    %v2059 = vadd.f32 %v2058, 1.0
    %v2060 = vrcp.pop %v2059
    %v2061 = vmul.f32 1.0, %v2060
    %v2062 = vtanh.pop %v2027
    %v2063 = vmul.f32 %v2061, %v1947
    %2065 = vrot.lane.b32.xlu0 %v2062, 64
    %v2066 = vpop.permute.xlu0 %2065
    %v2068 = vmul.f32 %v2061, %v2066
    %2070 = vrot.lane.b32.xlu0 %v2068, 32
    %v2071 = vpop.permute.xlu0 %2070
    %v2073 = vadd.f32 %v2063, %v2071
    %v2074 = vtanh.pop %v2073
    %2076 = vrot.lane.b32.xlu0 %v2074, 64
    %v2077 = vpop.permute.xlu0 %2076
    %v2079 = vmul.f32 %v2061, %v2077
    %2081 = vrot.lane.b32.xlu0 %v2055, 32
    %v2082 = vpop.permute.xlu0 %2081
    %2085 = vrot.lane.b32.xlu0 %v2079, 64
    %v2086 = vpop.permute.xlu0 %2085
    %v2088 = vsel %vm177, %v2082, %v2086
    %2090 = vrot.lane.b32.xlu0 %v2049, 96
    %v2091 = vpop.permute.xlu0 %2090
    %v2093 = vsel %vm177, %v2091, %v2073
    %v2095 = vsel %vm340, %v2088, 0
    %2097 = vmatprep.subr.mxu0 0.0
    %2098 = vmatpush1.msra.mxu0 0.0
    %2099 = vmatprep.subr.mxu0 0.0
    %2100 = vmatpush1.msra.mxu0 0.0
    %2101 = vmatprep.subr.mxu0 0.0
    %2102 = vmatpush1.msra.mxu0 0.0
    %2103 = vmatprep.subr.mxu0 0.0
    %2104 = vmatpush1.msra.mxu0 0.0
    %2105 = vmatprep.subr.mxu0 0.0
    %2106 = vmatpush1.msra.mxu0 0.0
    %2107 = vmatprep.subr.mxu0 0.0
    %2108 = vmatpush1.msra.mxu0 0.0
    %2109 = vmatprep.subr.mxu0 0.0
    %2110 = vmatpush1.msra.mxu0 0.0
    %2111 = vmatprep.subr.mxu0 0.0
    %2112 = vmatpush1.msra.mxu0 0.0
    %2113 = vmatprep.subr.mxu0 %v1567
    %2114 = vmatpush1.msra.mxu0 %v1566
    %2115 = vmatprep.subr.mxu0 %v1565
    %2116 = vmatpush1.msra.mxu0 %v1564
    %2117 = vmatprep.subr.mxu0 %v1563
    %2118 = vmatpush1.msra.mxu0 %v1562
    %2119 = vmatprep.subr.mxu0 %v1561
    %2120 = vmatpush1.msra.mxu0 %v1560
    %2121 = vmatprep.subr.mxu0 %v1559
    %2122 = vmatpush1.msra.mxu0 %v1558
    %2123 = vmatprep.subr.mxu0 %v1557
    %2124 = vmatpush1.msra.mxu0 %v1556
    %2125 = vmatprep.subr.mxu0 %v1555
    %2126 = vmatpush1.msra.mxu0 %v1554
    %2127 = vmatprep.subr.mxu0 %v1553
    %2128 = vmatpush1.msra.mxu0 %v1552
    %2129 = vmatprep.subr.mxu0 0.0
    %2130 = vmatpush2.msra.mxu0 0.0
    %2131 = vmatprep.subr.mxu0 0.0
    %2132 = vmatpush2.msra.mxu0 0.0
    %2133 = vmatprep.subr.mxu0 0.0
    %2134 = vmatpush2.msra.mxu0 0.0
    %2135 = vmatprep.subr.mxu0 0.0
    %2136 = vmatpush2.msra.mxu0 0.0
    %2137 = vmatprep.subr.mxu0 0.0
    %2138 = vmatpush2.msra.mxu0 0.0
    %2139 = vmatprep.subr.mxu0 0.0
    %2140 = vmatpush2.msra.mxu0 0.0
    %2141 = vmatprep.subr.mxu0 0.0
    %2142 = vmatpush2.msra.mxu0 0.0
    %2143 = vmatprep.subr.mxu0 0.0
    %2144 = vmatpush2.msra.mxu0 0.0
    %2145 = vmatprep.subr.mxu0 0.0
    %2146 = vmatpush2.msra.mxu0 0.0
    %2147 = vmatprep.subr.mxu0 0.0
    %2148 = vmatpush2.msra.mxu0 0.0
    %2149 = vmatprep.subr.mxu0 0.0
    %2150 = vmatpush2.msra.mxu0 0.0
    %2151 = vmatprep.subr.mxu0 0.0
    %2152 = vmatpush2.msra.mxu0 0.0
    %2153 = vmatprep.subr.mxu0 0.0
    %2154 = vmatpush2.msra.mxu0 0.0
    %2155 = vmatprep.subr.mxu0 0.0
    %2156 = vmatpush2.msra.mxu0 0.0
    %2157 = vmatprep.subr.mxu0 0.0
    %2158 = vmatpush2.msra.mxu0 0.0
    %2159 = vmatprep.subr.mxu0 0.0
    %2160 = vmatpush2.msra.mxu0 0.0
    %2161 = vmatprep.mubr.f32.mxu0 0.0
    %2162 = vmatmul.mubr.f32.gmra.mxu0 %v2095
    %v2163 = vpop.f32.mrf.mxu0
    %v2164 = vadd.f32 0.0, %v2163
    %v2165 = vpop.f32.mrf.mxu0
    %v2166 = vadd.f32 0.0, %v2165
    %2167 = vdwg.mxu0
    %v2168 = vrot.slane %v1653, 6
    %v2170 = vadd.f32 %v2164, %v2168
    %v2171 = vadd.f32 %v2166, %v1661
    %v2172 = vxor.u32 %v2170, 2147483648
    %v2173 = vmul.f32 %v2172, 1.442695
    %v2174 = vpow.pop %v2173
    %v2175 = vadd.f32 %v2174, 1.0
    %v2176 = vrcp.pop %v2175
    %v2177 = vmul.f32 1.0, %v2176
    %v2178 = vtanh.pop %v2170
    %2180 = vrot.lane.b32.xlu0 %v2093, 32
    %v2181 = vpop.permute.xlu0 %2180
    %v2183 = vmul.f32 %v2177, %v2181
    %2185 = vrot.lane.b32.xlu0 %v2178, 64
    %v2186 = vpop.permute.xlu0 %2185
    %v2188 = vmul.f32 %v2177, %v2186
    %2190 = vrot.lane.b32.xlu0 %v2188, 32
    %v2191 = vpop.permute.xlu0 %2190
    %v2193 = vadd.f32 %v2183, %v2191
    %v2194 = vtanh.pop %v2193
    %2196 = vrot.lane.b32.xlu0 %v2194, 64
    %v2197 = vpop.permute.xlu0 %2196
    %v2199 = vmul.f32 %v2177, %v2197
    %v2200 = vxor.u32 %v2171, 2147483648
    %v2201 = vmul.f32 %v2200, 1.442695
    %v2202 = vpow.pop %v2201
    %v2203 = vadd.f32 %v2202, 1.0
    %v2204 = vrcp.pop %v2203
    %v2205 = vmul.f32 1.0, %v2204
    %v2206 = vtanh.pop %v2171
    %v2207 = vmul.f32 %v2205, %v2093
    %2209 = vrot.lane.b32.xlu0 %v2206, 64
    %v2210 = vpop.permute.xlu0 %2209
    %v2212 = vmul.f32 %v2205, %v2210
    %2214 = vrot.lane.b32.xlu0 %v2212, 32
    %v2215 = vpop.permute.xlu0 %2214
    %v2217 = vadd.f32 %v2207, %v2215
    %v2218 = vtanh.pop %v2217
    %2220 = vrot.lane.b32.xlu0 %v2218, 64
    %v2221 = vpop.permute.xlu0 %2220
    %v2223 = vmul.f32 %v2205, %v2221
    %2225 = vrot.lane.b32.xlu0 %v2199, 32
    %v2226 = vpop.permute.xlu0 %2225
    %2229 = vrot.lane.b32.xlu0 %v2223, 64
    %v2230 = vpop.permute.xlu0 %2229
    %v2232 = vsel %vm177, %v2226, %v2230
    %2234 = vrot.lane.b32.xlu0 %v2193, 96
    %v2235 = vpop.permute.xlu0 %2234
    %v2237 = vsel %vm177, %v2235, %v2217
    %v2239 = vsel %vm340, %v2232, 0
    %2241 = vmatprep.subr.mxu0 0.0
    %2242 = vmatpush1.msra.mxu0 0.0
    %2243 = vmatprep.subr.mxu0 0.0
    %2244 = vmatpush1.msra.mxu0 0.0
    %2245 = vmatprep.subr.mxu0 0.0
    %2246 = vmatpush1.msra.mxu0 0.0
    %2247 = vmatprep.subr.mxu0 0.0
    %2248 = vmatpush1.msra.mxu0 0.0
    %2249 = vmatprep.subr.mxu0 0.0
    %2250 = vmatpush1.msra.mxu0 0.0
    %2251 = vmatprep.subr.mxu0 0.0
    %2252 = vmatpush1.msra.mxu0 0.0
    %2253 = vmatprep.subr.mxu0 0.0
    %2254 = vmatpush1.msra.mxu0 0.0
    %2255 = vmatprep.subr.mxu0 0.0
    %2256 = vmatpush1.msra.mxu0 0.0
    %2257 = vmatprep.subr.mxu0 %v1567
    %2258 = vmatpush1.msra.mxu0 %v1566
    %2259 = vmatprep.subr.mxu0 %v1565
    %2260 = vmatpush1.msra.mxu0 %v1564
    %2261 = vmatprep.subr.mxu0 %v1563
    %2262 = vmatpush1.msra.mxu0 %v1562
    %2263 = vmatprep.subr.mxu0 %v1561
    %2264 = vmatpush1.msra.mxu0 %v1560
    %2265 = vmatprep.subr.mxu0 %v1559
    %2266 = vmatpush1.msra.mxu0 %v1558
    %2267 = vmatprep.subr.mxu0 %v1557
    %2268 = vmatpush1.msra.mxu0 %v1556
    %2269 = vmatprep.subr.mxu0 %v1555
    %2270 = vmatpush1.msra.mxu0 %v1554
    %2271 = vmatprep.subr.mxu0 %v1553
    %2272 = vmatpush1.msra.mxu0 %v1552
    %2273 = vmatprep.subr.mxu0 0.0
    %2274 = vmatpush2.msra.mxu0 0.0
    %2275 = vmatprep.subr.mxu0 0.0
    %2276 = vmatpush2.msra.mxu0 0.0
    %2277 = vmatprep.subr.mxu0 0.0
    %2278 = vmatpush2.msra.mxu0 0.0
    %2279 = vmatprep.subr.mxu0 0.0
    %2280 = vmatpush2.msra.mxu0 0.0
    %2281 = vmatprep.subr.mxu0 0.0
    %2282 = vmatpush2.msra.mxu0 0.0
    %2283 = vmatprep.subr.mxu0 0.0
    %2284 = vmatpush2.msra.mxu0 0.0
    %2285 = vmatprep.subr.mxu0 0.0
    %2286 = vmatpush2.msra.mxu0 0.0
    %2287 = vmatprep.subr.mxu0 0.0
    %2288 = vmatpush2.msra.mxu0 0.0
    %2289 = vmatprep.subr.mxu0 0.0
    %2290 = vmatpush2.msra.mxu0 0.0
    %2291 = vmatprep.subr.mxu0 0.0
    %2292 = vmatpush2.msra.mxu0 0.0
    %2293 = vmatprep.subr.mxu0 0.0
    %2294 = vmatpush2.msra.mxu0 0.0
    %2295 = vmatprep.subr.mxu0 0.0
    %2296 = vmatpush2.msra.mxu0 0.0
    %2297 = vmatprep.subr.mxu0 0.0
    %2298 = vmatpush2.msra.mxu0 0.0
    %2299 = vmatprep.subr.mxu0 0.0
    %2300 = vmatpush2.msra.mxu0 0.0
    %2301 = vmatprep.subr.mxu0 0.0
    %2302 = vmatpush2.msra.mxu0 0.0
    %2303 = vmatprep.subr.mxu0 0.0
    %2304 = vmatpush2.msra.mxu0 0.0
    %2305 = vmatprep.mubr.f32.mxu0 0.0
    %2306 = vmatmul.mubr.f32.gmra.mxu0 %v2239
    %v2307 = vpop.f32.mrf.mxu0
    %v2308 = vadd.f32 0.0, %v2307
    %v2309 = vpop.f32.mrf.mxu0
    %v2310 = vadd.f32 0.0, %v2309
    %2311 = vdwg.mxu0
    %v2312 = vadd.f32 %v2308, %v1659
    %v2314 = vrot.slane %v1655, 6
    %v2316 = vadd.f32 %v2310, %v2314
    %v2317 = vxor.u32 %v2312, 2147483648
    %v2318 = vmul.f32 %v2317, 1.442695
    %v2319 = vpow.pop %v2318
    %v2320 = vadd.f32 %v2319, 1.0
    %v2321 = vrcp.pop %v2320
    %v2322 = vmul.f32 1.0, %v2321
    %v2323 = vtanh.pop %v2312
    %2325 = vrot.lane.b32.xlu0 %v2237, 32
    %v2326 = vpop.permute.xlu0 %2325
    %v2328 = vmul.f32 %v2322, %v2326
    %2330 = vrot.lane.b32.xlu0 %v2323, 64
    %v2331 = vpop.permute.xlu0 %2330
    %v2333 = vmul.f32 %v2322, %v2331
    %2335 = vrot.lane.b32.xlu0 %v2333, 32
    %v2336 = vpop.permute.xlu0 %2335
    %v2338 = vadd.f32 %v2328, %v2336
    %v2339 = vtanh.pop %v2338
    %2341 = vrot.lane.b32.xlu0 %v2339, 64
    %v2342 = vpop.permute.xlu0 %2341
    %v2344 = vmul.f32 %v2322, %v2342
    %v2345 = vxor.u32 %v2316, 2147483648
    %v2346 = vmul.f32 %v2345, 1.442695
    %v2347 = vpow.pop %v2346
    %v2348 = vadd.f32 %v2347, 1.0
    %v2349 = vrcp.pop %v2348
    %v2350 = vmul.f32 1.0, %v2349
    %v2351 = vtanh.pop %v2316
    %v2352 = vmul.f32 %v2350, %v2237
    %2354 = vrot.lane.b32.xlu0 %v2351, 64
    %v2355 = vpop.permute.xlu0 %2354
    %v2357 = vmul.f32 %v2350, %v2355
    %2359 = vrot.lane.b32.xlu0 %v2357, 32
    %v2360 = vpop.permute.xlu0 %2359
    %v2362 = vadd.f32 %v2352, %v2360
    %v2363 = vtanh.pop %v2362
    %2365 = vrot.lane.b32.xlu0 %v2363, 64
    %v2366 = vpop.permute.xlu0 %2365
    %v2368 = vmul.f32 %v2350, %v2366
    %2370 = vrot.lane.b32.xlu0 %v2344, 32
    %v2371 = vpop.permute.xlu0 %2370
    %2374 = vrot.lane.b32.xlu0 %v2368, 64
    %v2375 = vpop.permute.xlu0 %2374
    %v2377 = vsel %vm177, %v2371, %v2375
    %2379 = vrot.lane.b32.xlu0 %v2338, 96
    %v2380 = vpop.permute.xlu0 %2379
    %v2382 = vsel %vm177, %v2380, %v2362
    %v2384 = vsel %vm340, %v2377, 0
    %2386 = vmatprep.subr.mxu0 0.0
    %2387 = vmatpush1.msra.mxu0 0.0
    %2388 = vmatprep.subr.mxu0 0.0
    %2389 = vmatpush1.msra.mxu0 0.0
    %2390 = vmatprep.subr.mxu0 0.0
    %2391 = vmatpush1.msra.mxu0 0.0
    %2392 = vmatprep.subr.mxu0 0.0
    %2393 = vmatpush1.msra.mxu0 0.0
    %2394 = vmatprep.subr.mxu0 0.0
    %2395 = vmatpush1.msra.mxu0 0.0
    %2396 = vmatprep.subr.mxu0 0.0
    %2397 = vmatpush1.msra.mxu0 0.0
    %2398 = vmatprep.subr.mxu0 0.0
    %2399 = vmatpush1.msra.mxu0 0.0
    %2400 = vmatprep.subr.mxu0 0.0
    %2401 = vmatpush1.msra.mxu0 0.0
    %2402 = vmatprep.subr.mxu0 %v1567
    %2403 = vmatpush1.msra.mxu0 %v1566
    %2404 = vmatprep.subr.mxu0 %v1565
    %2405 = vmatpush1.msra.mxu0 %v1564
    %2406 = vmatprep.subr.mxu0 %v1563
    %2407 = vmatpush1.msra.mxu0 %v1562
    %2408 = vmatprep.subr.mxu0 %v1561
    %2409 = vmatpush1.msra.mxu0 %v1560
    %2410 = vmatprep.subr.mxu0 %v1559
    %2411 = vmatpush1.msra.mxu0 %v1558
    %2412 = vmatprep.subr.mxu0 %v1557
    %2413 = vmatpush1.msra.mxu0 %v1556
    %2414 = vmatprep.subr.mxu0 %v1555
    %2415 = vmatpush1.msra.mxu0 %v1554
    %2416 = vmatprep.subr.mxu0 %v1553
    %2417 = vmatpush1.msra.mxu0 %v1552
    %2418 = vmatprep.subr.mxu0 0.0
    %2419 = vmatpush2.msra.mxu0 0.0
    %2420 = vmatprep.subr.mxu0 0.0
    %2421 = vmatpush2.msra.mxu0 0.0
    %2422 = vmatprep.subr.mxu0 0.0
    %2423 = vmatpush2.msra.mxu0 0.0
    %2424 = vmatprep.subr.mxu0 0.0
    %2425 = vmatpush2.msra.mxu0 0.0
    %2426 = vmatprep.subr.mxu0 0.0
    %2427 = vmatpush2.msra.mxu0 0.0
    %2428 = vmatprep.subr.mxu0 0.0
    %2429 = vmatpush2.msra.mxu0 0.0
    %2430 = vmatprep.subr.mxu0 0.0
    %2431 = vmatpush2.msra.mxu0 0.0
    %2432 = vmatprep.subr.mxu0 0.0
    %2433 = vmatpush2.msra.mxu0 0.0
    %2434 = vmatprep.subr.mxu0 0.0
    %2435 = vmatpush2.msra.mxu0 0.0
    %2436 = vmatprep.subr.mxu0 0.0
    %2437 = vmatpush2.msra.mxu0 0.0
    %2438 = vmatprep.subr.mxu0 0.0
    %2439 = vmatpush2.msra.mxu0 0.0
    %2440 = vmatprep.subr.mxu0 0.0
    %2441 = vmatpush2.msra.mxu0 0.0
    %2442 = vmatprep.subr.mxu0 0.0
    %2443 = vmatpush2.msra.mxu0 0.0
    %2444 = vmatprep.subr.mxu0 0.0
    %2445 = vmatpush2.msra.mxu0 0.0
    %2446 = vmatprep.subr.mxu0 0.0
    %2447 = vmatpush2.msra.mxu0 0.0
    %2448 = vmatprep.subr.mxu0 0.0
    %2449 = vmatpush2.msra.mxu0 0.0
    %2450 = vmatprep.mubr.f32.mxu0 0.0
    %2451 = vmatmul.mubr.f32.gmra.mxu0 %v2384
    %v2452 = vpop.f32.mrf.mxu0
    %v2453 = vadd.f32 0.0, %v2452
    %v2454 = vpop.f32.mrf.mxu0
    %v2455 = vadd.f32 0.0, %v2454
    %2456 = vdwg.mxu0
    %v2458 = vrot.slane %v1659, 2
    %v2460 = vadd.f32 %v2453, %v2458
    %v2461 = vrot.slane %v1655, 4
    %v2463 = vadd.f32 %v2455, %v2461
    %v2464 = vxor.u32 %v2460, 2147483648
    %v2465 = vmul.f32 %v2464, 1.442695
    %v2466 = vpow.pop %v2465
    %v2467 = vadd.f32 %v2466, 1.0
    %v2468 = vrcp.pop %v2467
    %v2469 = vmul.f32 1.0, %v2468
    %v2470 = vtanh.pop %v2460
    %2472 = vrot.lane.b32.xlu0 %v2382, 32
    %v2473 = vpop.permute.xlu0 %2472
    %v2475 = vmul.f32 %v2469, %v2473
    %2477 = vrot.lane.b32.xlu0 %v2470, 64
    %v2478 = vpop.permute.xlu0 %2477
    %v2480 = vmul.f32 %v2469, %v2478
    %2482 = vrot.lane.b32.xlu0 %v2480, 32
    %v2483 = vpop.permute.xlu0 %2482
    %v2485 = vadd.f32 %v2475, %v2483
    %v2486 = vtanh.pop %v2485
    %2488 = vrot.lane.b32.xlu0 %v2486, 64
    %v2489 = vpop.permute.xlu0 %2488
    %v2491 = vmul.f32 %v2469, %v2489
    %v2492 = vxor.u32 %v2463, 2147483648
    %v2493 = vmul.f32 %v2492, 1.442695
    %v2494 = vpow.pop %v2493
    %v2495 = vadd.f32 %v2494, 1.0
    %v2496 = vrcp.pop %v2495
    %v2497 = vmul.f32 1.0, %v2496
    %v2498 = vtanh.pop %v2463
    %v2499 = vmul.f32 %v2497, %v2382
    %2501 = vrot.lane.b32.xlu0 %v2498, 64
    %v2502 = vpop.permute.xlu0 %2501
    %v2504 = vmul.f32 %v2497, %v2502
    %2506 = vrot.lane.b32.xlu0 %v2504, 32
    %v2507 = vpop.permute.xlu0 %2506
    %v2509 = vadd.f32 %v2499, %v2507
    %v2510 = vtanh.pop %v2509
    %2512 = vrot.lane.b32.xlu0 %v2510, 64
    %v2513 = vpop.permute.xlu0 %2512
    %v2515 = vmul.f32 %v2497, %v2513
    %2517 = vrot.lane.b32.xlu0 %v2491, 32
    %v2518 = vpop.permute.xlu0 %2517
    %2521 = vrot.lane.b32.xlu0 %v2515, 64
    %v2522 = vpop.permute.xlu0 %2521
    %v2524 = vsel %vm177, %v2518, %v2522
    %2526 = vrot.lane.b32.xlu0 %v2485, 96
    %v2527 = vpop.permute.xlu0 %2526
    %v2529 = vsel %vm177, %v2527, %v2509
    %v2531 = vsel %vm340, %v2524, 0
    %2533 = vmatprep.subr.mxu0 0.0
    %2534 = vmatpush1.msra.mxu0 0.0
    %2535 = vmatprep.subr.mxu0 0.0
    %2536 = vmatpush1.msra.mxu0 0.0
    %2537 = vmatprep.subr.mxu0 0.0
    %2538 = vmatpush1.msra.mxu0 0.0
    %2539 = vmatprep.subr.mxu0 0.0
    %2540 = vmatpush1.msra.mxu0 0.0
    %2541 = vmatprep.subr.mxu0 0.0
    %2542 = vmatpush1.msra.mxu0 0.0
    %2543 = vmatprep.subr.mxu0 0.0
    %2544 = vmatpush1.msra.mxu0 0.0
    %2545 = vmatprep.subr.mxu0 0.0
    %2546 = vmatpush1.msra.mxu0 0.0
    %2547 = vmatprep.subr.mxu0 0.0
    %2548 = vmatpush1.msra.mxu0 0.0
    %2549 = vmatprep.subr.mxu0 %v1567
    %2550 = vmatpush1.msra.mxu0 %v1566
    %2551 = vmatprep.subr.mxu0 %v1565
    %2552 = vmatpush1.msra.mxu0 %v1564
    %2553 = vmatprep.subr.mxu0 %v1563
    %2554 = vmatpush1.msra.mxu0 %v1562
    %2555 = vmatprep.subr.mxu0 %v1561
    %2556 = vmatpush1.msra.mxu0 %v1560
    %2557 = vmatprep.subr.mxu0 %v1559
    %2558 = vmatpush1.msra.mxu0 %v1558
    %2559 = vmatprep.subr.mxu0 %v1557
    %2560 = vmatpush1.msra.mxu0 %v1556
    %2561 = vmatprep.subr.mxu0 %v1555
    %2562 = vmatpush1.msra.mxu0 %v1554
    %2563 = vmatprep.subr.mxu0 %v1553
    %2564 = vmatpush1.msra.mxu0 %v1552
    %2565 = vmatprep.subr.mxu0 0.0
    %2566 = vmatpush2.msra.mxu0 0.0
    %2567 = vmatprep.subr.mxu0 0.0
    %2568 = vmatpush2.msra.mxu0 0.0
    %2569 = vmatprep.subr.mxu0 0.0
    %2570 = vmatpush2.msra.mxu0 0.0
    %2571 = vmatprep.subr.mxu0 0.0
    %2572 = vmatpush2.msra.mxu0 0.0
    %2573 = vmatprep.subr.mxu0 0.0
    %2574 = vmatpush2.msra.mxu0 0.0
    %2575 = vmatprep.subr.mxu0 0.0
    %2576 = vmatpush2.msra.mxu0 0.0
    %2577 = vmatprep.subr.mxu0 0.0
    %2578 = vmatpush2.msra.mxu0 0.0
    %2579 = vmatprep.subr.mxu0 0.0
    %2580 = vmatpush2.msra.mxu0 0.0
    %2581 = vmatprep.subr.mxu0 0.0
    %2582 = vmatpush2.msra.mxu0 0.0
    %2583 = vmatprep.subr.mxu0 0.0
    %2584 = vmatpush2.msra.mxu0 0.0
    %2585 = vmatprep.subr.mxu0 0.0
    %2586 = vmatpush2.msra.mxu0 0.0
    %2587 = vmatprep.subr.mxu0 0.0
    %2588 = vmatpush2.msra.mxu0 0.0
    %2589 = vmatprep.subr.mxu0 0.0
    %2590 = vmatpush2.msra.mxu0 0.0
    %2591 = vmatprep.subr.mxu0 0.0
    %2592 = vmatpush2.msra.mxu0 0.0
    %2593 = vmatprep.subr.mxu0 0.0
    %2594 = vmatpush2.msra.mxu0 0.0
    %2595 = vmatprep.subr.mxu0 0.0
    %2596 = vmatpush2.msra.mxu0 0.0
    %2597 = vmatprep.mubr.f32.mxu0 0.0
    %2598 = vmatmul.mubr.f32.gmra.mxu0 %v2531
    %v2599 = vpop.f32.mrf.mxu0
    %v2600 = vadd.f32 0.0, %v2599
    %v2601 = vpop.f32.mrf.mxu0
    %v2602 = vadd.f32 0.0, %v2601
    %2603 = vdwg.mxu0
    %v2604 = vrot.slane %v1659, 4
    %v2606 = vadd.f32 %v2600, %v2604
    %v2607 = vrot.slane %v1655, 2
    %v2609 = vadd.f32 %v2602, %v2607
    %v2610 = vxor.u32 %v2606, 2147483648
    %v2611 = vmul.f32 %v2610, 1.442695
    %v2612 = vpow.pop %v2611
    %v2613 = vadd.f32 %v2612, 1.0
    %v2614 = vrcp.pop %v2613
    %v2615 = vmul.f32 1.0, %v2614
    %v2616 = vtanh.pop %v2606
    %2618 = vrot.lane.b32.xlu0 %v2529, 32
    %v2619 = vpop.permute.xlu0 %2618
    %v2621 = vmul.f32 %v2615, %v2619
    %2623 = vrot.lane.b32.xlu0 %v2616, 64
    %v2624 = vpop.permute.xlu0 %2623
    %v2626 = vmul.f32 %v2615, %v2624
    %2628 = vrot.lane.b32.xlu0 %v2626, 32
    %v2629 = vpop.permute.xlu0 %2628
    %v2631 = vadd.f32 %v2621, %v2629
    %v2632 = vtanh.pop %v2631
    %2634 = vrot.lane.b32.xlu0 %v2632, 64
    %v2635 = vpop.permute.xlu0 %2634
    %v2637 = vmul.f32 %v2615, %v2635
    %v2638 = vxor.u32 %v2609, 2147483648
    %v2639 = vmul.f32 %v2638, 1.442695
    %v2640 = vpow.pop %v2639
    %v2641 = vadd.f32 %v2640, 1.0
    %v2642 = vrcp.pop %v2641
    %v2643 = vmul.f32 1.0, %v2642
    %v2644 = vtanh.pop %v2609
    %v2645 = vmul.f32 %v2643, %v2529
    %2647 = vrot.lane.b32.xlu0 %v2644, 64
    %v2648 = vpop.permute.xlu0 %2647
    %v2650 = vmul.f32 %v2643, %v2648
    %2652 = vrot.lane.b32.xlu0 %v2650, 32
    %v2653 = vpop.permute.xlu0 %2652
    %v2655 = vadd.f32 %v2645, %v2653
    %v2656 = vtanh.pop %v2655
    %2658 = vrot.lane.b32.xlu0 %v2656, 64
    %v2659 = vpop.permute.xlu0 %2658
    %v2661 = vmul.f32 %v2643, %v2659
    %2663 = vrot.lane.b32.xlu0 %v2637, 32
    %v2664 = vpop.permute.xlu0 %2663
    %2667 = vrot.lane.b32.xlu0 %v2661, 64
    %v2668 = vpop.permute.xlu0 %2667
    %v2670 = vsel %vm177, %v2664, %v2668
    %2672 = vrot.lane.b32.xlu0 %v2631, 96
    %v2673 = vpop.permute.xlu0 %2672
    %v2675 = vsel %vm177, %v2673, %v2655
    %v2677 = vsel %vm340, %v2670, 0
    %2679 = vmatprep.subr.mxu0 0.0
    %2680 = vmatpush1.msra.mxu0 0.0
    %2681 = vmatprep.subr.mxu0 0.0
    %2682 = vmatpush1.msra.mxu0 0.0
    %2683 = vmatprep.subr.mxu0 0.0
    %2684 = vmatpush1.msra.mxu0 0.0
    %2685 = vmatprep.subr.mxu0 0.0
    %2686 = vmatpush1.msra.mxu0 0.0
    %2687 = vmatprep.subr.mxu0 0.0
    %2688 = vmatpush1.msra.mxu0 0.0
    %2689 = vmatprep.subr.mxu0 0.0
    %2690 = vmatpush1.msra.mxu0 0.0
    %2691 = vmatprep.subr.mxu0 0.0
    %2692 = vmatpush1.msra.mxu0 0.0
    %2693 = vmatprep.subr.mxu0 0.0
    %2694 = vmatpush1.msra.mxu0 0.0
    %2695 = vmatprep.subr.mxu0 %v1567
    %2696 = vmatpush1.msra.mxu0 %v1566
    %2697 = vmatprep.subr.mxu0 %v1565
    %2698 = vmatpush1.msra.mxu0 %v1564
    %2699 = vmatprep.subr.mxu0 %v1563
    %2700 = vmatpush1.msra.mxu0 %v1562
    %2701 = vmatprep.subr.mxu0 %v1561
    %2702 = vmatpush1.msra.mxu0 %v1560
    %2703 = vmatprep.subr.mxu0 %v1559
    %2704 = vmatpush1.msra.mxu0 %v1558
    %2705 = vmatprep.subr.mxu0 %v1557
    %2706 = vmatpush1.msra.mxu0 %v1556
    %2707 = vmatprep.subr.mxu0 %v1555
    %2708 = vmatpush1.msra.mxu0 %v1554
    %2709 = vmatprep.subr.mxu0 %v1553
    %2710 = vmatpush1.msra.mxu0 %v1552
    %2711 = vmatprep.subr.mxu0 0.0
    %2712 = vmatpush2.msra.mxu0 0.0
    %2713 = vmatprep.subr.mxu0 0.0
    %2714 = vmatpush2.msra.mxu0 0.0
    %2715 = vmatprep.subr.mxu0 0.0
    %2716 = vmatpush2.msra.mxu0 0.0
    %2717 = vmatprep.subr.mxu0 0.0
    %2718 = vmatpush2.msra.mxu0 0.0
    %2719 = vmatprep.subr.mxu0 0.0
    %2720 = vmatpush2.msra.mxu0 0.0
    %2721 = vmatprep.subr.mxu0 0.0
    %2722 = vmatpush2.msra.mxu0 0.0
    %2723 = vmatprep.subr.mxu0 0.0
    %2724 = vmatpush2.msra.mxu0 0.0
    %2725 = vmatprep.subr.mxu0 0.0
    %2726 = vmatpush2.msra.mxu0 0.0
    %2727 = vmatprep.subr.mxu0 0.0
    %2728 = vmatpush2.msra.mxu0 0.0
    %2729 = vmatprep.subr.mxu0 0.0
    %2730 = vmatpush2.msra.mxu0 0.0
    %2731 = vmatprep.subr.mxu0 0.0
    %2732 = vmatpush2.msra.mxu0 0.0
    %2733 = vmatprep.subr.mxu0 0.0
    %2734 = vmatpush2.msra.mxu0 0.0
    %2735 = vmatprep.subr.mxu0 0.0
    %2736 = vmatpush2.msra.mxu0 0.0
    %2737 = vmatprep.subr.mxu0 0.0
    %2738 = vmatpush2.msra.mxu0 0.0
    %2739 = vmatprep.subr.mxu0 0.0
    %2740 = vmatpush2.msra.mxu0 0.0
    %2741 = vmatprep.subr.mxu0 0.0
    %2742 = vmatpush2.msra.mxu0 0.0
    %2743 = vmatprep.mubr.f32.mxu0 0.0
    %2744 = vmatmul.mubr.f32.gmra.mxu0 %v2677
    %v2745 = vpop.f32.mrf.mxu0
    %v2746 = vadd.f32 0.0, %v2745
    %v2747 = vpop.f32.mrf.mxu0
    %v2748 = vadd.f32 0.0, %v2747
    %2749 = vdwg.mxu0
    %v2750 = vrot.slane %v1659, 6
    %v2752 = vadd.f32 %v2746, %v2750
    %v2753 = vadd.f32 %v2748, %v1655
    %v2754 = vxor.u32 %v2752, 2147483648
    %v2755 = vmul.f32 %v2754, 1.442695
    %v2756 = vpow.pop %v2755
    %v2757 = vadd.f32 %v2756, 1.0
    %v2758 = vrcp.pop %v2757
    %v2759 = vmul.f32 1.0, %v2758
    %v2760 = vtanh.pop %v2752
    %2762 = vrot.lane.b32.xlu0 %v2675, 32
    %v2763 = vpop.permute.xlu0 %2762
    %v2765 = vmul.f32 %v2759, %v2763
    %2767 = vrot.lane.b32.xlu0 %v2760, 64
    %v2768 = vpop.permute.xlu0 %2767
    %v2770 = vmul.f32 %v2759, %v2768
    %2772 = vrot.lane.b32.xlu0 %v2770, 32
    %v2773 = vpop.permute.xlu0 %2772
    %v2775 = vadd.f32 %v2765, %v2773
    %v2776 = vtanh.pop %v2775
    %2778 = vrot.lane.b32.xlu0 %v2776, 64
    %v2779 = vpop.permute.xlu0 %2778
    %v2781 = vmul.f32 %v2759, %v2779
    %v2782 = vxor.u32 %v2753, 2147483648
    %v2783 = vmul.f32 %v2782, 1.442695
    %v2784 = vpow.pop %v2783
    %v2785 = vadd.f32 %v2784, 1.0
    %v2786 = vrcp.pop %v2785
    %v2787 = vmul.f32 1.0, %v2786
    %v2788 = vtanh.pop %v2753
    %v2789 = vmul.f32 %v2787, %v2675
    %2791 = vrot.lane.b32.xlu0 %v2788, 64
    %v2792 = vpop.permute.xlu0 %2791
    %v2794 = vmul.f32 %v2787, %v2792
    %2796 = vrot.lane.b32.xlu0 %v2794, 32
    %v2797 = vpop.permute.xlu0 %2796
    %v2799 = vadd.f32 %v2789, %v2797
    %v2800 = vtanh.pop %v2799
    %2802 = vrot.lane.b32.xlu0 %v2800, 64
    %v2803 = vpop.permute.xlu0 %2802
    %v2805 = vmul.f32 %v2787, %v2803
    %2807 = vrot.lane.b32.xlu0 %v2781, 32
    %v2808 = vpop.permute.xlu0 %2807
    %2811 = vrot.lane.b32.xlu0 %v2805, 64
    %v2812 = vpop.permute.xlu0 %2811
    %v2814 = vsel %vm177, %v2808, %v2812
    %2816 = vrot.lane.b32.xlu0 %v2814, 96
    %v2817 = vpop.permute.xlu0 %2816
    %v2819 = vmax.f32 %v2814, %v2817
    %v2820 = vmax.f32 %v1500, %v2819
    %v2821 = vld [vmem:[%s10] sm:$0xff]
    %v2822 = vld [vmem:[%s10 + $0x8] sm:$0xff]
    %v2823 = vld [vmem:[%s10 + $0x10] sm:$0xff]
    %v2824 = vld [vmem:[%s10 + $0x18] sm:$0xff]
    %v2825 = vld [vmem:[%s11] sm:$0x1]
    %v2827 = vlaneseq
    %v2828 = vshrl.u32 %v2827, 7
    %v2829 = vsub.s32 0, %v2828
    %v2830 = vrot.slane %v2825, %v2829
    %v2833 = vsel %vm177, %v2820, 0
    %2835 = vmatprep.subr.mxu0 0.0
    %2836 = vmatpush1.msra.mxu0 0.0
    %2837 = vmatprep.subr.mxu0 0.0
    %2838 = vmatpush1.msra.mxu0 0.0
    %2839 = vmatprep.subr.mxu0 0.0
    %2840 = vmatpush1.msra.mxu0 0.0
    %2841 = vmatprep.subr.mxu0 0.0
    %2842 = vmatpush1.msra.mxu0 0.0
    %2843 = vmatprep.subr.mxu0 0.0
    %2844 = vmatpush1.msra.mxu0 0.0
    %2845 = vmatprep.subr.mxu0 0.0
    %2846 = vmatpush1.msra.mxu0 0.0
    %2847 = vmatprep.subr.mxu0 0.0
    %2848 = vmatpush1.msra.mxu0 0.0
    %2849 = vmatprep.subr.mxu0 0.0
    %2850 = vmatpush1.msra.mxu0 0.0
    %2851 = vmatprep.subr.mxu0 0.0
    %2852 = vmatpush1.msra.mxu0 0.0
    %2853 = vmatprep.subr.mxu0 0.0
    %2854 = vmatpush1.msra.mxu0 0.0
    %2855 = vmatprep.subr.mxu0 0.0
    %2856 = vmatpush1.msra.mxu0 0.0
    %2857 = vmatprep.subr.mxu0 0.0
    %2858 = vmatpush1.msra.mxu0 0.0
    %2859 = vmatprep.subr.mxu0 0.0
    %2860 = vmatpush1.msra.mxu0 %v2824
    %2861 = vmatprep.subr.mxu0 0.0
    %2862 = vmatpush1.msra.mxu0 %v2823
    %2863 = vmatprep.subr.mxu0 0.0
    %2864 = vmatpush1.msra.mxu0 %v2822
    %2865 = vmatprep.subr.mxu0 0.0
    %2866 = vmatpush1.msra.mxu0 %v2821
    %2867 = vmatprep.subr.mxu0 0.0
    %2868 = vmatpush2.msra.mxu0 0.0
    %2869 = vmatprep.subr.mxu0 0.0
    %2870 = vmatpush2.msra.mxu0 0.0
    %2871 = vmatprep.subr.mxu0 0.0
    %2872 = vmatpush2.msra.mxu0 0.0
    %2873 = vmatprep.subr.mxu0 0.0
    %2874 = vmatpush2.msra.mxu0 0.0
    %2875 = vmatprep.subr.mxu0 0.0
    %2876 = vmatpush2.msra.mxu0 0.0
    %2877 = vmatprep.subr.mxu0 0.0
    %2878 = vmatpush2.msra.mxu0 0.0
    %2879 = vmatprep.subr.mxu0 0.0
    %2880 = vmatpush2.msra.mxu0 0.0
    %2881 = vmatprep.subr.mxu0 0.0
    %2882 = vmatpush2.msra.mxu0 0.0
    %2883 = vmatprep.subr.mxu0 0.0
    %2884 = vmatpush2.msra.mxu0 0.0
    %2885 = vmatprep.subr.mxu0 0.0
    %2886 = vmatpush2.msra.mxu0 0.0
    %2887 = vmatprep.subr.mxu0 0.0
    %2888 = vmatpush2.msra.mxu0 0.0
    %2889 = vmatprep.subr.mxu0 0.0
    %2890 = vmatpush2.msra.mxu0 0.0
    %2891 = vmatprep.subr.mxu0 0.0
    %2892 = vmatpush2.msra.mxu0 0.0
    %2893 = vmatprep.subr.mxu0 0.0
    %2894 = vmatpush2.msra.mxu0 0.0
    %2895 = vmatprep.subr.mxu0 0.0
    %2896 = vmatpush2.msra.mxu0 0.0
    %2897 = vmatprep.subr.mxu0 0.0
    %2898 = vmatpush2.msra.mxu0 0.0
    %2899 = vmatprep.mubr.f32.mxu0 0.0
    %2900 = vmatmul.mubr.f32.gmra.mxu0 %v2833
    %v2901 = vpop.f32.mrf.mxu0
    %v2902 = vadd.f32 %v2830, %v2901
    %v2903 = vpop.f32.mrf.mxu0
    %2904 = vdwg.mxu0
    %v2905 = vld [vmem:[%s12] sm:$0x1]
    %v2907 = vlaneseq
    %v2908 = vshrl.u32 %v2907, 7
    %v2909 = vsub.s32 0, %v2908
    %v2910 = vrot.slane %v2905, %v2909
    %v2912 = vmul.f32 %v2902, %v2910
    %vm2913 = vcmask 123904
    %v2914 = vsel %vm2913, %v2912, 0.0
    %2915 = vadd.xlane.f32.xlu0 %v2914
    %v2916 = vpop.xlane.xlu0 %2915
    %v2917 = vld [vmem:[#allocation2] sm:$0x1]
    %v2919 = vlaneseq
    %v2920 = vshrl.u32 %v2919, 7
    %v2921 = vsub.s32 0, %v2920
    %v2922 = vrot.slane %v2917, %v2921
    %v2924 = vadd.f32 %v2916, %v2922
    %vm2925 = vcmask 1024
    %2926 = vst.msk [vmem:[%s14] sm:$0x3] %vm2925, %v2924
    // Predicated region
    $region70: #{model_forward.1} parent=1 // pred_check
      _
    $region71: #{model_forward.1} parent=1 // pred_check_branch
      %2928 = sbr.rel (0) target = $region73
    $region72: #{model_forward.1} parent=1 // pred_region
      _
    $region73: #{model_forward.1} parent=1 // pred_fallthru
      _
    // Predicated region
    $region74: #{model_forward.1} parent=1 // pred_check
      _
    $region75: #{model_forward.1} parent=1 // pred_check_branch
      %2930 = sbr.rel (0) target = $region77
    $region76: #{model_forward.1} parent=1 // pred_region
      _
    $region77: #{model_forward.1} parent=1 // pred_fallthru
      _
    %2931 = vsyncpa [#allocation4], 1
    %2932 = vsyncpa [#allocation6], 1

</llo_original>
